<compile_context>
chip_gen: v7x
topology: tpu7x:2x2x1
jax: 0.10.0
libtpu: 0.0.40
codegen_flags: <defaults>
</compile_context>

<pallas_src>
import functools
import math

import jax
import jax.numpy as jnp
from jax.experimental import pallas as pl
from jax.experimental.pallas import tpu as pltpu


# ----------------------------------------------------------------------------
# Pass 1: K/V projection — computed once per token per layer (hoisted out of
# the per-query-tile grid so it is never recomputed across q tiles).
# ----------------------------------------------------------------------------
def kv_proj_kernel(x_ref, wkv_ref, bkv_ref, kv_ref):
    x = x_ref[0]                                    # (ts, D) bf16
    n_slots = wkv_ref.shape[0]                      # 2 * n_heads (static)
    for j in range(n_slots):                        # leading-axis indexing only: no lane slicing
        kv_ref[0, j] = (
            jnp.dot(x, wkv_ref[j], preferred_element_type=jnp.float32) + bkv_ref[j]
        ).astype(kv_ref.dtype)


# ----------------------------------------------------------------------------
# Pass 2: one full encoder layer (MHA + residual/LN + FFN + residual/LN) on a
# (tq, D) query tile.  K/V arrive pre-projected and pre-split per head.
# ----------------------------------------------------------------------------
def encoder_layer_kernel(x_q_ref, kv_ref,
                         wq_ref, bq_ref, wo_ref, bo_ref,
                         w1_ref, b1_ref, w2_ref, b2_ref,
                         g1_ref, beta1_ref, g2_ref, beta2_ref,
                         o_ref, *, n_heads, s_real):
    f32 = jnp.float32
    cdt = wq_ref.dtype                              # matmul compute dtype (bf16)
    H = n_heads
    xq = x_q_ref[0]                                 # (tq, D) bf16
    tq, D = xq.shape
    s_pad = kv_ref.shape[2]

    # Key-padding mask (only materialized when the sequence was padded).
    if s_pad != s_real:
        kidx = jax.lax.broadcasted_iota(jnp.int32, (tq, s_pad), 1)
        kmask = kidx < s_real
    else:
        kmask = None

    # --- multi-head attention: per-head weights on a leading axis, head merge
    # as MXU accumulation — no lane-dim slicing or concatenation anywhere.
    acc = jnp.zeros((tq, D), f32)
    for h in range(H):                              # static unroll, small H
        # 1/sqrt(dh) is pre-folded into wq/bq at weight-prep time.
        q_h = (jnp.dot(xq, wq_ref[h], preferred_element_type=f32) + bq_ref[h]).astype(cdt)  # (tq, dh)
        k_h = kv_ref[0, h]                          # (s_pad, dh) bf16
        v_h = kv_ref[0, H + h]                      # (s_pad, dh) bf16
        s = jnp.einsum('qd,kd->qk', q_h, k_h, preferred_element_type=f32)   # (tq, s_pad) f32
        if kmask is not None:
            s = jnp.where(kmask, s, -1e30)
        s = s - jnp.max(s, axis=-1, keepdims=True)
        p = jnp.exp(s)
        # Normalize AFTER the PV matmul: the divide touches (tq, dh), not (tq, s_pad).
        r = pl.reciprocal(jnp.sum(p, axis=-1, keepdims=True), approx=True)
        ctx = jnp.dot(p.astype(cdt), v_h, preferred_element_type=f32) * r   # (tq, dh)
        acc = acc + jnp.dot(ctx.astype(cdt), wo_ref[h], preferred_element_type=f32)
    attn = acc + bo_ref[...]

    # --- residual + LayerNorm 1 (dropout = identity, eval semantics) ---
    h1 = xq.astype(f32) + attn
    mu1 = jnp.mean(h1, axis=-1, keepdims=True)
    var1 = jnp.mean((h1 - mu1) ** 2, axis=-1, keepdims=True)
    ln1 = (h1 - mu1) * jax.lax.rsqrt(var1 + 1e-5) * g1_ref[...] + beta1_ref[...]

    # --- feed-forward: fc_2(relu(fc_1(x))) — bf16 matmuls, f32 accumulation ---
    ff = jnp.dot(ln1.astype(cdt), w1_ref[...], preferred_element_type=f32) + b1_ref[...]
    ff = jnp.maximum(ff, 0.0)
    ff = jnp.dot(ff.astype(cdt), w2_ref[...], preferred_element_type=f32) + b2_ref[...]

    # --- residual + LayerNorm 2 ---
    h2 = ln1 + ff
    mu2 = jnp.mean(h2, axis=-1, keepdims=True)
    var2 = jnp.mean((h2 - mu2) ** 2, axis=-1, keepdims=True)
    o_ref[0] = ((h2 - mu2) * jax.lax.rsqrt(var2 + 1e-5) * g2_ref[...]
                + beta2_ref[...]).astype(o_ref.dtype)


# ----------------------------------------------------------------------------
# Wrappers
# ----------------------------------------------------------------------------
WEIGHT_NAMES = ("wq", "bq", "wo", "bo", "w1", "b1", "w2", "b2",
                "g1", "beta1", "g2", "beta2")


def _physical_vmem_bytes():
    try:
        return int(pltpu.get_tpu_info().vmem_capacity_bytes)
    except Exception:
        return 64 * 1024 * 1024                     # conservative: v7x per-TC VMEM


def _seq_tiling(S):
    """Returns (padded sequence length, query-tile size)."""
    if S <= 128:
        s_pad = max(8, pl.cdiv(S, 8) * 8)           # sublane-align small sequences
        return s_pad, s_pad
    # Bigger tiles fill the 256-wide MXU (v6e) and halve per-step overhead;
    # 128 keeps the (tq, S) score tile comfortable inside v7x's 64 MiB VMEM.
    tq = 256 if _physical_vmem_bytes() >= (96 << 20) else 128
    return pl.cdiv(S, tq) * tq, tq


def _vmem_limit_bytes(s_pad, tq, D, d_ff, H):
    """Scoped-VMEM budget from the actual weight/activation/intermediate footprint."""
    bf16, f32 = 2, 4
    dh = D // H
    w = bf16 * (2 * H * D * dh + H * dh * D + D * d_ff + d_ff * D)           # bf16 matmul weights
    b = f32 * (3 * H * dh + 2 * D + d_ff + 4 * D)                            # f32 biases + LN params
    io = 2 * (bf16 * tq * D + bf16 * 2 * H * s_pad * dh + bf16 * tq * D)     # dbl-buffered blocks
    interm = f32 * (2 * tq * s_pad + tq * d_ff + 6 * tq * D)                 # scores / FFN / LN temps
    est = 2 * (2 * w + b + io + interm)                                      # headroom for relayouts
    cap = int(0.75 * _physical_vmem_bytes())        # ~48 MiB on v7x, ~96 MiB on v5e/v6e
    return int(min(max(est, 32 << 20), cap))


def _const_spec(arr):
    # NOTE(perf): constant index maps — on VMEM-tight chips (v7x) adding
    # pipeline_mode=pl.Buffered(1) single-buffers these and recovers a few MiB.
    # Left at the default for maximum portability.
    n = arr.ndim
    return pl.BlockSpec(arr.shape, lambda b, q, _n=n: (0,) * _n)


def encoder_layer(x, w, n_heads, *, s_real, tq):
    """One TransformerEncoderLayer. x: (B, s_pad, D) bf16 with s_pad % tq == 0."""
    B, s_pad, D = x.shape
    H = n_heads
    dh = D // H
    d_ff = w["w1"].shape[1]
    n_q = s_pad // tq
    vmem = _vmem_limit_bytes(s_pad, tq, D, d_ff, H)

    # ---- pass 1: K/V projection, once per token (hoisted out of the q-tile loop) ----
    kv = pl.pallas_call(
        kv_proj_kernel,
        out_shape=jax.ShapeDtypeStruct((B, 2 * H, s_pad, dh), jnp.bfloat16),
        grid_spec=pltpu.PrefetchScalarGridSpec(
            num_scalar_prefetch=0,
            grid=(B, n_q),
            in_specs=[pl.BlockSpec((1, tq, D), lambda b, s: (b, s, 0)),
                      _const_spec(w["wkv"]),
                      _const_spec(w["bkv"])],
            out_specs=pl.BlockSpec((1, 2 * H, tq, dh), lambda b, s: (b, 0, s, 0)),
        ),
        compiler_params=pltpu.CompilerParams(
            dimension_semantics=("parallel", "parallel"),
            vmem_limit_bytes=vmem),
    )(x, w["wkv"], w["bkv"])

    # ---- pass 2: attention + residual/LN + FFN + residual/LN per query tile ----
    weights = [w[n] for n in WEIGHT_NAMES]
    in_specs = [pl.BlockSpec((1, tq, D), lambda b, q: (b, q, 0)),                 # query tile
                pl.BlockSpec((1, 2 * H, s_pad, dh), lambda b, q: (b, 0, 0, 0))]   # full K/V (per batch)
    in_specs += [_const_spec(a) for a in weights]

    return pl.pallas_call(
        functools.partial(encoder_layer_kernel, n_heads=H, s_real=s_real),
        out_shape=jax.ShapeDtypeStruct((B, s_pad, D), jnp.bfloat16),
        grid_spec=pltpu.PrefetchScalarGridSpec(
            num_scalar_prefetch=0,
            grid=(B, n_q),
            in_specs=in_specs,
            out_specs=pl.BlockSpec((1, tq, D), lambda b, q: (b, q, 0)),
        ),
        compiler_params=pltpu.CompilerParams(
            dimension_semantics=("parallel", "parallel"),
            vmem_limit_bytes=vmem),
    )(x, kv, *weights)


def transformer_forward(x, packed_layers, n_heads):
    """x: (B, S, D) f32. Returns (B, D, S) f32 — mirrors the module's final `x.transpose(1, 2)`."""
    B, S, D = x.shape
    s_pad, tq = _seq_tiling(S)
    xb = x.astype(jnp.bfloat16)                     # bf16 inter-layer activations (HBM traffic / 2)
    if s_pad != S:
        xb = jnp.pad(xb, ((0, 0), (0, s_pad - S), (0, 0)))
    for lw in packed_layers:
        xb = encoder_layer(xb, lw, n_heads, s_real=S, tq=tq)
    out = xb[:, :S, :]
    # TODO(synk): the final transpose could be folded into the last layer's out_specs
    # ((B, D, tq) blocks, in-kernel XLU transpose) to save one HBM pass; kept as glue.
    return jnp.transpose(out, (0, 2, 1)).astype(jnp.float32)


# ----------------------------------------------------------------------------
# Parameter construction / packing
# ----------------------------------------------------------------------------
def init_layer_params(key, d_model, d_ff):
    """PyTorch-Linear-style uniform init, f32, weights stored as (fan_in, fan_out)."""
    def lin(k, fan_in, fan_out):
        bound = 1.0 / math.sqrt(fan_in)
        kw, kb = jax.random.split(k)
        wgt = jax.random.uniform(kw, (fan_in, fan_out), jnp.float32, -bound, bound)
        bia = jax.random.uniform(kb, (1, fan_out), jnp.float32, -bound, bound)
        return wgt, bia

    ks = jax.random.split(key, 6)
    wq, bq = lin(ks[0], d_model, d_model)
    wk, bk = lin(ks[1], d_model, d_model)
    wv, bv = lin(ks[2], d_model, d_model)
    wo, bo = lin(ks[3], d_model, d_model)
    w1, b1 = lin(ks[4], d_model, d_ff)
    w2, b2 = lin(ks[5], d_ff, d_model)
    return dict(wq=wq, bq=bq, wk=wk, bk=bk, wv=wv, bv=bv, wo=wo, bo=bo,
                w1=w1, b1=b1, w2=w2, b2=b2,
                g1=jnp.ones((1, d_model), jnp.float32),
                beta1=jnp.zeros((1, d_model), jnp.float32),
                g2=jnp.ones((1, d_model), jnp.float32),
                beta2=jnp.zeros((1, d_model), jnp.float32))


def prepare_layer_weights(p, n_heads):
    """Pack f32 module params into the kernel layout:
       - per-head weight slabs on a LEADING axis (no lane slicing in-kernel),
       - 1/sqrt(dh) folded into the Q projection,
       - K|V fused as one (2H, D, dh) operand feeding the hoisted projection pass,
       - matmul weights cast to bf16 (accumulation stays f32 in the kernels)."""
    D = p["wq"].shape[0]
    H = n_heads
    dh = D // H
    scale = 1.0 / math.sqrt(dh)
    bf16 = jnp.bfloat16
    # TODO(synk): for production shapes, pad D / d_ff / dh to multiples of 128 here
    # (lane-dense stores); omitted to keep LayerNorm statistics exact at small dims.

    def heads_out(wgt):   # (D, D) -> (H, D, dh): per-head output columns on a leading axis
        return jnp.transpose(wgt.reshape(D, H, dh), (1, 0, 2))

    def heads_bias(bia):  # (1, D) -> (H, 1, dh)
        return jnp.transpose(bia.reshape(1, H, dh), (1, 0, 2))

    return dict(
        wq=(heads_out(p["wq"]) * scale).astype(bf16),
        bq=heads_bias(p["bq"]) * scale,
        wkv=jnp.concatenate([heads_out(p["wk"]), heads_out(p["wv"])], axis=0).astype(bf16),
        bkv=jnp.concatenate([heads_bias(p["bk"]), heads_bias(p["bv"])], axis=0),
        wo=p["wo"].reshape(H, dh, D).astype(bf16),   # head merge = MXU accumulation
        bo=p["bo"],
        w1=p["w1"].astype(bf16), b1=p["b1"],
        w2=p["w2"].astype(bf16), b2=p["b2"],
        g1=p["g1"], beta1=p["beta1"], g2=p["g2"], beta2=p["beta2"])


# ----------------------------------------------------------------------------
# Pure-JAX f32 reference for a correctness check
# ----------------------------------------------------------------------------
def _layernorm_ref(x, g, b, eps=1e-5):
    mu = jnp.mean(x, axis=-1, keepdims=True)
    var = jnp.mean((x - mu) ** 2, axis=-1, keepdims=True)
    return (x - mu) * jax.lax.rsqrt(var + eps) * g + b


def transformer_reference(x, all_params, n_heads):
    B, S, D = x.shape
    dh = D // n_heads
    for p in all_params:
        q = x @ p["wq"] + p["bq"]
        k = x @ p["wk"] + p["bk"]
        v = x @ p["wv"] + p["bv"]

        def split(t):
            return t.reshape(B, S, n_heads, dh).transpose(0, 2, 1, 3)

        qh, kh, vh = split(q), split(k), split(v)
        s = jnp.einsum("bhqd,bhkd->bhqk", qh, kh) / math.sqrt(dh)
        a = jax.nn.softmax(s, axis=-1)
        ctx = jnp.einsum("bhqk,bhkd->bhqd", a, vh).transpose(0, 2, 1, 3).reshape(B, S, D)
        attn = ctx @ p["wo"] + p["bo"]
        x = _layernorm_ref(x + attn, p["g1"], p["beta1"])
        ff = jnp.maximum(x @ p["w1"] + p["b1"], 0.0) @ p["w2"] + p["b2"]
        x = _layernorm_ref(x + ff, p["g2"], p["beta2"])
    return jnp.transpose(x, (0, 2, 1))


if __name__ == "__main__":
    # small shapes consistent with the module's forward (no-embedding path)
    batch, seq, d_model, n_heads, d_ff, depth = 2, 8, 32, 4, 64, 2

    key = jax.random.PRNGKey(0)
    k_x, k_p = jax.random.split(key)
    x = jax.random.normal(k_x, (batch, seq, d_model), jnp.float32)

    raw_params = [init_layer_params(jax.random.fold_in(k_p, l), d_model, d_ff)
                  for l in range(depth)]
    packed = [prepare_layer_weights(p, n_heads) for p in raw_params]

    fwd = jax.jit(functools.partial(transformer_forward, n_heads=n_heads))
    out = jax.block_until_ready(fwd(x, packed))
    assert out.shape == (batch, d_model, seq), out.shape

    ref = jax.block_until_ready(transformer_reference(x, raw_params, n_heads))
    max_err = float(jnp.max(jnp.abs(out - ref)))
    mean_err = float(jnp.mean(jnp.abs(out - ref)))
    # bf16 weights + bf16 inter-layer activations (f32 accumulation) vs f32 reference.
    assert max_err < 0.15 and mean_err < 0.02, (max_err, mean_err)
    print("KERNEL_OK")
</pallas_src>

<mosaic_0001>
module attributes {stable_mosaic.version = 11 : i64} {
  func.func @kv_proj_kernel(%arg0: i32, %arg1: i32, %arg2: memref<1x8x32xbf16, #tpu.memory_space<vmem>>, %arg3: memref<8x32x8xbf16, #tpu.memory_space<vmem>>, %arg4: memref<8x1x8xf32, #tpu.memory_space<vmem>>, %arg5: memref<1x8x8x8xbf16, #tpu.memory_space<vmem>>) attributes {dimension_semantics = [#tpu.dimension_semantics<parallel>, #tpu.dimension_semantics<parallel>], iteration_bounds = array<i64: 2, 1>, scalar_prefetch = 0 : i64, scratch_operands = 0 : i64, tpu.core_type = #tpu.core_type<tc>, window_params = [{transform_indices = @transform_0, window_bounds = array<i64: 1, 8, 32>}, {pipeline_mode = #tpu.pipeline_mode<synchronous>, transform_indices = @transform_1, window_bounds = array<i64: 8, 32, 8>}, {pipeline_mode = #tpu.pipeline_mode<synchronous>, transform_indices = @transform_2, window_bounds = array<i64: 8, 1, 8>}, {transform_indices = @transform_3, window_bounds = array<i64: 1, 8, 8, 8>}]} {
    %c0 = arith.constant 0 : index
    %c0_0 = arith.constant 0 : index
    %c0_1 = arith.constant 0 : index
    %0 = vector.load %arg2[%c0, %c0_0, %c0_1] : memref<1x8x32xbf16, #tpu.memory_space<vmem>>, vector<1x8x32xbf16>
    %1 = vector.shape_cast %0 : vector<1x8x32xbf16> to vector<8x32xbf16>
    %c0_2 = arith.constant 0 : index
    %c0_3 = arith.constant 0 : index
    %c0_4 = arith.constant 0 : index
    %2 = vector.load %arg3[%c0_2, %c0_3, %c0_4] : memref<8x32x8xbf16, #tpu.memory_space<vmem>>, vector<1x32x8xbf16>
    %3 = vector.shape_cast %2 : vector<1x32x8xbf16> to vector<32x8xbf16>
    %cst = arith.constant dense<0.000000e+00> : vector<8x8xf32>
    %4 = tpu.matmul %1, %3, %cst {dimension_numbers = #tpu.dot_dimension_numbers<[1], [0], [0], [1], [0, 0, 1, 1], [], []>} : vector<8x32xbf16>, vector<32x8xbf16>, vector<8x8xf32> -> vector<8x8xf32>
    %c0_5 = arith.constant 0 : index
    %c0_6 = arith.constant 0 : index
    %c0_7 = arith.constant 0 : index
    %5 = vector.load %arg4[%c0_5, %c0_6, %c0_7] : memref<8x1x8xf32, #tpu.memory_space<vmem>>, vector<1x1x8xf32>
    %6 = vector.shape_cast %5 : vector<1x1x8xf32> to vector<1x8xf32>
    %7 = vector.broadcast %6 : vector<1x8xf32> to vector<8x8xf32>
    %8 = arith.addf %4, %7 : vector<8x8xf32>
    %9 = arith.truncf %8 : vector<8x8xf32> to vector<8x8xbf16>
    %c0_8 = arith.constant 0 : index
    %c0_9 = arith.constant 0 : index
    %c0_10 = arith.constant 0 : index
    %c0_11 = arith.constant 0 : index
    %10 = vector.load %arg5[%c0_8, %c0_9, %c0_10, %c0_11] : memref<1x8x8x8xbf16, #tpu.memory_space<vmem>>, vector<1x1x8x8xbf16>
    %11 = vector.shape_cast %10 : vector<1x1x8x8xbf16> to vector<8x8xbf16>
    %12 = vector.shape_cast %9 : vector<8x8xbf16> to vector<1x1x8x8xbf16>
    tpu.vector_store %arg5[%c0_8, %c0_9, %c0_10, %c0_11], %12 {strides = array<i32>} : memref<1x8x8x8xbf16, #tpu.memory_space<vmem>>, vector<1x1x8x8xbf16>,
    %c1 = arith.constant 1 : index
    %c0_12 = arith.constant 0 : index
    %c0_13 = arith.constant 0 : index
    %13 = vector.load %arg3[%c1, %c0_12, %c0_13] : memref<8x32x8xbf16, #tpu.memory_space<vmem>>, vector<1x32x8xbf16>
    %14 = vector.shape_cast %13 : vector<1x32x8xbf16> to vector<32x8xbf16>
    %cst_14 = arith.constant dense<0.000000e+00> : vector<8x8xf32>
    %15 = tpu.matmul %1, %14, %cst_14 {dimension_numbers = #tpu.dot_dimension_numbers<[1], [0], [0], [1], [0, 0, 1, 1], [], []>} : vector<8x32xbf16>, vector<32x8xbf16>, vector<8x8xf32> -> vector<8x8xf32>
    %c1_15 = arith.constant 1 : index
    %c0_16 = arith.constant 0 : index
    %c0_17 = arith.constant 0 : index
    %16 = vector.load %arg4[%c1_15, %c0_16, %c0_17] : memref<8x1x8xf32, #tpu.memory_space<vmem>>, vector<1x1x8xf32>
    %17 = vector.shape_cast %16 : vector<1x1x8xf32> to vector<1x8xf32>
    %18 = vector.broadcast %17 : vector<1x8xf32> to vector<8x8xf32>
    %19 = arith.addf %15, %18 : vector<8x8xf32>
    %20 = arith.truncf %19 : vector<8x8xf32> to vector<8x8xbf16>
    %c0_18 = arith.constant 0 : index
    %c1_19 = arith.constant 1 : index
    %c0_20 = arith.constant 0 : index
    %c0_21 = arith.constant 0 : index
    %21 = vector.load %arg5[%c0_18, %c1_19, %c0_20, %c0_21] : memref<1x8x8x8xbf16, #tpu.memory_space<vmem>>, vector<1x1x8x8xbf16>
    %22 = vector.shape_cast %21 : vector<1x1x8x8xbf16> to vector<8x8xbf16>
    %23 = vector.shape_cast %20 : vector<8x8xbf16> to vector<1x1x8x8xbf16>
    tpu.vector_store %arg5[%c0_18, %c1_19, %c0_20, %c0_21], %23 {strides = array<i32>} : memref<1x8x8x8xbf16, #tpu.memory_space<vmem>>, vector<1x1x8x8xbf16>,
    %c2 = arith.constant 2 : index
    %c0_22 = arith.constant 0 : index
    %c0_23 = arith.constant 0 : index
    %24 = vector.load %arg3[%c2, %c0_22, %c0_23] : memref<8x32x8xbf16, #tpu.memory_space<vmem>>, vector<1x32x8xbf16>
    %25 = vector.shape_cast %24 : vector<1x32x8xbf16> to vector<32x8xbf16>
    %cst_24 = arith.constant dense<0.000000e+00> : vector<8x8xf32>
    %26 = tpu.matmul %1, %25, %cst_24 {dimension_numbers = #tpu.dot_dimension_numbers<[1], [0], [0], [1], [0, 0, 1, 1], [], []>} : vector<8x32xbf16>, vector<32x8xbf16>, vector<8x8xf32> -> vector<8x8xf32>
    %c2_25 = arith.constant 2 : index
    %c0_26 = arith.constant 0 : index
    %c0_27 = arith.constant 0 : index
    %27 = vector.load %arg4[%c2_25, %c0_26, %c0_27] : memref<8x1x8xf32, #tpu.memory_space<vmem>>, vector<1x1x8xf32>
    %28 = vector.shape_cast %27 : vector<1x1x8xf32> to vector<1x8xf32>
    %29 = vector.broadcast %28 : vector<1x8xf32> to vector<8x8xf32>
    %30 = arith.addf %26, %29 : vector<8x8xf32>
    %31 = arith.truncf %30 : vector<8x8xf32> to vector<8x8xbf16>
    %c0_28 = arith.constant 0 : index
    %c2_29 = arith.constant 2 : index
    %c0_30 = arith.constant 0 : index
    %c0_31 = arith.constant 0 : index
    %32 = vector.load %arg5[%c0_28, %c2_29, %c0_30, %c0_31] : memref<1x8x8x8xbf16, #tpu.memory_space<vmem>>, vector<1x1x8x8xbf16>
    %33 = vector.shape_cast %32 : vector<1x1x8x8xbf16> to vector<8x8xbf16>
    %34 = vector.shape_cast %31 : vector<8x8xbf16> to vector<1x1x8x8xbf16>
    tpu.vector_store %arg5[%c0_28, %c2_29, %c0_30, %c0_31], %34 {strides = array<i32>} : memref<1x8x8x8xbf16, #tpu.memory_space<vmem>>, vector<1x1x8x8xbf16>,
    %c3 = arith.constant 3 : index
    %c0_32 = arith.constant 0 : index
    %c0_33 = arith.constant 0 : index
    %35 = vector.load %arg3[%c3, %c0_32, %c0_33] : memref<8x32x8xbf16, #tpu.memory_space<vmem>>, vector<1x32x8xbf16>
    %36 = vector.shape_cast %35 : vector<1x32x8xbf16> to vector<32x8xbf16>
    %cst_34 = arith.constant dense<0.000000e+00> : vector<8x8xf32>
    %37 = tpu.matmul %1, %36, %cst_34 {dimension_numbers = #tpu.dot_dimension_numbers<[1], [0], [0], [1], [0, 0, 1, 1], [], []>} : vector<8x32xbf16>, vector<32x8xbf16>, vector<8x8xf32> -> vector<8x8xf32>
    %c3_35 = arith.constant 3 : index
    %c0_36 = arith.constant 0 : index
    %c0_37 = arith.constant 0 : index
    %38 = vector.load %arg4[%c3_35, %c0_36, %c0_37] : memref<8x1x8xf32, #tpu.memory_space<vmem>>, vector<1x1x8xf32>
    %39 = vector.shape_cast %38 : vector<1x1x8xf32> to vector<1x8xf32>
    %40 = vector.broadcast %39 : vector<1x8xf32> to vector<8x8xf32>
    %41 = arith.addf %37, %40 : vector<8x8xf32>
    %42 = arith.truncf %41 : vector<8x8xf32> to vector<8x8xbf16>
    %c0_38 = arith.constant 0 : index
    %c3_39 = arith.constant 3 : index
    %c0_40 = arith.constant 0 : index
    %c0_41 = arith.constant 0 : index
    %43 = vector.load %arg5[%c0_38, %c3_39, %c0_40, %c0_41] : memref<1x8x8x8xbf16, #tpu.memory_space<vmem>>, vector<1x1x8x8xbf16>
    %44 = vector.shape_cast %43 : vector<1x1x8x8xbf16> to vector<8x8xbf16>
    %45 = vector.shape_cast %42 : vector<8x8xbf16> to vector<1x1x8x8xbf16>
    tpu.vector_store %arg5[%c0_38, %c3_39, %c0_40, %c0_41], %45 {strides = array<i32>} : memref<1x8x8x8xbf16, #tpu.memory_space<vmem>>, vector<1x1x8x8xbf16>,
    %c4 = arith.constant 4 : index
    %c0_42 = arith.constant 0 : index
    %c0_43 = arith.constant 0 : index
    %46 = vector.load %arg3[%c4, %c0_42, %c0_43] : memref<8x32x8xbf16, #tpu.memory_space<vmem>>, vector<1x32x8xbf16>
    %47 = vector.shape_cast %46 : vector<1x32x8xbf16> to vector<32x8xbf16>
    %cst_44 = arith.constant dense<0.000000e+00> : vector<8x8xf32>
    %48 = tpu.matmul %1, %47, %cst_44 {dimension_numbers = #tpu.dot_dimension_numbers<[1], [0], [0], [1], [0, 0, 1, 1], [], []>} : vector<8x32xbf16>, vector<32x8xbf16>, vector<8x8xf32> -> vector<8x8xf32>
    %c4_45 = arith.constant 4 : index
    %c0_46 = arith.constant 0 : index
    %c0_47 = arith.constant 0 : index
    %49 = vector.load %arg4[%c4_45, %c0_46, %c0_47] : memref<8x1x8xf32, #tpu.memory_space<vmem>>, vector<1x1x8xf32>
    %50 = vector.shape_cast %49 : vector<1x1x8xf32> to vector<1x8xf32>
    %51 = vector.broadcast %50 : vector<1x8xf32> to vector<8x8xf32>
    %52 = arith.addf %48, %51 : vector<8x8xf32>
    %53 = arith.truncf %52 : vector<8x8xf32> to vector<8x8xbf16>
    %c0_48 = arith.constant 0 : index
    %c4_49 = arith.constant 4 : index
    %c0_50 = arith.constant 0 : index
    %c0_51 = arith.constant 0 : index
    %54 = vector.load %arg5[%c0_48, %c4_49, %c0_50, %c0_51] : memref<1x8x8x8xbf16, #tpu.memory_space<vmem>>, vector<1x1x8x8xbf16>
    %55 = vector.shape_cast %54 : vector<1x1x8x8xbf16> to vector<8x8xbf16>
    %56 = vector.shape_cast %53 : vector<8x8xbf16> to vector<1x1x8x8xbf16>
    tpu.vector_store %arg5[%c0_48, %c4_49, %c0_50, %c0_51], %56 {strides = array<i32>} : memref<1x8x8x8xbf16, #tpu.memory_space<vmem>>, vector<1x1x8x8xbf16>,
    %c5 = arith.constant 5 : index
    %c0_52 = arith.constant 0 : index
    %c0_53 = arith.constant 0 : index
    %57 = vector.load %arg3[%c5, %c0_52, %c0_53] : memref<8x32x8xbf16, #tpu.memory_space<vmem>>, vector<1x32x8xbf16>
    %58 = vector.shape_cast %57 : vector<1x32x8xbf16> to vector<32x8xbf16>
    %cst_54 = arith.constant dense<0.000000e+00> : vector<8x8xf32>
    %59 = tpu.matmul %1, %58, %cst_54 {dimension_numbers = #tpu.dot_dimension_numbers<[1], [0], [0], [1], [0, 0, 1, 1], [], []>} : vector<8x32xbf16>, vector<32x8xbf16>, vector<8x8xf32> -> vector<8x8xf32>
    %c5_55 = arith.constant 5 : index
    %c0_56 = arith.constant 0 : index
    %c0_57 = arith.constant 0 : index
    %60 = vector.load %arg4[%c5_55, %c0_56, %c0_57] : memref<8x1x8xf32, #tpu.memory_space<vmem>>, vector<1x1x8xf32>
    %61 = vector.shape_cast %60 : vector<1x1x8xf32> to vector<1x8xf32>
    %62 = vector.broadcast %61 : vector<1x8xf32> to vector<8x8xf32>
    %63 = arith.addf %59, %62 : vector<8x8xf32>
    %64 = arith.truncf %63 : vector<8x8xf32> to vector<8x8xbf16>
    %c0_58 = arith.constant 0 : index
    %c5_59 = arith.constant 5 : index
    %c0_60 = arith.constant 0 : index
    %c0_61 = arith.constant 0 : index
    %65 = vector.load %arg5[%c0_58, %c5_59, %c0_60, %c0_61] : memref<1x8x8x8xbf16, #tpu.memory_space<vmem>>, vector<1x1x8x8xbf16>
    %66 = vector.shape_cast %65 : vector<1x1x8x8xbf16> to vector<8x8xbf16>
    %67 = vector.shape_cast %64 : vector<8x8xbf16> to vector<1x1x8x8xbf16>
    tpu.vector_store %arg5[%c0_58, %c5_59, %c0_60, %c0_61], %67 {strides = array<i32>} : memref<1x8x8x8xbf16, #tpu.memory_space<vmem>>, vector<1x1x8x8xbf16>,
    %c6 = arith.constant 6 : index
    %c0_62 = arith.constant 0 : index
    %c0_63 = arith.constant 0 : index
    %68 = vector.load %arg3[%c6, %c0_62, %c0_63] : memref<8x32x8xbf16, #tpu.memory_space<vmem>>, vector<1x32x8xbf16>
    %69 = vector.shape_cast %68 : vector<1x32x8xbf16> to vector<32x8xbf16>
    %cst_64 = arith.constant dense<0.000000e+00> : vector<8x8xf32>
    %70 = tpu.matmul %1, %69, %cst_64 {dimension_numbers = #tpu.dot_dimension_numbers<[1], [0], [0], [1], [0, 0, 1, 1], [], []>} : vector<8x32xbf16>, vector<32x8xbf16>, vector<8x8xf32> -> vector<8x8xf32>
    %c6_65 = arith.constant 6 : index
    %c0_66 = arith.constant 0 : index
    %c0_67 = arith.constant 0 : index
    %71 = vector.load %arg4[%c6_65, %c0_66, %c0_67] : memref<8x1x8xf32, #tpu.memory_space<vmem>>, vector<1x1x8xf32>
    %72 = vector.shape_cast %71 : vector<1x1x8xf32> to vector<1x8xf32>
    %73 = vector.broadcast %72 : vector<1x8xf32> to vector<8x8xf32>
    %74 = arith.addf %70, %73 : vector<8x8xf32>
    %75 = arith.truncf %74 : vector<8x8xf32> to vector<8x8xbf16>
    %c0_68 = arith.constant 0 : index
    %c6_69 = arith.constant 6 : index
    %c0_70 = arith.constant 0 : index
    %c0_71 = arith.constant 0 : index
    %76 = vector.load %arg5[%c0_68, %c6_69, %c0_70, %c0_71] : memref<1x8x8x8xbf16, #tpu.memory_space<vmem>>, vector<1x1x8x8xbf16>
    %77 = vector.shape_cast %76 : vector<1x1x8x8xbf16> to vector<8x8xbf16>
    %78 = vector.shape_cast %75 : vector<8x8xbf16> to vector<1x1x8x8xbf16>
    tpu.vector_store %arg5[%c0_68, %c6_69, %c0_70, %c0_71], %78 {strides = array<i32>} : memref<1x8x8x8xbf16, #tpu.memory_space<vmem>>, vector<1x1x8x8xbf16>,
    %c7 = arith.constant 7 : index
    %c0_72 = arith.constant 0 : index
    %c0_73 = arith.constant 0 : index
    %79 = vector.load %arg3[%c7, %c0_72, %c0_73] : memref<8x32x8xbf16, #tpu.memory_space<vmem>>, vector<1x32x8xbf16>
    %80 = vector.shape_cast %79 : vector<1x32x8xbf16> to vector<32x8xbf16>
    %cst_74 = arith.constant dense<0.000000e+00> : vector<8x8xf32>
    %81 = tpu.matmul %1, %80, %cst_74 {dimension_numbers = #tpu.dot_dimension_numbers<[1], [0], [0], [1], [0, 0, 1, 1], [], []>} : vector<8x32xbf16>, vector<32x8xbf16>, vector<8x8xf32> -> vector<8x8xf32>
    %c7_75 = arith.constant 7 : index
    %c0_76 = arith.constant 0 : index
    %c0_77 = arith.constant 0 : index
    %82 = vector.load %arg4[%c7_75, %c0_76, %c0_77] : memref<8x1x8xf32, #tpu.memory_space<vmem>>, vector<1x1x8xf32>
    %83 = vector.shape_cast %82 : vector<1x1x8xf32> to vector<1x8xf32>
    %84 = vector.broadcast %83 : vector<1x8xf32> to vector<8x8xf32>
    %85 = arith.addf %81, %84 : vector<8x8xf32>
    %86 = arith.truncf %85 : vector<8x8xf32> to vector<8x8xbf16>
    %c0_78 = arith.constant 0 : index
    %c7_79 = arith.constant 7 : index
    %c0_80 = arith.constant 0 : index
    %c0_81 = arith.constant 0 : index
    %87 = vector.load %arg5[%c0_78, %c7_79, %c0_80, %c0_81] : memref<1x8x8x8xbf16, #tpu.memory_space<vmem>>, vector<1x1x8x8xbf16>
    %88 = vector.shape_cast %87 : vector<1x1x8x8xbf16> to vector<8x8xbf16>
    %89 = vector.shape_cast %86 : vector<8x8xbf16> to vector<1x1x8x8xbf16>
    tpu.vector_store %arg5[%c0_78, %c7_79, %c0_80, %c0_81], %89 {strides = array<i32>} : memref<1x8x8x8xbf16, #tpu.memory_space<vmem>>, vector<1x1x8x8xbf16>,
    return
  }
  func.func @transform_0(%arg0: i32, %arg1: i32) -> (i32, i32, i32) {
    %c0_i32 = arith.constant 0 : i32
    %c0_i32_0 = arith.constant 0 : i32
    return %arg0, %arg1, %c0_i32 : i32, i32, i32
  }
  func.func @transform_1(%arg0: i32, %arg1: i32) -> (i32, i32, i32) {
    %c0_i32 = arith.constant 0 : i32
    %c0_i32_0 = arith.constant 0 : i32
    %c0_i32_1 = arith.constant 0 : i32
    %c0_i32_2 = arith.constant 0 : i32
    return %c0_i32, %c0_i32_0, %c0_i32_1 : i32, i32, i32
  }
  func.func @transform_2(%arg0: i32, %arg1: i32) -> (i32, i32, i32) {
    %c0_i32 = arith.constant 0 : i32
    %c0_i32_0 = arith.constant 0 : i32
    %c0_i32_1 = arith.constant 0 : i32
    %c0_i32_2 = arith.constant 0 : i32
    return %c0_i32, %c0_i32_0, %c0_i32_1 : i32, i32, i32
  }
  func.func @transform_3(%arg0: i32, %arg1: i32) -> (i32, i32, i32, i32) {
    %c0_i32 = arith.constant 0 : i32
    %c0_i32_0 = arith.constant 0 : i32
    %c0_i32_1 = arith.constant 0 : i32
    return %arg0, %c0_i32, %arg1, %c0_i32_0 : i32, i32, i32, i32
  }
}

module attributes {stable_mosaic.version = 11 : i64} {
  func.func @encoder_layer_kernel(%arg0: i32, %arg1: i32, %arg2: memref<1x8x32xbf16, #tpu.memory_space<vmem>>, %arg3: memref<1x8x8x8xbf16, #tpu.memory_space<vmem>>, %arg4: memref<4x32x8xbf16, #tpu.memory_space<vmem>>, %arg5: memref<4x1x8xf32, #tpu.memory_space<vmem>>, %arg6: memref<4x8x32xbf16, #tpu.memory_space<vmem>>, %arg7: memref<1x32xf32, #tpu.memory_space<vmem>>, %arg8: memref<32x64xbf16, #tpu.memory_space<vmem>>, %arg9: memref<1x64xf32, #tpu.memory_space<vmem>>, %arg10: memref<64x32xbf16, #tpu.memory_space<vmem>>, %arg11: memref<1x32xf32, #tpu.memory_space<vmem>>, %arg12: memref<1x32xf32, #tpu.memory_space<vmem>>, %arg13: memref<1x32xf32, #tpu.memory_space<vmem>>, %arg14: memref<1x32xf32, #tpu.memory_space<vmem>>, %arg15: memref<1x32xf32, #tpu.memory_space<vmem>>, %arg16: memref<1x8x32xbf16, #tpu.memory_space<vmem>>) attributes {dimension_semantics = [#tpu.dimension_semantics<parallel>, #tpu.dimension_semantics<parallel>], iteration_bounds = array<i64: 2, 1>, scalar_prefetch = 0 : i64, scratch_operands = 0 : i64, tpu.core_type = #tpu.core_type<tc>, window_params = [{transform_indices = @transform_0, window_bounds = array<i64: 1, 8, 32>}, {transform_indices = @transform_1, window_bounds = array<i64: 1, 8, 8, 8>}, {pipeline_mode = #tpu.pipeline_mode<synchronous>, transform_indices = @transform_2, window_bounds = array<i64: 4, 32, 8>}, {pipeline_mode = #tpu.pipeline_mode<synchronous>, transform_indices = @transform_3, window_bounds = array<i64: 4, 1, 8>}, {pipeline_mode = #tpu.pipeline_mode<synchronous>, transform_indices = @transform_4, window_bounds = array<i64: 4, 8, 32>}, {pipeline_mode = #tpu.pipeline_mode<synchronous>, transform_indices = @transform_5, window_bounds = array<i64: 1, 32>}, {pipeline_mode = #tpu.pipeline_mode<synchronous>, transform_indices = @transform_6, window_bounds = array<i64: 32, 64>}, {pipeline_mode = #tpu.pipeline_mode<synchronous>, transform_indices = @transform_7, window_bounds = array<i64: 1, 64>}, {pipeline_mode = #tpu.pipeline_mode<synchronous>, transform_indices = @transform_8, window_bounds = array<i64: 64, 32>}, {pipeline_mode = #tpu.pipeline_mode<synchronous>, transform_indices = @transform_9, window_bounds = array<i64: 1, 32>}, {pipeline_mode = #tpu.pipeline_mode<synchronous>, transform_indices = @transform_10, window_bounds = array<i64: 1, 32>}, {pipeline_mode = #tpu.pipeline_mode<synchronous>, transform_indices = @transform_11, window_bounds = array<i64: 1, 32>}, {pipeline_mode = #tpu.pipeline_mode<synchronous>, transform_indices = @transform_12, window_bounds = array<i64: 1, 32>}, {pipeline_mode = #tpu.pipeline_mode<synchronous>, transform_indices = @transform_13, window_bounds = array<i64: 1, 32>}, {transform_indices = @transform_14, window_bounds = array<i64: 1, 8, 32>}]} {
    %c0 = arith.constant 0 : index
    %c0_0 = arith.constant 0 : index
    %c0_1 = arith.constant 0 : index
    %0 = vector.load %arg2[%c0, %c0_0, %c0_1] : memref<1x8x32xbf16, #tpu.memory_space<vmem>>, vector<1x8x32xbf16>
    %1 = vector.shape_cast %0 : vector<1x8x32xbf16> to vector<8x32xbf16>
    %cst = arith.constant 0.000000e+00 : f32
    %2 = vector.broadcast %cst : f32 to vector<8x32xf32>
    %c0_2 = arith.constant 0 : index
    %c0_3 = arith.constant 0 : index
    %c0_4 = arith.constant 0 : index
    %3 = vector.load %arg4[%c0_2, %c0_3, %c0_4] : memref<4x32x8xbf16, #tpu.memory_space<vmem>>, vector<1x32x8xbf16>
    %4 = vector.shape_cast %3 : vector<1x32x8xbf16> to vector<32x8xbf16>
    %cst_5 = arith.constant dense<0.000000e+00> : vector<8x8xf32>
    %5 = tpu.matmul %1, %4, %cst_5 {dimension_numbers = #tpu.dot_dimension_numbers<[1], [0], [0], [1], [0, 0, 1, 1], [], []>} : vector<8x32xbf16>, vector<32x8xbf16>, vector<8x8xf32> -> vector<8x8xf32>
    %c0_6 = arith.constant 0 : index
    %c0_7 = arith.constant 0 : index
    %c0_8 = arith.constant 0 : index
    %6 = vector.load %arg5[%c0_6, %c0_7, %c0_8] : memref<4x1x8xf32, #tpu.memory_space<vmem>>, vector<1x1x8xf32>
    %7 = vector.shape_cast %6 : vector<1x1x8xf32> to vector<1x8xf32>
    %8 = vector.broadcast %7 : vector<1x8xf32> to vector<8x8xf32>
    %9 = arith.addf %5, %8 : vector<8x8xf32>
    %10 = arith.truncf %9 : vector<8x8xf32> to vector<8x8xbf16>
    %c0_9 = arith.constant 0 : index
    %c0_10 = arith.constant 0 : index
    %c0_11 = arith.constant 0 : index
    %c0_12 = arith.constant 0 : index
    %11 = vector.load %arg3[%c0_9, %c0_10, %c0_11, %c0_12] : memref<1x8x8x8xbf16, #tpu.memory_space<vmem>>, vector<1x1x8x8xbf16>
    %12 = vector.shape_cast %11 : vector<1x1x8x8xbf16> to vector<8x8xbf16>
    %c0_13 = arith.constant 0 : index
    %c4 = arith.constant 4 : index
    %c0_14 = arith.constant 0 : index
    %c0_15 = arith.constant 0 : index
    %13 = vector.load %arg3[%c0_13, %c4, %c0_14, %c0_15] : memref<1x8x8x8xbf16, #tpu.memory_space<vmem>>, vector<1x1x8x8xbf16>
    %14 = vector.shape_cast %13 : vector<1x1x8x8xbf16> to vector<8x8xbf16>
    "tpu.trace_start"() <{level = 10 : i32, message = "qd,kd->qk"}> : () -> ()
    %cst_16 = arith.constant dense<0.000000e+00> : vector<8x8xf32>
    %15 = tpu.matmul %10, %12, %cst_16 {dimension_numbers = #tpu.dot_dimension_numbers<[1], [1], [0], [0], [0, 0, 1, 0], [], []>} : vector<8x8xbf16>, vector<8x8xbf16>, vector<8x8xf32> -> vector<8x8xf32>
    "tpu.trace_stop"() : () -> ()
    %cst_17 = arith.constant dense<0xFF800000> : vector<8xf32>
    %16 = vector.multi_reduction <maximumf>, %15, %cst_17 [1] : vector<8x8xf32> to vector<8xf32>
    %17 = vector.shape_cast %16 : vector<8xf32> to vector<8x1xf32>
    %18 = vector.broadcast %17 : vector<8x1xf32> to vector<8x8xf32>
    %19 = arith.subf %15, %18 : vector<8x8xf32>
    %20 = math.exp %19 : vector<8x8xf32>
    %cst_18 = arith.constant dense<0.000000e+00> : vector<8xf32>
    %21 = vector.multi_reduction <add>, %20, %cst_18 [1] : vector<8x8xf32> to vector<8xf32>
    %22 = vector.shape_cast %21 : vector<8xf32> to vector<8x1xf32>
    %23 = tpu.reciprocal %22 {approx = true} : vector<8x1xf32> -> vector<8x1xf32>
    %24 = arith.truncf %20 : vector<8x8xf32> to vector<8x8xbf16>
    %cst_19 = arith.constant dense<0.000000e+00> : vector<8x8xf32>
    %25 = tpu.matmul %24, %14, %cst_19 {dimension_numbers = #tpu.dot_dimension_numbers<[1], [0], [0], [1], [0, 0, 1, 1], [], []>} : vector<8x8xbf16>, vector<8x8xbf16>, vector<8x8xf32> -> vector<8x8xf32>
    %26 = vector.broadcast %23 : vector<8x1xf32> to vector<8x8xf32>
    %27 = arith.mulf %25, %26 : vector<8x8xf32>
    %28 = arith.truncf %27 : vector<8x8xf32> to vector<8x8xbf16>
    %c0_20 = arith.constant 0 : index
    %c0_21 = arith.constant 0 : index
    %c0_22 = arith.constant 0 : index
    %29 = vector.load %arg6[%c0_20, %c0_21, %c0_22] : memref<4x8x32xbf16, #tpu.memory_space<vmem>>, vector<1x8x32xbf16>
    %30 = vector.shape_cast %29 : vector<1x8x32xbf16> to vector<8x32xbf16>
    %cst_23 = arith.constant dense<0.000000e+00> : vector<8x32xf32>
    %31 = tpu.matmul %28, %30, %cst_23 {dimension_numbers = #tpu.dot_dimension_numbers<[1], [0], [0], [1], [0, 0, 1, 1], [], []>} : vector<8x8xbf16>, vector<8x32xbf16>, vector<8x32xf32> -> vector<8x32xf32>
    %32 = arith.addf %2, %31 : vector<8x32xf32>
    %c1 = arith.constant 1 : index
    %c0_24 = arith.constant 0 : index
    %c0_25 = arith.constant 0 : index
    %33 = vector.load %arg4[%c1, %c0_24, %c0_25] : memref<4x32x8xbf16, #tpu.memory_space<vmem>>, vector<1x32x8xbf16>
    %34 = vector.shape_cast %33 : vector<1x32x8xbf16> to vector<32x8xbf16>
    %cst_26 = arith.constant dense<0.000000e+00> : vector<8x8xf32>
    %35 = tpu.matmul %1, %34, %cst_26 {dimension_numbers = #tpu.dot_dimension_numbers<[1], [0], [0], [1], [0, 0, 1, 1], [], []>} : vector<8x32xbf16>, vector<32x8xbf16>, vector<8x8xf32> -> vector<8x8xf32>
    %c1_27 = arith.constant 1 : index
    %c0_28 = arith.constant 0 : index
    %c0_29 = arith.constant 0 : index
    %36 = vector.load %arg5[%c1_27, %c0_28, %c0_29] : memref<4x1x8xf32, #tpu.memory_space<vmem>>, vector<1x1x8xf32>
    %37 = vector.shape_cast %36 : vector<1x1x8xf32> to vector<1x8xf32>
    %38 = vector.broadcast %37 : vector<1x8xf32> to vector<8x8xf32>
    %39 = arith.addf %35, %38 : vector<8x8xf32>
    %40 = arith.truncf %39 : vector<8x8xf32> to vector<8x8xbf16>
    %c0_30 = arith.constant 0 : index
    %c1_31 = arith.constant 1 : index
    %c0_32 = arith.constant 0 : index
    %c0_33 = arith.constant 0 : index
    %41 = vector.load %arg3[%c0_30, %c1_31, %c0_32, %c0_33] : memref<1x8x8x8xbf16, #tpu.memory_space<vmem>>, vector<1x1x8x8xbf16>
    %42 = vector.shape_cast %41 : vector<1x1x8x8xbf16> to vector<8x8xbf16>
    %c0_34 = arith.constant 0 : index
    %c5 = arith.constant 5 : index
    %c0_35 = arith.constant 0 : index
    %c0_36 = arith.constant 0 : index
    %43 = vector.load %arg3[%c0_34, %c5, %c0_35, %c0_36] : memref<1x8x8x8xbf16, #tpu.memory_space<vmem>>, vector<1x1x8x8xbf16>
    %44 = vector.shape_cast %43 : vector<1x1x8x8xbf16> to vector<8x8xbf16>
    "tpu.trace_start"() <{level = 10 : i32, message = "qd,kd->qk"}> : () -> ()
    %cst_37 = arith.constant dense<0.000000e+00> : vector<8x8xf32>
    %45 = tpu.matmul %40, %42, %cst_37 {dimension_numbers = #tpu.dot_dimension_numbers<[1], [1], [0], [0], [0, 0, 1, 0], [], []>} : vector<8x8xbf16>, vector<8x8xbf16>, vector<8x8xf32> -> vector<8x8xf32>
    "tpu.trace_stop"() : () -> ()
    %cst_38 = arith.constant dense<0xFF800000> : vector<8xf32>
    %46 = vector.multi_reduction <maximumf>, %45, %cst_38 [1] : vector<8x8xf32> to vector<8xf32>
    %47 = vector.shape_cast %46 : vector<8xf32> to vector<8x1xf32>
    %48 = vector.broadcast %47 : vector<8x1xf32> to vector<8x8xf32>
    %49 = arith.subf %45, %48 : vector<8x8xf32>
    %50 = math.exp %49 : vector<8x8xf32>
    %cst_39 = arith.constant dense<0.000000e+00> : vector<8xf32>
    %51 = vector.multi_reduction <add>, %50, %cst_39 [1] : vector<8x8xf32> to vector<8xf32>
    %52 = vector.shape_cast %51 : vector<8xf32> to vector<8x1xf32>
    %53 = tpu.reciprocal %52 {approx = true} : vector<8x1xf32> -> vector<8x1xf32>
    %54 = arith.truncf %50 : vector<8x8xf32> to vector<8x8xbf16>
    %cst_40 = arith.constant dense<0.000000e+00> : vector<8x8xf32>
    %55 = tpu.matmul %54, %44, %cst_40 {dimension_numbers = #tpu.dot_dimension_numbers<[1], [0], [0], [1], [0, 0, 1, 1], [], []>} : vector<8x8xbf16>, vector<8x8xbf16>, vector<8x8xf32> -> vector<8x8xf32>
    %56 = vector.broadcast %53 : vector<8x1xf32> to vector<8x8xf32>
    %57 = arith.mulf %55, %56 : vector<8x8xf32>
    %58 = arith.truncf %57 : vector<8x8xf32> to vector<8x8xbf16>
    %c1_41 = arith.constant 1 : index
    %c0_42 = arith.constant 0 : index
    %c0_43 = arith.constant 0 : index
    %59 = vector.load %arg6[%c1_41, %c0_42, %c0_43] : memref<4x8x32xbf16, #tpu.memory_space<vmem>>, vector<1x8x32xbf16>
    %60 = vector.shape_cast %59 : vector<1x8x32xbf16> to vector<8x32xbf16>
    %cst_44 = arith.constant dense<0.000000e+00> : vector<8x32xf32>
    %61 = tpu.matmul %58, %60, %cst_44 {dimension_numbers = #tpu.dot_dimension_numbers<[1], [0], [0], [1], [0, 0, 1, 1], [], []>} : vector<8x8xbf16>, vector<8x32xbf16>, vector<8x32xf32> -> vector<8x32xf32>
    %62 = arith.addf %32, %61 : vector<8x32xf32>
    %c2 = arith.constant 2 : index
    %c0_45 = arith.constant 0 : index
    %c0_46 = arith.constant 0 : index
    %63 = vector.load %arg4[%c2, %c0_45, %c0_46] : memref<4x32x8xbf16, #tpu.memory_space<vmem>>, vector<1x32x8xbf16>
    %64 = vector.shape_cast %63 : vector<1x32x8xbf16> to vector<32x8xbf16>
    %cst_47 = arith.constant dense<0.000000e+00> : vector<8x8xf32>
    %65 = tpu.matmul %1, %64, %cst_47 {dimension_numbers = #tpu.dot_dimension_numbers<[1], [0], [0], [1], [0, 0, 1, 1], [], []>} : vector<8x32xbf16>, vector<32x8xbf16>, vector<8x8xf32> -> vector<8x8xf32>
    %c2_48 = arith.constant 2 : index
    %c0_49 = arith.constant 0 : index
    %c0_50 = arith.constant 0 : index
    %66 = vector.load %arg5[%c2_48, %c0_49, %c0_50] : memref<4x1x8xf32, #tpu.memory_space<vmem>>, vector<1x1x8xf32>
    %67 = vector.shape_cast %66 : vector<1x1x8xf32> to vector<1x8xf32>
    %68 = vector.broadcast %67 : vector<1x8xf32> to vector<8x8xf32>
    %69 = arith.addf %65, %68 : vector<8x8xf32>
    %70 = arith.truncf %69 : vector<8x8xf32> to vector<8x8xbf16>
    %c0_51 = arith.constant 0 : index
    %c2_52 = arith.constant 2 : index
    %c0_53 = arith.constant 0 : index
    %c0_54 = arith.constant 0 : index
    %71 = vector.load %arg3[%c0_51, %c2_52, %c0_53, %c0_54] : memref<1x8x8x8xbf16, #tpu.memory_space<vmem>>, vector<1x1x8x8xbf16>
    %72 = vector.shape_cast %71 : vector<1x1x8x8xbf16> to vector<8x8xbf16>
    %c0_55 = arith.constant 0 : index
    %c6 = arith.constant 6 : index
    %c0_56 = arith.constant 0 : index
    %c0_57 = arith.constant 0 : index
    %73 = vector.load %arg3[%c0_55, %c6, %c0_56, %c0_57] : memref<1x8x8x8xbf16, #tpu.memory_space<vmem>>, vector<1x1x8x8xbf16>
    %74 = vector.shape_cast %73 : vector<1x1x8x8xbf16> to vector<8x8xbf16>
    "tpu.trace_start"() <{level = 10 : i32, message = "qd,kd->qk"}> : () -> ()
    %cst_58 = arith.constant dense<0.000000e+00> : vector<8x8xf32>
    %75 = tpu.matmul %70, %72, %cst_58 {dimension_numbers = #tpu.dot_dimension_numbers<[1], [1], [0], [0], [0, 0, 1, 0], [], []>} : vector<8x8xbf16>, vector<8x8xbf16>, vector<8x8xf32> -> vector<8x8xf32>
    "tpu.trace_stop"() : () -> ()
    %cst_59 = arith.constant dense<0xFF800000> : vector<8xf32>
    %76 = vector.multi_reduction <maximumf>, %75, %cst_59 [1] : vector<8x8xf32> to vector<8xf32>
    %77 = vector.shape_cast %76 : vector<8xf32> to vector<8x1xf32>
    %78 = vector.broadcast %77 : vector<8x1xf32> to vector<8x8xf32>
    %79 = arith.subf %75, %78 : vector<8x8xf32>
    %80 = math.exp %79 : vector<8x8xf32>
    %cst_60 = arith.constant dense<0.000000e+00> : vector<8xf32>
    %81 = vector.multi_reduction <add>, %80, %cst_60 [1] : vector<8x8xf32> to vector<8xf32>
    %82 = vector.shape_cast %81 : vector<8xf32> to vector<8x1xf32>
    %83 = tpu.reciprocal %82 {approx = true} : vector<8x1xf32> -> vector<8x1xf32>
    %84 = arith.truncf %80 : vector<8x8xf32> to vector<8x8xbf16>
    %cst_61 = arith.constant dense<0.000000e+00> : vector<8x8xf32>
    %85 = tpu.matmul %84, %74, %cst_61 {dimension_numbers = #tpu.dot_dimension_numbers<[1], [0], [0], [1], [0, 0, 1, 1], [], []>} : vector<8x8xbf16>, vector<8x8xbf16>, vector<8x8xf32> -> vector<8x8xf32>
    %86 = vector.broadcast %83 : vector<8x1xf32> to vector<8x8xf32>
    %87 = arith.mulf %85, %86 : vector<8x8xf32>
    %88 = arith.truncf %87 : vector<8x8xf32> to vector<8x8xbf16>
    %c2_62 = arith.constant 2 : index
    %c0_63 = arith.constant 0 : index
    %c0_64 = arith.constant 0 : index
    %89 = vector.load %arg6[%c2_62, %c0_63, %c0_64] : memref<4x8x32xbf16, #tpu.memory_space<vmem>>, vector<1x8x32xbf16>
    %90 = vector.shape_cast %89 : vector<1x8x32xbf16> to vector<8x32xbf16>
    %cst_65 = arith.constant dense<0.000000e+00> : vector<8x32xf32>
    %91 = tpu.matmul %88, %90, %cst_65 {dimension_numbers = #tpu.dot_dimension_numbers<[1], [0], [0], [1], [0, 0, 1, 1], [], []>} : vector<8x8xbf16>, vector<8x32xbf16>, vector<8x32xf32> -> vector<8x32xf32>
    %92 = arith.addf %62, %91 : vector<8x32xf32>
    %c3 = arith.constant 3 : index
    %c0_66 = arith.constant 0 : index
    %c0_67 = arith.constant 0 : index
    %93 = vector.load %arg4[%c3, %c0_66, %c0_67] : memref<4x32x8xbf16, #tpu.memory_space<vmem>>, vector<1x32x8xbf16>
    %94 = vector.shape_cast %93 : vector<1x32x8xbf16> to vector<32x8xbf16>
    %cst_68 = arith.constant dense<0.000000e+00> : vector<8x8xf32>
    %95 = tpu.matmul %1, %94, %cst_68 {dimension_numbers = #tpu.dot_dimension_numbers<[1], [0], [0], [1], [0, 0, 1, 1], [], []>} : vector<8x32xbf16>, vector<32x8xbf16>, vector<8x8xf32> -> vector<8x8xf32>
    %c3_69 = arith.constant 3 : index
    %c0_70 = arith.constant 0 : index
    %c0_71 = arith.constant 0 : index
    %96 = vector.load %arg5[%c3_69, %c0_70, %c0_71] : memref<4x1x8xf32, #tpu.memory_space<vmem>>, vector<1x1x8xf32>
    %97 = vector.shape_cast %96 : vector<1x1x8xf32> to vector<1x8xf32>
    %98 = vector.broadcast %97 : vector<1x8xf32> to vector<8x8xf32>
    %99 = arith.addf %95, %98 : vector<8x8xf32>
    %100 = arith.truncf %99 : vector<8x8xf32> to vector<8x8xbf16>
    %c0_72 = arith.constant 0 : index
    %c3_73 = arith.constant 3 : index
    %c0_74 = arith.constant 0 : index
    %c0_75 = arith.constant 0 : index
    %101 = vector.load %arg3[%c0_72, %c3_73, %c0_74, %c0_75] : memref<1x8x8x8xbf16, #tpu.memory_space<vmem>>, vector<1x1x8x8xbf16>
    %102 = vector.shape_cast %101 : vector<1x1x8x8xbf16> to vector<8x8xbf16>
    %c0_76 = arith.constant 0 : index
    %c7 = arith.constant 7 : index
    %c0_77 = arith.constant 0 : index
    %c0_78 = arith.constant 0 : index
    %103 = vector.load %arg3[%c0_76, %c7, %c0_77, %c0_78] : memref<1x8x8x8xbf16, #tpu.memory_space<vmem>>, vector<1x1x8x8xbf16>
    %104 = vector.shape_cast %103 : vector<1x1x8x8xbf16> to vector<8x8xbf16>
    "tpu.trace_start"() <{level = 10 : i32, message = "qd,kd->qk"}> : () -> ()
    %cst_79 = arith.constant dense<0.000000e+00> : vector<8x8xf32>
    %105 = tpu.matmul %100, %102, %cst_79 {dimension_numbers = #tpu.dot_dimension_numbers<[1], [1], [0], [0], [0, 0, 1, 0], [], []>} : vector<8x8xbf16>, vector<8x8xbf16>, vector<8x8xf32> -> vector<8x8xf32>
    "tpu.trace_stop"() : () -> ()
    %cst_80 = arith.constant dense<0xFF800000> : vector<8xf32>
    %106 = vector.multi_reduction <maximumf>, %105, %cst_80 [1] : vector<8x8xf32> to vector<8xf32>
    %107 = vector.shape_cast %106 : vector<8xf32> to vector<8x1xf32>
    %108 = vector.broadcast %107 : vector<8x1xf32> to vector<8x8xf32>
    %109 = arith.subf %105, %108 : vector<8x8xf32>
    %110 = math.exp %109 : vector<8x8xf32>
    %cst_81 = arith.constant dense<0.000000e+00> : vector<8xf32>
    %111 = vector.multi_reduction <add>, %110, %cst_81 [1] : vector<8x8xf32> to vector<8xf32>
    %112 = vector.shape_cast %111 : vector<8xf32> to vector<8x1xf32>
    %113 = tpu.reciprocal %112 {approx = true} : vector<8x1xf32> -> vector<8x1xf32>
    %114 = arith.truncf %110 : vector<8x8xf32> to vector<8x8xbf16>
    %cst_82 = arith.constant dense<0.000000e+00> : vector<8x8xf32>
    %115 = tpu.matmul %114, %104, %cst_82 {dimension_numbers = #tpu.dot_dimension_numbers<[1], [0], [0], [1], [0, 0, 1, 1], [], []>} : vector<8x8xbf16>, vector<8x8xbf16>, vector<8x8xf32> -> vector<8x8xf32>
    %116 = vector.broadcast %113 : vector<8x1xf32> to vector<8x8xf32>
    %117 = arith.mulf %115, %116 : vector<8x8xf32>
    %118 = arith.truncf %117 : vector<8x8xf32> to vector<8x8xbf16>
    %c3_83 = arith.constant 3 : index
    %c0_84 = arith.constant 0 : index
    %c0_85 = arith.constant 0 : index
    %119 = vector.load %arg6[%c3_83, %c0_84, %c0_85] : memref<4x8x32xbf16, #tpu.memory_space<vmem>>, vector<1x8x32xbf16>
    %120 = vector.shape_cast %119 : vector<1x8x32xbf16> to vector<8x32xbf16>
    %cst_86 = arith.constant dense<0.000000e+00> : vector<8x32xf32>
    %121 = tpu.matmul %118, %120, %cst_86 {dimension_numbers = #tpu.dot_dimension_numbers<[1], [0], [0], [1], [0, 0, 1, 1], [], []>} : vector<8x8xbf16>, vector<8x32xbf16>, vector<8x32xf32> -> vector<8x32xf32>
    %122 = arith.addf %92, %121 : vector<8x32xf32>
    %c0_87 = arith.constant 0 : index
    %c0_88 = arith.constant 0 : index
    %123 = vector.load %arg7[%c0_87, %c0_88] : memref<1x32xf32, #tpu.memory_space<vmem>>, vector<1x32xf32>
    %124 = vector.broadcast %123 : vector<1x32xf32> to vector<8x32xf32>
    %125 = arith.addf %122, %124 : vector<8x32xf32>
    %126 = arith.extf %1 : vector<8x32xbf16> to vector<8x32xf32>
    %127 = arith.addf %126, %125 : vector<8x32xf32>
    %cst_89 = arith.constant dense<0.000000e+00> : vector<8xf32>
    %128 = vector.multi_reduction <add>, %127, %cst_89 [1] : vector<8x32xf32> to vector<8xf32>
    %129 = vector.shape_cast %128 : vector<8xf32> to vector<8x1xf32>
    %cst_90 = arith.constant 3.200000e+01 : f32
    %130 = vector.broadcast %cst_90 : f32 to vector<8x1xf32>
    %131 = arith.divf %129, %130 : vector<8x1xf32>
    %132 = vector.broadcast %131 : vector<8x1xf32> to vector<8x32xf32>
    %133 = arith.subf %127, %132 : vector<8x32xf32>
    %134 = arith.mulf %133, %133 : vector<8x32xf32>
    %cst_91 = arith.constant dense<0.000000e+00> : vector<8xf32>
    %135 = vector.multi_reduction <add>, %134, %cst_91 [1] : vector<8x32xf32> to vector<8xf32>
    %136 = vector.shape_cast %135 : vector<8xf32> to vector<8x1xf32>
    %cst_92 = arith.constant 3.200000e+01 : f32
    %137 = vector.broadcast %cst_92 : f32 to vector<8x1xf32>
    %138 = arith.divf %136, %137 : vector<8x1xf32>
    %139 = vector.broadcast %131 : vector<8x1xf32> to vector<8x32xf32>
    %140 = arith.subf %127, %139 : vector<8x32xf32>
    %cst_93 = arith.constant 9.99999974E-6 : f32
    %141 = vector.broadcast %cst_93 : f32 to vector<8x1xf32>
    %142 = arith.addf %138, %141 : vector<8x1xf32>
    %143 = math.rsqrt %142 : vector<8x1xf32>
    %144 = vector.broadcast %143 : vector<8x1xf32> to vector<8x32xf32>
    %145 = arith.mulf %140, %144 : vector<8x32xf32>
    %c0_94 = arith.constant 0 : index
    %c0_95 = arith.constant 0 : index
    %146 = vector.load %arg12[%c0_94, %c0_95] : memref<1x32xf32, #tpu.memory_space<vmem>>, vector<1x32xf32>
    %147 = vector.broadcast %146 : vector<1x32xf32> to vector<8x32xf32>
    %148 = arith.mulf %145, %147 : vector<8x32xf32>
    %c0_96 = arith.constant 0 : index
    %c0_97 = arith.constant 0 : index
    %149 = vector.load %arg13[%c0_96, %c0_97] : memref<1x32xf32, #tpu.memory_space<vmem>>, vector<1x32xf32>
    %150 = vector.broadcast %149 : vector<1x32xf32> to vector<8x32xf32>
    %151 = arith.addf %148, %150 : vector<8x32xf32>
    %152 = arith.truncf %151 : vector<8x32xf32> to vector<8x32xbf16>
    %c0_98 = arith.constant 0 : index
    %c0_99 = arith.constant 0 : index
    %153 = vector.load %arg8[%c0_98, %c0_99] : memref<32x64xbf16, #tpu.memory_space<vmem>>, vector<32x64xbf16>
    %cst_100 = arith.constant dense<0.000000e+00> : vector<8x64xf32>
    %154 = tpu.matmul %152, %153, %cst_100 {dimension_numbers = #tpu.dot_dimension_numbers<[1], [0], [0], [1], [0, 0, 1, 1], [], []>} : vector<8x32xbf16>, vector<32x64xbf16>, vector<8x64xf32> -> vector<8x64xf32>
    %c0_101 = arith.constant 0 : index
    %c0_102 = arith.constant 0 : index
    %155 = vector.load %arg9[%c0_101, %c0_102] : memref<1x64xf32, #tpu.memory_space<vmem>>, vector<1x64xf32>
    %156 = vector.broadcast %155 : vector<1x64xf32> to vector<8x64xf32>
    %157 = arith.addf %154, %156 : vector<8x64xf32>
    %cst_103 = arith.constant 0.000000e+00 : f32
    %158 = vector.broadcast %cst_103 : f32 to vector<8x64xf32>
    %159 = arith.maximumf %157, %158 : vector<8x64xf32>
    %160 = arith.truncf %159 : vector<8x64xf32> to vector<8x64xbf16>
    %c0_104 = arith.constant 0 : index
    %c0_105 = arith.constant 0 : index
    %161 = vector.load %arg10[%c0_104, %c0_105] : memref<64x32xbf16, #tpu.memory_space<vmem>>, vector<64x32xbf16>
    %cst_106 = arith.constant dense<0.000000e+00> : vector<8x32xf32>
    %162 = tpu.matmul %160, %161, %cst_106 {dimension_numbers = #tpu.dot_dimension_numbers<[1], [0], [0], [1], [0, 0, 1, 1], [], []>} : vector<8x64xbf16>, vector<64x32xbf16>, vector<8x32xf32> -> vector<8x32xf32>
    %c0_107 = arith.constant 0 : index
    %c0_108 = arith.constant 0 : index
    %163 = vector.load %arg11[%c0_107, %c0_108] : memref<1x32xf32, #tpu.memory_space<vmem>>, vector<1x32xf32>
    %164 = vector.broadcast %163 : vector<1x32xf32> to vector<8x32xf32>
    %165 = arith.addf %162, %164 : vector<8x32xf32>
    %166 = arith.addf %151, %165 : vector<8x32xf32>
    %cst_109 = arith.constant dense<0.000000e+00> : vector<8xf32>
    %167 = vector.multi_reduction <add>, %166, %cst_109 [1] : vector<8x32xf32> to vector<8xf32>
    %168 = vector.shape_cast %167 : vector<8xf32> to vector<8x1xf32>
    %cst_110 = arith.constant 3.200000e+01 : f32
    %169 = vector.broadcast %cst_110 : f32 to vector<8x1xf32>
    %170 = arith.divf %168, %169 : vector<8x1xf32>
    %171 = vector.broadcast %170 : vector<8x1xf32> to vector<8x32xf32>
    %172 = arith.subf %166, %171 : vector<8x32xf32>
    %173 = arith.mulf %172, %172 : vector<8x32xf32>
    %cst_111 = arith.constant dense<0.000000e+00> : vector<8xf32>
    %174 = vector.multi_reduction <add>, %173, %cst_111 [1] : vector<8x32xf32> to vector<8xf32>
    %175 = vector.shape_cast %174 : vector<8xf32> to vector<8x1xf32>
    %cst_112 = arith.constant 3.200000e+01 : f32
    %176 = vector.broadcast %cst_112 : f32 to vector<8x1xf32>
    %177 = arith.divf %175, %176 : vector<8x1xf32>
    %178 = vector.broadcast %170 : vector<8x1xf32> to vector<8x32xf32>
    %179 = arith.subf %166, %178 : vector<8x32xf32>
    %cst_113 = arith.constant 9.99999974E-6 : f32
    %180 = vector.broadcast %cst_113 : f32 to vector<8x1xf32>
    %181 = arith.addf %177, %180 : vector<8x1xf32>
    %182 = math.rsqrt %181 : vector<8x1xf32>
    %183 = vector.broadcast %182 : vector<8x1xf32> to vector<8x32xf32>
    %184 = arith.mulf %179, %183 : vector<8x32xf32>
    %c0_114 = arith.constant 0 : index
    %c0_115 = arith.constant 0 : index
    %185 = vector.load %arg14[%c0_114, %c0_115] : memref<1x32xf32, #tpu.memory_space<vmem>>, vector<1x32xf32>
    %186 = vector.broadcast %185 : vector<1x32xf32> to vector<8x32xf32>
    %187 = arith.mulf %184, %186 : vector<8x32xf32>
    %c0_116 = arith.constant 0 : index
    %c0_117 = arith.constant 0 : index
    %188 = vector.load %arg15[%c0_116, %c0_117] : memref<1x32xf32, #tpu.memory_space<vmem>>, vector<1x32xf32>
    %189 = vector.broadcast %188 : vector<1x32xf32> to vector<8x32xf32>
    %190 = arith.addf %187, %189 : vector<8x32xf32>
    %191 = arith.truncf %190 : vector<8x32xf32> to vector<8x32xbf16>
    %c0_118 = arith.constant 0 : index
    %c0_119 = arith.constant 0 : index
    %c0_120 = arith.constant 0 : index
    %192 = vector.load %arg16[%c0_118, %c0_119, %c0_120] : memref<1x8x32xbf16, #tpu.memory_space<vmem>>, vector<1x8x32xbf16>
    %193 = vector.shape_cast %192 : vector<1x8x32xbf16> to vector<8x32xbf16>
    %194 = vector.shape_cast %191 : vector<8x32xbf16> to vector<1x8x32xbf16>
    tpu.vector_store %arg16[%c0_118, %c0_119, %c0_120], %194 {strides = array<i32>} : memref<1x8x32xbf16, #tpu.memory_space<vmem>>, vector<1x8x32xbf16>,
    return
  }
  func.func @transform_0(%arg0: i32, %arg1: i32) -> (i32, i32, i32) {
    %c0_i32 = arith.constant 0 : i32
    %c0_i32_0 = arith.constant 0 : i32
    return %arg0, %arg1, %c0_i32 : i32, i32, i32
  }
  func.func @transform_1(%arg0: i32, %arg1: i32) -> (i32, i32, i32, i32) {
    %c0_i32 = arith.constant 0 : i32
    %c0_i32_0 = arith.constant 0 : i32
    %c0_i32_1 = arith.constant 0 : i32
    %c0_i32_2 = arith.constant 0 : i32
    return %arg0, %c0_i32, %c0_i32_0, %c0_i32_1 : i32, i32, i32, i32
  }
  func.func @transform_2(%arg0: i32, %arg1: i32) -> (i32, i32, i32) {
    %c0_i32 = arith.constant 0 : i32
    %c0_i32_0 = arith.constant 0 : i32
    %c0_i32_1 = arith.constant 0 : i32
    %c0_i32_2 = arith.constant 0 : i32
    return %c0_i32, %c0_i32_0, %c0_i32_1 : i32, i32, i32
  }
  func.func @transform_3(%arg0: i32, %arg1: i32) -> (i32, i32, i32) {
    %c0_i32 = arith.constant 0 : i32
    %c0_i32_0 = arith.constant 0 : i32
    %c0_i32_1 = arith.constant 0 : i32
    %c0_i32_2 = arith.constant 0 : i32
    return %c0_i32, %c0_i32_0, %c0_i32_1 : i32, i32, i32
  }
  func.func @transform_4(%arg0: i32, %arg1: i32) -> (i32, i32, i32) {
    %c0_i32 = arith.constant 0 : i32
    %c0_i32_0 = arith.constant 0 : i32
    %c0_i32_1 = arith.constant 0 : i32
    %c0_i32_2 = arith.constant 0 : i32
    return %c0_i32, %c0_i32_0, %c0_i32_1 : i32, i32, i32
  }
  func.func @transform_5(%arg0: i32, %arg1: i32) -> (i32, i32) {
    %c0_i32 = arith.constant 0 : i32
    %c0_i32_0 = arith.constant 0 : i32
    %c0_i32_1 = arith.constant 0 : i32
    return %c0_i32, %c0_i32_0 : i32, i32
  }
  func.func @transform_6(%arg0: i32, %arg1: i32) -> (i32, i32) {
    %c0_i32 = arith.constant 0 : i32
    %c0_i32_0 = arith.constant 0 : i32
    %c0_i32_1 = arith.constant 0 : i32
    return %c0_i32, %c0_i32_0 : i32, i32
  }
  func.func @transform_7(%arg0: i32, %arg1: i32) -> (i32, i32) {
    %c0_i32 = arith.constant 0 : i32
    %c0_i32_0 = arith.constant 0 : i32
    %c0_i32_1 = arith.constant 0 : i32
    return %c0_i32, %c0_i32_0 : i32, i32
  }
  func.func @transform_8(%arg0: i32, %arg1: i32) -> (i32, i32) {
    %c0_i32 = arith.constant 0 : i32
    %c0_i32_0 = arith.constant 0 : i32
    %c0_i32_1 = arith.constant 0 : i32
    return %c0_i32, %c0_i32_0 : i32, i32
  }
  func.func @transform_9(%arg0: i32, %arg1: i32) -> (i32, i32) {
    %c0_i32 = arith.constant 0 : i32
    %c0_i32_0 = arith.constant 0 : i32
    %c0_i32_1 = arith.constant 0 : i32
    return %c0_i32, %c0_i32_0 : i32, i32
  }
  func.func @transform_10(%arg0: i32, %arg1: i32) -> (i32, i32) {
    %c0_i32 = arith.constant 0 : i32
    %c0_i32_0 = arith.constant 0 : i32
    %c0_i32_1 = arith.constant 0 : i32
    return %c0_i32, %c0_i32_0 : i32, i32
  }
  func.func @transform_11(%arg0: i32, %arg1: i32) -> (i32, i32) {
    %c0_i32 = arith.constant 0 : i32
    %c0_i32_0 = arith.constant 0 : i32
    %c0_i32_1 = arith.constant 0 : i32
    return %c0_i32, %c0_i32_0 : i32, i32
  }
  func.func @transform_12(%arg0: i32, %arg1: i32) -> (i32, i32) {
    %c0_i32 = arith.constant 0 : i32
    %c0_i32_0 = arith.constant 0 : i32
    %c0_i32_1 = arith.constant 0 : i32
    return %c0_i32, %c0_i32_0 : i32, i32
  }
  func.func @transform_13(%arg0: i32, %arg1: i32) -> (i32, i32) {
    %c0_i32 = arith.constant 0 : i32
    %c0_i32_0 = arith.constant 0 : i32
    %c0_i32_1 = arith.constant 0 : i32
    return %c0_i32, %c0_i32_0 : i32, i32
  }
  func.func @transform_14(%arg0: i32, %arg1: i32) -> (i32, i32, i32) {
    %c0_i32 = arith.constant 0 : i32
    %c0_i32_0 = arith.constant 0 : i32
    return %arg0, %arg1, %c0_i32 : i32, i32, i32
  }
}

</mosaic_0001>

<llo_original>
// kernel: transformer_forward.4
$region0: #{transformer_forward.4}
  #allocation0 [shape = 'u32[]', space=smem, size = 0x4, offset = 0x4, fixed_abs, tag = 'smem constant byte address 0x4 - core index']
  #allocation1 [shape = 'u32[144,128]{1,0:T(1,128)}', space=vmem, size = 0x12000, scoped, tag = 'internal scratch']
  %s0 = inlined_call_operand.vmem [shape: bf16[2,8,32], index: 0, kind: input, shape index: {}]
  %s1 = inlined_call_operand.vmem [shape: bf16[8,32,8], index: 1, kind: input, shape index: {}]
  %s2 = inlined_call_operand.vmem [shape: f32[8,1,8], index: 2, kind: input, shape index: {}]
  %s3 = inlined_call_operand.vmem [shape: bf16[2,8,8,8], index: 3, kind: output, shape index: {}]
  %s4 = sld [smem:[#allocation0]]
  $region45: #{transformer_forward.4} parent=0
    _
  %s6 = ssub.s32 1, %s4
  %s7 = scalar_select 0, %s6, %s4
  loop: start=0, step=1, limit=4
  $region2: #{transformer_forward.4} parent=0 // loop_pre_header
    _
  $region3: #{transformer_forward.4} parent=0 // loop_header
    %s9 = sphi 0, %s13
    %p10 = scmp.ge.s32.totalorder %s9, 4
    %s16 = sphi 0, %s28
    %s17 = sphi 0, %s24
    %s18 = sphi 0, %s16
    %s19 = sphi 0, %s17
    %s20 = sphi 0, %s18
    %s21 = sphi 0, %s19
    %s33 = sphi 0, %s35
    %s36 = sphi 0, %s33
    %s37 = sphi 0, %s36
    %s53 = sphi 0, %s37
    %s57 = sphi 0, %s57
    %s59 = sphi 0, %s57
    %s60 = sphi 0, %s59
    %s74 = sphi 0, %s60
    %s78 = sphi 0, %s78
    %s80 = sphi 0, %s78
    %s81 = sphi 0, %s80
    %s95 = sphi 0, %s81
    %s103 = sphi 0, %s105
    %s106 = sphi 0, %s103
    %s107 = sphi 0, %s106
    %s123 = sphi 0, %s107
  $region4: #{transformer_forward.4} parent=0 // loop_header_branch
    %12 = sbr.rel (%p10) target = $region8
  $region5: #{transformer_forward.4} parent=0 // loop_body
    %s14 = ssub.s32 %s9, 1
    %s15 = ssub.s32 %s9, 2
    %s22 = sadd.s32 1, %s17
    %p23 = scmp.ge.s32.totalorder %s22, 1
    %s24 = scalar_select %p23, 0, %s22
    %s25 = sadd.s32 1, %s16
    %s26 = scalar_select %p23, %s25, %s16
    %p27 = scmp.ge.s32.totalorder %s26, 2
    %s28 = scalar_select %p27, 0, %s26
    %s29 = ssub.s32 %s16, %s28
    %s30 = ssub.s32 %s17, %s24
    %s31 = sor.u32 %s29, %s30
    %p32 = scmp.eq.s32.totalorder %s31, 0
    %s34 = sadd.s32 %s33, 1
    %s35 = scalar_select %p32, %s33, %s34
    %p38 = pneg %p32
    %p39 = scmp.eq.s32.totalorder %s9, 1
    %p40 = por %p38, %p39
    %p41 = scmp.ne.s32.totalorder %s33, %s36
    %p42 = scmp.eq.s32.totalorder %s9, 0
    %p43 = por %p41, %p42
    %p44 = scmp.ne.s32.totalorder %s33, %s36
    %p45 = scmp.eq.s32.totalorder %s14, 1
    %p46 = por %p44, %p45
    %p47 = scmp.ne.s32.totalorder %s36, %s37
    %p48 = scmp.eq.s32.totalorder %s14, 0
    %p49 = por %p47, %p48
    %p50 = scmp.ne.s32.totalorder %s36, %s37
    %p51 = scmp.eq.s32.totalorder %s15, 1
    %p52 = por %p50, %p51
    %p54 = scmp.ne.s32.totalorder %s37, %s53
    %p55 = scmp.eq.s32.totalorder %s15, 0
    %p56 = por %p54, %p55
    %s58 = sadd.s32 %s57, 1
    %p61 = scmp.eq.s32.totalorder %s9, 1
    %p62 = scmp.ne.s32.totalorder %s57, %s59
    %p63 = scmp.eq.s32.totalorder %s9, 0
    %p64 = por %p62, %p63
    %p65 = scmp.ne.s32.totalorder %s57, %s59
    %p66 = scmp.eq.s32.totalorder %s14, 1
    %p67 = por %p65, %p66
    %p68 = scmp.ne.s32.totalorder %s59, %s60
    %p69 = scmp.eq.s32.totalorder %s14, 0
    %p70 = por %p68, %p69
    %p71 = scmp.ne.s32.totalorder %s59, %s60
    %p72 = scmp.eq.s32.totalorder %s15, 1
    %p73 = por %p71, %p72
    %p75 = scmp.ne.s32.totalorder %s60, %s74
    %p76 = scmp.eq.s32.totalorder %s15, 0
    %p77 = por %p75, %p76
    %s79 = sadd.s32 %s78, 1
    %p82 = scmp.eq.s32.totalorder %s9, 1
    %p83 = scmp.ne.s32.totalorder %s78, %s80
    %p84 = scmp.eq.s32.totalorder %s9, 0
    %p85 = por %p83, %p84
    %p86 = scmp.ne.s32.totalorder %s78, %s80
    %p87 = scmp.eq.s32.totalorder %s14, 1
    %p88 = por %p86, %p87
    %p89 = scmp.ne.s32.totalorder %s80, %s81
    %p90 = scmp.eq.s32.totalorder %s14, 0
    %p91 = por %p89, %p90
    %p92 = scmp.ne.s32.totalorder %s80, %s81
    %p93 = scmp.eq.s32.totalorder %s15, 1
    %p94 = por %p92, %p93
    %p96 = scmp.ne.s32.totalorder %s81, %s95
    %p97 = scmp.eq.s32.totalorder %s15, 0
    %p98 = por %p96, %p97
    %s99 = ssub.s32 %s16, %s28
    %s100 = ssub.s32 %s17, %s24
    %s101 = sor.u32 %s99, %s100
    %p102 = scmp.eq.s32.totalorder %s101, 0
    %s104 = sadd.s32 %s103, 1
    %s105 = scalar_select %p102, %s103, %s104
    %p108 = pneg %p102
    %p109 = scmp.eq.s32.totalorder %s9, 1
    %p110 = por %p108, %p109
    %p111 = scmp.ne.s32.totalorder %s103, %s106
    %p112 = scmp.eq.s32.totalorder %s9, 0
    %p113 = por %p111, %p112
    %p114 = scmp.ne.s32.totalorder %s103, %s106
    %p115 = scmp.eq.s32.totalorder %s14, 1
    %p116 = por %p114, %p115
    %p117 = scmp.ne.s32.totalorder %s106, %s107
    %p118 = scmp.eq.s32.totalorder %s14, 0
    %p119 = por %p117, %p118
    %p120 = scmp.ne.s32.totalorder %s106, %s107
    %p121 = scmp.eq.s32.totalorder %s15, 1
    %p122 = por %p120, %p121
    %p124 = scmp.ne.s32.totalorder %s107, %s123
    %p125 = scmp.eq.s32.totalorder %s15, 0
    %p126 = por %p124, %p125
    %p127 = scmp.le.s32.totalorder 1, %s9
    %p128 = scmp.lt.s32.totalorder %s9, 3
    %p129 = pnand %p127, %p128
    %p130 = pneg %p129
    // Predicated region
    $region9: #{transformer_forward.4} parent=5 // pred_check
      _
    $region10: #{transformer_forward.4} parent=5 // pred_check_branch
      %132 = sbr.rel (%p129) target = $region12
    $region11: #{transformer_forward.4} parent=5 // pred_region
      %s133 = ssub.s32 %s9, 1
      // Predicated region
      $region13: #{transformer_forward.4} parent=11 // pred_check
        %p134 = pneg %p70
      $region14: #{transformer_forward.4} parent=11 // pred_check_branch
        %136 = sbr.rel (%p134) target = $region16
      $region15: #{transformer_forward.4} parent=11 // pred_region
        _
      $region16: #{transformer_forward.4} parent=11 // pred_fallthru
        _
      // Predicated region
      $region17: #{transformer_forward.4} parent=11 // pred_check
        %p137 = pneg %p91
      $region18: #{transformer_forward.4} parent=11 // pred_check_branch
        %139 = sbr.rel (%p137) target = $region20
      $region19: #{transformer_forward.4} parent=11 // pred_region
        _
      $region20: #{transformer_forward.4} parent=11 // pred_fallthru
        _
    $region12: #{transformer_forward.4} parent=5 // pred_fallthru
      _
    %p140 = scmp.lt.s32.totalorder %s9, 2
    // Predicated region
    $region21: #{transformer_forward.4} parent=5 // pred_check
      %p141 = pneg %p140
    $region22: #{transformer_forward.4} parent=5 // pred_check_branch
      %143 = sbr.rel (%p141) target = $region24
    $region23: #{transformer_forward.4} parent=5 // pred_region
      // Predicated region
      $region25: #{transformer_forward.4} parent=23 // pred_check
        %p144 = pneg %p43
      $region26: #{transformer_forward.4} parent=23 // pred_check_branch
        %146 = sbr.rel (%p144) target = $region28
      $region27: #{transformer_forward.4} parent=23 // pred_region
        %p147 = scmp.lt.s32.totalorder %s16, 1
        %s148 = scalar_select %p147, %s16, 1
        %p149 = scmp.lt.s32.totalorder %s17, 0
        %s150 = scalar_select %p149, %s17, 0
        %s151 = sadd.s32 %s150, %s148
        %s152 = smul.addr %s151, 4
        %s153 = scalar_lea.vmem %s0, %s152
      $region28: #{transformer_forward.4} parent=23 // pred_fallthru
        _
    $region24: #{transformer_forward.4} parent=5 // pred_fallthru
      _
    %p154 = scmp.le.s32.totalorder 1, %s9
    %p155 = scmp.lt.s32.totalorder %s9, 3
    %p156 = pnand %p154, %p155
    %p157 = pneg %p156
    // Predicated region
    $region29: #{transformer_forward.4} parent=5 // pred_check
      _
    $region30: #{transformer_forward.4} parent=5 // pred_check_branch
      %159 = sbr.rel (%p156) target = $region32
    $region31: #{transformer_forward.4} parent=5 // pred_region
      %s160 = ssub.s32 %s9, 1
      %p161 = scmp.lt.s32.totalorder %s18, 1
      %s162 = scalar_select %p161, %s18, 1
      %p163 = scmp.lt.s32.totalorder %s19, 0
      %s164 = scalar_select %p163, %s19, 0
      %s165 = sadd.s32 %s164, %s162
      %s166 = smul.addr %s165, 4
      %s167 = scalar_lea.vmem %s0, %s166
      %p168 = pneg %p49
      %p169 = pneg %p46
      %p170 = pneg %p70
      %p171 = pneg %p67
      %p172 = pneg %p91
      %p173 = pneg %p88
      %p174 = pneg %p119
      %p175 = pneg %p116
      %p176 = scmp.lt.s32.totalorder %s18, 1
      %s177 = scalar_select %p176, %s18, 1
      %p178 = scmp.lt.s32.totalorder %s19, 0
      %s179 = scalar_select %p178, %s19, 0
      %s180 = smul.addr %s177, 8
      %s181 = sadd.s32 %s179, %s180
      %s182 = smul.addr %s181, 4
      %s183 = scalar_lea.vmem %s3, %s182
      %p184 = scmp.lt.s32.totalorder %s18, 1
      %s185 = scalar_select %p184, %s18, 1
      %p186 = scmp.lt.s32.totalorder %s19, 0
      %s187 = scalar_select %p186, %s19, 0
      %s188 = sadd.s32 %s187, %s185
      %s189 = smul.addr %s188, 4
      %s190 = scalar_lea.vmem %s0, %s189
      %p191 = scmp.lt.s32.totalorder %s18, 1
      %s192 = scalar_select %p191, %s18, 1
      %p193 = scmp.lt.s32.totalorder %s19, 0
      %s194 = scalar_select %p193, %s19, 0
      %s195 = smul.addr %s192, 8
      %s196 = sadd.s32 %s194, %s195
      %s197 = smul.addr %s196, 4
      %s198 = scalar_lea.vmem %s3, %s197
      %v200 = vld [vmem:[%s190] sm:$0xf]
      %v201 = vld [vmem:[%s1] sm:$0xf]
      %v202 = vld [vmem:[%s1 + $0x4] sm:$0xf]
      %v203 = vld [vmem:[%s1 + $0x8] sm:$0xf]
      %v204 = vld [vmem:[%s1 + $0xc] sm:$0xf]
      %v205 = vld [vmem:[%s2] sm:$0x1]
      %v207 = vlaneseq
      %v208 = vshrl.u32 %v207, 7
      %v209 = vsub.s32 0, %v208
      %v210 = vrot.slane %v205, %v209
      %v216 = vunpack.c.l.b16 %v201
      %v217 = vunpack.c.l.b16 %v202
      %v218 = vunpack.c.l.b16 %v203
      %v219 = vunpack.c.l.b16 %v204
      %v220 = vpack.c.b16 %v217, %v216
      %v221 = vpack.c.b16 %v219, %v218
      %vm224 = vcmask 261120
      %v226 = vsel %vm224, %v200, 0
      %228 = vmatprep.subr.bf16.mxu0 0
      %229 = vmatpush1.bf16.msra.mxu0 %v220
      %230 = vmatprep.subr.bf16.mxu0 0
      %231 = vmatpush1.bf16.msra.mxu0 %v221
      %232 = vmatprep.subr.bf16.mxu0 0
      %233 = vmatpush1.bf16.msra.mxu0 0
      %234 = vmatprep.subr.bf16.mxu0 0
      %235 = vmatpush1.bf16.msra.mxu0 0
      %236 = vmatprep.subr.bf16.mxu0 0
      %237 = vmatpush1.bf16.msra.mxu0 0
      %238 = vmatprep.subr.bf16.mxu0 0
      %239 = vmatpush1.bf16.msra.mxu0 0
      %240 = vmatprep.subr.bf16.mxu0 0
      %241 = vmatpush1.bf16.msra.mxu0 0
      %242 = vmatprep.subr.bf16.mxu0 0
      %243 = vmatpush1.bf16.msra.mxu0 0
      %244 = vmatprep.subr.bf16.mxu0 0
      %245 = vmatpush1.bf16.msra.mxu0 0
      %246 = vmatprep.subr.bf16.mxu0 0
      %247 = vmatpush1.bf16.msra.mxu0 0
      %248 = vmatprep.subr.bf16.mxu0 0
      %249 = vmatpush1.bf16.msra.mxu0 0
      %250 = vmatprep.subr.bf16.mxu0 0
      %251 = vmatpush1.bf16.msra.mxu0 0
      %252 = vmatprep.subr.bf16.mxu0 0
      %253 = vmatpush1.bf16.msra.mxu0 0
      %254 = vmatprep.subr.bf16.mxu0 0
      %255 = vmatpush1.bf16.msra.mxu0 0
      %256 = vmatprep.subr.bf16.mxu0 0
      %257 = vmatpush1.bf16.msra.mxu0 0
      %258 = vmatprep.subr.bf16.mxu0 0
      %259 = vmatpush1.bf16.msra.mxu0 0
      %260 = vmatprep.mubr.bf16.mxu0 0
      %261 = vmatmul.mubr.bf16.gmra.mrb[0].mxu0 %v226
      %v262 = vpop.f32.mrb[0].mxu0
      %v263 = vadd.f32 %v210, %v262
      %v264 = vpop.f32.mrb[0].mxu0
      %v265 = vpop.f32.mrb[0].mxu0
      %v266 = vpop.f32.mrb[0].mxu0
      %267 = vdwg.mxu0
      %v268 = vpack.c.bf16 %v263, %v263
      %vm269 = vcmask 60416
      %270 = vst.msk [vmem:[%s198] sm:$0xf] %vm269, %v268
      %s271 = scalar_lea.vmem %s1, 16
      %v272 = vld [vmem:[%s271] sm:$0xf]
      %v273 = vld [vmem:[%s271 + $0x4] sm:$0xf]
      %v274 = vld [vmem:[%s271 + $0x8] sm:$0xf]
      %v275 = vld [vmem:[%s271 + $0xc] sm:$0xf]
      %s276 = scalar_lea.vmem %s2, 1
      %v277 = vld [vmem:[%s276] sm:$0x1]
      %v279 = vlaneseq
      %v280 = vshrl.u32 %v279, 7
      %v281 = vsub.s32 0, %v280
      %v282 = vrot.slane %v277, %v281
      %v288 = vunpack.c.l.b16 %v272
      %v289 = vunpack.c.l.b16 %v273
      %v290 = vunpack.c.l.b16 %v274
      %v291 = vunpack.c.l.b16 %v275
      %v292 = vpack.c.b16 %v289, %v288
      %v293 = vpack.c.b16 %v291, %v290
      %296 = vmatprep.subr.bf16.mxu0 0
      %297 = vmatpush1.bf16.msra.mxu0 %v292
      %298 = vmatprep.subr.bf16.mxu0 0
      %299 = vmatpush1.bf16.msra.mxu0 %v293
      %300 = vmatprep.subr.bf16.mxu0 0
      %301 = vmatpush1.bf16.msra.mxu0 0
      %302 = vmatprep.subr.bf16.mxu0 0
      %303 = vmatpush1.bf16.msra.mxu0 0
      %304 = vmatprep.subr.bf16.mxu0 0
      %305 = vmatpush1.bf16.msra.mxu0 0
      %306 = vmatprep.subr.bf16.mxu0 0
      %307 = vmatpush1.bf16.msra.mxu0 0
      %308 = vmatprep.subr.bf16.mxu0 0
      %309 = vmatpush1.bf16.msra.mxu0 0
      %310 = vmatprep.subr.bf16.mxu0 0
      %311 = vmatpush1.bf16.msra.mxu0 0
      %312 = vmatprep.subr.bf16.mxu0 0
      %313 = vmatpush1.bf16.msra.mxu0 0
      %314 = vmatprep.subr.bf16.mxu0 0
      %315 = vmatpush1.bf16.msra.mxu0 0
      %316 = vmatprep.subr.bf16.mxu0 0
      %317 = vmatpush1.bf16.msra.mxu0 0
      %318 = vmatprep.subr.bf16.mxu0 0
      %319 = vmatpush1.bf16.msra.mxu0 0
      %320 = vmatprep.subr.bf16.mxu0 0
      %321 = vmatpush1.bf16.msra.mxu0 0
      %322 = vmatprep.subr.bf16.mxu0 0
      %323 = vmatpush1.bf16.msra.mxu0 0
      %324 = vmatprep.subr.bf16.mxu0 0
      %325 = vmatpush1.bf16.msra.mxu0 0
      %326 = vmatprep.subr.bf16.mxu0 0
      %327 = vmatpush1.bf16.msra.mxu0 0
      %328 = vmatprep.mubr.bf16.mxu0 0
      %329 = vmatmul.mubr.bf16.gmra.mrb[0].mxu0 %v226
      %v330 = vpop.f32.mrb[0].mxu0
      %v331 = vadd.f32 %v282, %v330
      %v332 = vpop.f32.mrb[0].mxu0
      %v333 = vpop.f32.mrb[0].mxu0
      %v334 = vpop.f32.mrb[0].mxu0
      %335 = vdwg.mxu0
      %v336 = vpack.c.bf16 %v331, %v331
      %s337 = scalar_lea.vmem %s198, 4
      %338 = vst.msk [vmem:[%s337] sm:$0xf] %vm269, %v336
      %s339 = scalar_lea.vmem %s1, 32
      %v340 = vld [vmem:[%s339] sm:$0xf]
      %v341 = vld [vmem:[%s339 + $0x4] sm:$0xf]
      %v342 = vld [vmem:[%s339 + $0x8] sm:$0xf]
      %v343 = vld [vmem:[%s339 + $0xc] sm:$0xf]
      %s344 = scalar_lea.vmem %s2, 2
      %v345 = vld [vmem:[%s344] sm:$0x1]
      %v347 = vlaneseq
      %v348 = vshrl.u32 %v347, 7
      %v349 = vsub.s32 0, %v348
      %v350 = vrot.slane %v345, %v349
      %v356 = vunpack.c.l.b16 %v340
      %v357 = vunpack.c.l.b16 %v341
      %v358 = vunpack.c.l.b16 %v342
      %v359 = vunpack.c.l.b16 %v343
      %v360 = vpack.c.b16 %v357, %v356
      %v361 = vpack.c.b16 %v359, %v358
      %364 = vmatprep.subr.bf16.mxu0 0
      %365 = vmatpush1.bf16.msra.mxu0 %v360
      %366 = vmatprep.subr.bf16.mxu0 0
      %367 = vmatpush1.bf16.msra.mxu0 %v361
      %368 = vmatprep.subr.bf16.mxu0 0
      %369 = vmatpush1.bf16.msra.mxu0 0
      %370 = vmatprep.subr.bf16.mxu0 0
      %371 = vmatpush1.bf16.msra.mxu0 0
      %372 = vmatprep.subr.bf16.mxu0 0
      %373 = vmatpush1.bf16.msra.mxu0 0
      %374 = vmatprep.subr.bf16.mxu0 0
      %375 = vmatpush1.bf16.msra.mxu0 0
      %376 = vmatprep.subr.bf16.mxu0 0
      %377 = vmatpush1.bf16.msra.mxu0 0
      %378 = vmatprep.subr.bf16.mxu0 0
      %379 = vmatpush1.bf16.msra.mxu0 0
      %380 = vmatprep.subr.bf16.mxu0 0
      %381 = vmatpush1.bf16.msra.mxu0 0
      %382 = vmatprep.subr.bf16.mxu0 0
      %383 = vmatpush1.bf16.msra.mxu0 0
      %384 = vmatprep.subr.bf16.mxu0 0
      %385 = vmatpush1.bf16.msra.mxu0 0
      %386 = vmatprep.subr.bf16.mxu0 0
      %387 = vmatpush1.bf16.msra.mxu0 0
      %388 = vmatprep.subr.bf16.mxu0 0
      %389 = vmatpush1.bf16.msra.mxu0 0
      %390 = vmatprep.subr.bf16.mxu0 0
      %391 = vmatpush1.bf16.msra.mxu0 0
      %392 = vmatprep.subr.bf16.mxu0 0
      %393 = vmatpush1.bf16.msra.mxu0 0
      %394 = vmatprep.subr.bf16.mxu0 0
      %395 = vmatpush1.bf16.msra.mxu0 0
      %396 = vmatprep.mubr.bf16.mxu0 0
      %397 = vmatmul.mubr.bf16.gmra.mrb[0].mxu0 %v226
      %v398 = vpop.f32.mrb[0].mxu0
      %v399 = vadd.f32 %v350, %v398
      %v400 = vpop.f32.mrb[0].mxu0
      %v401 = vpop.f32.mrb[0].mxu0
      %v402 = vpop.f32.mrb[0].mxu0
      %403 = vdwg.mxu0
      %v404 = vpack.c.bf16 %v399, %v399
      %s405 = scalar_lea.vmem %s198, 8
      %406 = vst.msk [vmem:[%s405] sm:$0xf] %vm269, %v404
      %s407 = scalar_lea.vmem %s1, 48
      %v408 = vld [vmem:[%s407] sm:$0xf]
      %v409 = vld [vmem:[%s407 + $0x4] sm:$0xf]
      %v410 = vld [vmem:[%s407 + $0x8] sm:$0xf]
      %v411 = vld [vmem:[%s407 + $0xc] sm:$0xf]
      %s412 = scalar_lea.vmem %s2, 3
      %v413 = vld [vmem:[%s412] sm:$0x1]
      %v415 = vlaneseq
      %v416 = vshrl.u32 %v415, 7
      %v417 = vsub.s32 0, %v416
      %v418 = vrot.slane %v413, %v417
      %v424 = vunpack.c.l.b16 %v408
      %v425 = vunpack.c.l.b16 %v409
      %v426 = vunpack.c.l.b16 %v410
      %v427 = vunpack.c.l.b16 %v411
      %v428 = vpack.c.b16 %v425, %v424
      %v429 = vpack.c.b16 %v427, %v426
      %432 = vmatprep.subr.bf16.mxu0 0
      %433 = vmatpush1.bf16.msra.mxu0 %v428
      %434 = vmatprep.subr.bf16.mxu0 0
      %435 = vmatpush1.bf16.msra.mxu0 %v429
      %436 = vmatprep.subr.bf16.mxu0 0
      %437 = vmatpush1.bf16.msra.mxu0 0
      %438 = vmatprep.subr.bf16.mxu0 0
      %439 = vmatpush1.bf16.msra.mxu0 0
      %440 = vmatprep.subr.bf16.mxu0 0
      %441 = vmatpush1.bf16.msra.mxu0 0
      %442 = vmatprep.subr.bf16.mxu0 0
      %443 = vmatpush1.bf16.msra.mxu0 0
      %444 = vmatprep.subr.bf16.mxu0 0
      %445 = vmatpush1.bf16.msra.mxu0 0
      %446 = vmatprep.subr.bf16.mxu0 0
      %447 = vmatpush1.bf16.msra.mxu0 0
      %448 = vmatprep.subr.bf16.mxu0 0
      %449 = vmatpush1.bf16.msra.mxu0 0
      %450 = vmatprep.subr.bf16.mxu0 0
      %451 = vmatpush1.bf16.msra.mxu0 0
      %452 = vmatprep.subr.bf16.mxu0 0
      %453 = vmatpush1.bf16.msra.mxu0 0
      %454 = vmatprep.subr.bf16.mxu0 0
      %455 = vmatpush1.bf16.msra.mxu0 0
      %456 = vmatprep.subr.bf16.mxu0 0
      %457 = vmatpush1.bf16.msra.mxu0 0
      %458 = vmatprep.subr.bf16.mxu0 0
      %459 = vmatpush1.bf16.msra.mxu0 0
      %460 = vmatprep.subr.bf16.mxu0 0
      %461 = vmatpush1.bf16.msra.mxu0 0
      %462 = vmatprep.subr.bf16.mxu0 0
      %463 = vmatpush1.bf16.msra.mxu0 0
      %464 = vmatprep.mubr.bf16.mxu0 0
      %465 = vmatmul.mubr.bf16.gmra.mrb[0].mxu0 %v226
      %v466 = vpop.f32.mrb[0].mxu0
      %v467 = vadd.f32 %v418, %v466
      %v468 = vpop.f32.mrb[0].mxu0
      %v469 = vpop.f32.mrb[0].mxu0
      %v470 = vpop.f32.mrb[0].mxu0
      %471 = vdwg.mxu0
      %v472 = vpack.c.bf16 %v467, %v467
      %s473 = scalar_lea.vmem %s198, 12
      %474 = vst.msk [vmem:[%s473] sm:$0xf] %vm269, %v472
      %s475 = scalar_lea.vmem %s1, 64
      %v476 = vld [vmem:[%s475] sm:$0xf]
      %v477 = vld [vmem:[%s475 + $0x4] sm:$0xf]
      %v478 = vld [vmem:[%s475 + $0x8] sm:$0xf]
      %v479 = vld [vmem:[%s475 + $0xc] sm:$0xf]
      %s480 = scalar_lea.vmem %s2, 4
      %v481 = vld [vmem:[%s480] sm:$0x1]
      %v483 = vlaneseq
      %v484 = vshrl.u32 %v483, 7
      %v485 = vsub.s32 0, %v484
      %v486 = vrot.slane %v481, %v485
      %v492 = vunpack.c.l.b16 %v476
      %v493 = vunpack.c.l.b16 %v477
      %v494 = vunpack.c.l.b16 %v478
      %v495 = vunpack.c.l.b16 %v479
      %v496 = vpack.c.b16 %v493, %v492
      %v497 = vpack.c.b16 %v495, %v494
      %500 = vmatprep.subr.bf16.mxu0 0
      %501 = vmatpush1.bf16.msra.mxu0 %v496
      %502 = vmatprep.subr.bf16.mxu0 0
      %503 = vmatpush1.bf16.msra.mxu0 %v497
      %504 = vmatprep.subr.bf16.mxu0 0
      %505 = vmatpush1.bf16.msra.mxu0 0
      %506 = vmatprep.subr.bf16.mxu0 0
      %507 = vmatpush1.bf16.msra.mxu0 0
      %508 = vmatprep.subr.bf16.mxu0 0
      %509 = vmatpush1.bf16.msra.mxu0 0
      %510 = vmatprep.subr.bf16.mxu0 0
      %511 = vmatpush1.bf16.msra.mxu0 0
      %512 = vmatprep.subr.bf16.mxu0 0
      %513 = vmatpush1.bf16.msra.mxu0 0
      %514 = vmatprep.subr.bf16.mxu0 0
      %515 = vmatpush1.bf16.msra.mxu0 0
      %516 = vmatprep.subr.bf16.mxu0 0
      %517 = vmatpush1.bf16.msra.mxu0 0
      %518 = vmatprep.subr.bf16.mxu0 0
      %519 = vmatpush1.bf16.msra.mxu0 0
      %520 = vmatprep.subr.bf16.mxu0 0
      %521 = vmatpush1.bf16.msra.mxu0 0
      %522 = vmatprep.subr.bf16.mxu0 0
      %523 = vmatpush1.bf16.msra.mxu0 0
      %524 = vmatprep.subr.bf16.mxu0 0
      %525 = vmatpush1.bf16.msra.mxu0 0
      %526 = vmatprep.subr.bf16.mxu0 0
      %527 = vmatpush1.bf16.msra.mxu0 0
      %528 = vmatprep.subr.bf16.mxu0 0
      %529 = vmatpush1.bf16.msra.mxu0 0
      %530 = vmatprep.subr.bf16.mxu0 0
      %531 = vmatpush1.bf16.msra.mxu0 0
      %532 = vmatprep.mubr.bf16.mxu0 0
      %533 = vmatmul.mubr.bf16.gmra.mrb[0].mxu0 %v226
      %v534 = vpop.f32.mrb[0].mxu0
      %v535 = vadd.f32 %v486, %v534
      %v536 = vpop.f32.mrb[0].mxu0
      %v537 = vpop.f32.mrb[0].mxu0
      %v538 = vpop.f32.mrb[0].mxu0
      %539 = vdwg.mxu0
      %v540 = vpack.c.bf16 %v535, %v535
      %s541 = scalar_lea.vmem %s198, 16
      %542 = vst.msk [vmem:[%s541] sm:$0xf] %vm269, %v540
      %s543 = scalar_lea.vmem %s1, 80
      %v544 = vld [vmem:[%s543] sm:$0xf]
      %v545 = vld [vmem:[%s543 + $0x4] sm:$0xf]
      %v546 = vld [vmem:[%s543 + $0x8] sm:$0xf]
      %v547 = vld [vmem:[%s543 + $0xc] sm:$0xf]
      %s548 = scalar_lea.vmem %s2, 5
      %v549 = vld [vmem:[%s548] sm:$0x1]
      %v551 = vlaneseq
      %v552 = vshrl.u32 %v551, 7
      %v553 = vsub.s32 0, %v552
      %v554 = vrot.slane %v549, %v553
      %v560 = vunpack.c.l.b16 %v544
      %v561 = vunpack.c.l.b16 %v545
      %v562 = vunpack.c.l.b16 %v546
      %v563 = vunpack.c.l.b16 %v547
      %v564 = vpack.c.b16 %v561, %v560
      %v565 = vpack.c.b16 %v563, %v562
      %568 = vmatprep.subr.bf16.mxu0 0
      %569 = vmatpush1.bf16.msra.mxu0 %v564
      %570 = vmatprep.subr.bf16.mxu0 0
      %571 = vmatpush1.bf16.msra.mxu0 %v565
      %572 = vmatprep.subr.bf16.mxu0 0
      %573 = vmatpush1.bf16.msra.mxu0 0
      %574 = vmatprep.subr.bf16.mxu0 0
      %575 = vmatpush1.bf16.msra.mxu0 0
      %576 = vmatprep.subr.bf16.mxu0 0
      %577 = vmatpush1.bf16.msra.mxu0 0
      %578 = vmatprep.subr.bf16.mxu0 0
      %579 = vmatpush1.bf16.msra.mxu0 0
      %580 = vmatprep.subr.bf16.mxu0 0
      %581 = vmatpush1.bf16.msra.mxu0 0
      %582 = vmatprep.subr.bf16.mxu0 0
      %583 = vmatpush1.bf16.msra.mxu0 0
      %584 = vmatprep.subr.bf16.mxu0 0
      %585 = vmatpush1.bf16.msra.mxu0 0
      %586 = vmatprep.subr.bf16.mxu0 0
      %587 = vmatpush1.bf16.msra.mxu0 0
      %588 = vmatprep.subr.bf16.mxu0 0
      %589 = vmatpush1.bf16.msra.mxu0 0
      %590 = vmatprep.subr.bf16.mxu0 0
      %591 = vmatpush1.bf16.msra.mxu0 0
      %592 = vmatprep.subr.bf16.mxu0 0
      %593 = vmatpush1.bf16.msra.mxu0 0
      %594 = vmatprep.subr.bf16.mxu0 0
      %595 = vmatpush1.bf16.msra.mxu0 0
      %596 = vmatprep.subr.bf16.mxu0 0
      %597 = vmatpush1.bf16.msra.mxu0 0
      %598 = vmatprep.subr.bf16.mxu0 0
      %599 = vmatpush1.bf16.msra.mxu0 0
      %600 = vmatprep.mubr.bf16.mxu0 0
      %601 = vmatmul.mubr.bf16.gmra.mrb[0].mxu0 %v226
      %v602 = vpop.f32.mrb[0].mxu0
      %v603 = vadd.f32 %v554, %v602
      %v604 = vpop.f32.mrb[0].mxu0
      %v605 = vpop.f32.mrb[0].mxu0
      %v606 = vpop.f32.mrb[0].mxu0
      %607 = vdwg.mxu0
      %v608 = vpack.c.bf16 %v603, %v603
      %s609 = scalar_lea.vmem %s198, 20
      %610 = vst.msk [vmem:[%s609] sm:$0xf] %vm269, %v608
      %s611 = scalar_lea.vmem %s1, 96
      %v612 = vld [vmem:[%s611] sm:$0xf]
      %v613 = vld [vmem:[%s611 + $0x4] sm:$0xf]
      %v614 = vld [vmem:[%s611 + $0x8] sm:$0xf]
      %v615 = vld [vmem:[%s611 + $0xc] sm:$0xf]
      %s616 = scalar_lea.vmem %s2, 6
      %v617 = vld [vmem:[%s616] sm:$0x1]
      %v619 = vlaneseq
      %v620 = vshrl.u32 %v619, 7
      %v621 = vsub.s32 0, %v620
      %v622 = vrot.slane %v617, %v621
      %v628 = vunpack.c.l.b16 %v612
      %v629 = vunpack.c.l.b16 %v613
      %v630 = vunpack.c.l.b16 %v614
      %v631 = vunpack.c.l.b16 %v615
      %v632 = vpack.c.b16 %v629, %v628
      %v633 = vpack.c.b16 %v631, %v630
      %636 = vmatprep.subr.bf16.mxu0 0
      %637 = vmatpush1.bf16.msra.mxu0 %v632
      %638 = vmatprep.subr.bf16.mxu0 0
      %639 = vmatpush1.bf16.msra.mxu0 %v633
      %640 = vmatprep.subr.bf16.mxu0 0
      %641 = vmatpush1.bf16.msra.mxu0 0
      %642 = vmatprep.subr.bf16.mxu0 0
      %643 = vmatpush1.bf16.msra.mxu0 0
      %644 = vmatprep.subr.bf16.mxu0 0
      %645 = vmatpush1.bf16.msra.mxu0 0
      %646 = vmatprep.subr.bf16.mxu0 0
      %647 = vmatpush1.bf16.msra.mxu0 0
      %648 = vmatprep.subr.bf16.mxu0 0
      %649 = vmatpush1.bf16.msra.mxu0 0
      %650 = vmatprep.subr.bf16.mxu0 0
      %651 = vmatpush1.bf16.msra.mxu0 0
      %652 = vmatprep.subr.bf16.mxu0 0
      %653 = vmatpush1.bf16.msra.mxu0 0
      %654 = vmatprep.subr.bf16.mxu0 0
      %655 = vmatpush1.bf16.msra.mxu0 0
      %656 = vmatprep.subr.bf16.mxu0 0
      %657 = vmatpush1.bf16.msra.mxu0 0
      %658 = vmatprep.subr.bf16.mxu0 0
      %659 = vmatpush1.bf16.msra.mxu0 0
      %660 = vmatprep.subr.bf16.mxu0 0
      %661 = vmatpush1.bf16.msra.mxu0 0
      %662 = vmatprep.subr.bf16.mxu0 0
      %663 = vmatpush1.bf16.msra.mxu0 0
      %664 = vmatprep.subr.bf16.mxu0 0
      %665 = vmatpush1.bf16.msra.mxu0 0
      %666 = vmatprep.subr.bf16.mxu0 0
      %667 = vmatpush1.bf16.msra.mxu0 0
      %668 = vmatprep.mubr.bf16.mxu0 0
      %669 = vmatmul.mubr.bf16.gmra.mrb[0].mxu0 %v226
      %v670 = vpop.f32.mrb[0].mxu0
      %v671 = vadd.f32 %v622, %v670
      %v672 = vpop.f32.mrb[0].mxu0
      %v673 = vpop.f32.mrb[0].mxu0
      %v674 = vpop.f32.mrb[0].mxu0
      %675 = vdwg.mxu0
      %v676 = vpack.c.bf16 %v671, %v671
      %s677 = scalar_lea.vmem %s198, 24
      %678 = vst.msk [vmem:[%s677] sm:$0xf] %vm269, %v676
      %s679 = scalar_lea.vmem %s1, 112
      %v680 = vld [vmem:[%s679] sm:$0xf]
      %v681 = vld [vmem:[%s679 + $0x4] sm:$0xf]
      %v682 = vld [vmem:[%s679 + $0x8] sm:$0xf]
      %v683 = vld [vmem:[%s679 + $0xc] sm:$0xf]
      %s684 = scalar_lea.vmem %s2, 7
      %v685 = vld [vmem:[%s684] sm:$0x1]
      %v687 = vlaneseq
      %v688 = vshrl.u32 %v687, 7
      %v689 = vsub.s32 0, %v688
      %v690 = vrot.slane %v685, %v689
      %v696 = vunpack.c.l.b16 %v680
      %v697 = vunpack.c.l.b16 %v681
      %v698 = vunpack.c.l.b16 %v682
      %v699 = vunpack.c.l.b16 %v683
      %v700 = vpack.c.b16 %v697, %v696
      %v701 = vpack.c.b16 %v699, %v698
      %704 = vmatprep.subr.bf16.mxu0 0
      %705 = vmatpush1.bf16.msra.mxu0 %v700
      %706 = vmatprep.subr.bf16.mxu0 0
      %707 = vmatpush1.bf16.msra.mxu0 %v701
      %708 = vmatprep.subr.bf16.mxu0 0
      %709 = vmatpush1.bf16.msra.mxu0 0
      %710 = vmatprep.subr.bf16.mxu0 0
      %711 = vmatpush1.bf16.msra.mxu0 0
      %712 = vmatprep.subr.bf16.mxu0 0
      %713 = vmatpush1.bf16.msra.mxu0 0
      %714 = vmatprep.subr.bf16.mxu0 0
      %715 = vmatpush1.bf16.msra.mxu0 0
      %716 = vmatprep.subr.bf16.mxu0 0
      %717 = vmatpush1.bf16.msra.mxu0 0
      %718 = vmatprep.subr.bf16.mxu0 0
      %719 = vmatpush1.bf16.msra.mxu0 0
      %720 = vmatprep.subr.bf16.mxu0 0
      %721 = vmatpush1.bf16.msra.mxu0 0
      %722 = vmatprep.subr.bf16.mxu0 0
      %723 = vmatpush1.bf16.msra.mxu0 0
      %724 = vmatprep.subr.bf16.mxu0 0
      %725 = vmatpush1.bf16.msra.mxu0 0
      %726 = vmatprep.subr.bf16.mxu0 0
      %727 = vmatpush1.bf16.msra.mxu0 0
      %728 = vmatprep.subr.bf16.mxu0 0
      %729 = vmatpush1.bf16.msra.mxu0 0
      %730 = vmatprep.subr.bf16.mxu0 0
      %731 = vmatpush1.bf16.msra.mxu0 0
      %732 = vmatprep.subr.bf16.mxu0 0
      %733 = vmatpush1.bf16.msra.mxu0 0
      %734 = vmatprep.subr.bf16.mxu0 0
      %735 = vmatpush1.bf16.msra.mxu0 0
      %736 = vmatprep.mubr.bf16.mxu0 0
      %737 = vmatmul.mubr.bf16.gmra.mrb[0].mxu0 %v226
      %v738 = vpop.f32.mrb[0].mxu0
      %v739 = vadd.f32 %v690, %v738
      %v740 = vpop.f32.mrb[0].mxu0
      %v741 = vpop.f32.mrb[0].mxu0
      %v742 = vpop.f32.mrb[0].mxu0
      %743 = vdwg.mxu0
      %v744 = vpack.c.bf16 %v739, %v739
      %s745 = scalar_lea.vmem %s198, 28
      %746 = vst.msk [vmem:[%s745] sm:$0xf] %vm269, %v744
      %p747 = scmp.lt.s32.totalorder %s18, 1
      %s748 = scalar_select %p747, %s18, 1
      %p749 = scmp.lt.s32.totalorder %s19, 0
      %s750 = scalar_select %p749, %s19, 0
      %s751 = smul.addr %s748, 8
      %s752 = sadd.s32 %s750, %s751
      %s753 = smul.addr %s752, 4
      %s754 = scalar_lea.vmem %s3, %s753
      // Predicated region
      $region33: #{transformer_forward.4} parent=31 // pred_check
        %p755 = pneg %p116
      $region34: #{transformer_forward.4} parent=31 // pred_check_branch
        %757 = sbr.rel (%p755) target = $region36
      $region35: #{transformer_forward.4} parent=31 // pred_region
        _
      $region36: #{transformer_forward.4} parent=31 // pred_fallthru
        _
    $region32: #{transformer_forward.4} parent=5 // pred_fallthru
      _
    %p758 = scmp.le.s32.totalorder 2, %s9
    // Predicated region
    $region37: #{transformer_forward.4} parent=5 // pred_check
      %p759 = pneg %p758
    $region38: #{transformer_forward.4} parent=5 // pred_check_branch
      %761 = sbr.rel (%p759) target = $region40
    $region39: #{transformer_forward.4} parent=5 // pred_region
      %s762 = ssub.s32 %s9, 2
      // Predicated region
      $region41: #{transformer_forward.4} parent=39 // pred_check
        %p763 = pneg %p122
      $region42: #{transformer_forward.4} parent=39 // pred_check_branch
        %765 = sbr.rel (%p763) target = $region44
      $region43: #{transformer_forward.4} parent=39 // pred_region
        %p766 = scmp.lt.s32.totalorder %s20, 1
        %s767 = scalar_select %p766, %s20, 1
        %p768 = scmp.lt.s32.totalorder %s21, 0
        %s769 = scalar_select %p768, %s21, 0
        %s770 = smul.addr %s767, 8
        %s771 = sadd.s32 %s769, %s770
        %s772 = smul.addr %s771, 4
        %s773 = scalar_lea.vmem %s3, %s772
      $region44: #{transformer_forward.4} parent=39 // pred_fallthru
        _
    $region40: #{transformer_forward.4} parent=5 // pred_fallthru
      _
  $region6: #{transformer_forward.4} parent=0 // loop_footer
    %s13 = sadd.s32 1, %s9
  $region7: #{transformer_forward.4} parent=0 // loop_footer_branch
    %8 = sbr.rel target = $region3
  $region8: #{transformer_forward.4} parent=0 // loop_exit
    _

// kernel: transformer_forward.5
$region0: #{transformer_forward.5}
  #allocation0 [shape = 'u32[]', space=smem, size = 0x4, offset = 0x4, fixed_abs, tag = 'smem constant byte address 0x4 - core index']
  #allocation1 [shape = 'u32[144,128]{1,0:T(1,128)}', space=vmem, size = 0x12000, scoped, tag = 'internal scratch']
  %s0 = inlined_call_operand.vmem [shape: bf16[2,8,32], index: 0, kind: input, shape index: {}]
  %s1 = inlined_call_operand.vmem [shape: bf16[2,8,8,8], index: 1, kind: input, shape index: {}]
  %s2 = inlined_call_operand.vmem [shape: bf16[4,32,8], index: 2, kind: input, shape index: {}]
  %s3 = inlined_call_operand.vmem [shape: f32[4,1,8], index: 3, kind: input, shape index: {}]
  %s4 = inlined_call_operand.vmem [shape: bf16[4,8,32], index: 4, kind: input, shape index: {}]
  %s5 = inlined_call_operand.vmem [shape: f32[1,32], index: 5, kind: input, shape index: {}]
  %s6 = inlined_call_operand.vmem [shape: bf16[32,64], index: 6, kind: input, shape index: {}]
  %s7 = inlined_call_operand.vmem [shape: f32[1,64], index: 7, kind: input, shape index: {}]
  %s8 = inlined_call_operand.vmem [shape: bf16[64,32], index: 8, kind: input, shape index: {}]
  %s9 = inlined_call_operand.vmem [shape: f32[1,32], index: 9, kind: input, shape index: {}]
  %s10 = inlined_call_operand.vmem [shape: f32[1,32], index: 10, kind: input, shape index: {}]
  %s11 = inlined_call_operand.vmem [shape: f32[1,32], index: 11, kind: input, shape index: {}]
  %s12 = inlined_call_operand.vmem [shape: f32[1,32], index: 12, kind: input, shape index: {}]
  %s13 = inlined_call_operand.vmem [shape: f32[1,32], index: 13, kind: input, shape index: {}]
  %s14 = inlined_call_operand.vmem [shape: bf16[2,8,32], index: 14, kind: output, shape index: {}]
  %s15 = sld [smem:[#allocation0]]
  $region89: #{transformer_forward.5} parent=0
    _
  %s17 = ssub.s32 1, %s15
  %s18 = scalar_select 0, %s17, %s15
  loop: start=0, step=1, limit=4
  $region2: #{transformer_forward.5} parent=0 // loop_pre_header
    _
  $region3: #{transformer_forward.5} parent=0 // loop_header
    %s20 = sphi 0, %s24
    %p21 = scmp.ge.s32.totalorder %s20, 4
    %s27 = sphi 0, %s39
    %s28 = sphi 0, %s35
    %s29 = sphi 0, %s27
    %s30 = sphi 0, %s28
    %s31 = sphi 0, %s29
    %s32 = sphi 0, %s30
    %s44 = sphi 0, %s46
    %s47 = sphi 0, %s44
    %s48 = sphi 0, %s47
    %s64 = sphi 0, %s48
    %s70 = sphi 0, %s72
    %s73 = sphi 0, %s70
    %s74 = sphi 0, %s73
    %s90 = sphi 0, %s74
    %s94 = sphi 0, %s94
    %s96 = sphi 0, %s94
    %s97 = sphi 0, %s96
    %s111 = sphi 0, %s97
    %s115 = sphi 0, %s115
    %s117 = sphi 0, %s115
    %s118 = sphi 0, %s117
    %s132 = sphi 0, %s118
    %s136 = sphi 0, %s136
    %s138 = sphi 0, %s136
    %s139 = sphi 0, %s138
    %s153 = sphi 0, %s139
    %s157 = sphi 0, %s157
    %s159 = sphi 0, %s157
    %s160 = sphi 0, %s159
    %s174 = sphi 0, %s160
    %s178 = sphi 0, %s178
    %s180 = sphi 0, %s178
    %s181 = sphi 0, %s180
    %s195 = sphi 0, %s181
    %s199 = sphi 0, %s199
    %s201 = sphi 0, %s199
    %s202 = sphi 0, %s201
    %s216 = sphi 0, %s202
    %s220 = sphi 0, %s220
    %s222 = sphi 0, %s220
    %s223 = sphi 0, %s222
    %s237 = sphi 0, %s223
    %s241 = sphi 0, %s241
    %s243 = sphi 0, %s241
    %s244 = sphi 0, %s243
    %s258 = sphi 0, %s244
    %s262 = sphi 0, %s262
    %s264 = sphi 0, %s262
    %s265 = sphi 0, %s264
    %s279 = sphi 0, %s265
    %s283 = sphi 0, %s283
    %s285 = sphi 0, %s283
    %s286 = sphi 0, %s285
    %s300 = sphi 0, %s286
    %s304 = sphi 0, %s304
    %s306 = sphi 0, %s304
    %s307 = sphi 0, %s306
    %s321 = sphi 0, %s307
    %s325 = sphi 0, %s325
    %s327 = sphi 0, %s325
    %s328 = sphi 0, %s327
    %s342 = sphi 0, %s328
    %s350 = sphi 0, %s352
    %s353 = sphi 0, %s350
    %s354 = sphi 0, %s353
    %s370 = sphi 0, %s354
  $region4: #{transformer_forward.5} parent=0 // loop_header_branch
    %23 = sbr.rel (%p21) target = $region8
  $region5: #{transformer_forward.5} parent=0 // loop_body
    %s25 = ssub.s32 %s20, 1
    %s26 = ssub.s32 %s20, 2
    %s33 = sadd.s32 1, %s28
    %p34 = scmp.ge.s32.totalorder %s33, 1
    %s35 = scalar_select %p34, 0, %s33
    %s36 = sadd.s32 1, %s27
    %s37 = scalar_select %p34, %s36, %s27
    %p38 = scmp.ge.s32.totalorder %s37, 2
    %s39 = scalar_select %p38, 0, %s37
    %s40 = ssub.s32 %s27, %s39
    %s41 = ssub.s32 %s28, %s35
    %s42 = sor.u32 %s40, %s41
    %p43 = scmp.eq.s32.totalorder %s42, 0
    %s45 = sadd.s32 %s44, 1
    %s46 = scalar_select %p43, %s44, %s45
    %p49 = pneg %p43
    %p50 = scmp.eq.s32.totalorder %s20, 1
    %p51 = por %p49, %p50
    %p52 = scmp.ne.s32.totalorder %s44, %s47
    %p53 = scmp.eq.s32.totalorder %s20, 0
    %p54 = por %p52, %p53
    %p55 = scmp.ne.s32.totalorder %s44, %s47
    %p56 = scmp.eq.s32.totalorder %s25, 1
    %p57 = por %p55, %p56
    %p58 = scmp.ne.s32.totalorder %s47, %s48
    %p59 = scmp.eq.s32.totalorder %s25, 0
    %p60 = por %p58, %p59
    %p61 = scmp.ne.s32.totalorder %s47, %s48
    %p62 = scmp.eq.s32.totalorder %s26, 1
    %p63 = por %p61, %p62
    %p65 = scmp.ne.s32.totalorder %s48, %s64
    %p66 = scmp.eq.s32.totalorder %s26, 0
    %p67 = por %p65, %p66
    %s68 = ssub.s32 %s27, %s39
    %p69 = scmp.eq.s32.totalorder %s68, 0
    %s71 = sadd.s32 %s70, 1
    %s72 = scalar_select %p69, %s70, %s71
    %p75 = pneg %p69
    %p76 = scmp.eq.s32.totalorder %s20, 1
    %p77 = por %p75, %p76
    %p78 = scmp.ne.s32.totalorder %s70, %s73
    %p79 = scmp.eq.s32.totalorder %s20, 0
    %p80 = por %p78, %p79
    %p81 = scmp.ne.s32.totalorder %s70, %s73
    %p82 = scmp.eq.s32.totalorder %s25, 1
    %p83 = por %p81, %p82
    %p84 = scmp.ne.s32.totalorder %s73, %s74
    %p85 = scmp.eq.s32.totalorder %s25, 0
    %p86 = por %p84, %p85
    %p87 = scmp.ne.s32.totalorder %s73, %s74
    %p88 = scmp.eq.s32.totalorder %s26, 1
    %p89 = por %p87, %p88
    %p91 = scmp.ne.s32.totalorder %s74, %s90
    %p92 = scmp.eq.s32.totalorder %s26, 0
    %p93 = por %p91, %p92
    %s95 = sadd.s32 %s94, 1
    %p98 = scmp.eq.s32.totalorder %s20, 1
    %p99 = scmp.ne.s32.totalorder %s94, %s96
    %p100 = scmp.eq.s32.totalorder %s20, 0
    %p101 = por %p99, %p100
    %p102 = scmp.ne.s32.totalorder %s94, %s96
    %p103 = scmp.eq.s32.totalorder %s25, 1
    %p104 = por %p102, %p103
    %p105 = scmp.ne.s32.totalorder %s96, %s97
    %p106 = scmp.eq.s32.totalorder %s25, 0
    %p107 = por %p105, %p106
    %p108 = scmp.ne.s32.totalorder %s96, %s97
    %p109 = scmp.eq.s32.totalorder %s26, 1
    %p110 = por %p108, %p109
    %p112 = scmp.ne.s32.totalorder %s97, %s111
    %p113 = scmp.eq.s32.totalorder %s26, 0
    %p114 = por %p112, %p113
    %s116 = sadd.s32 %s115, 1
    %p119 = scmp.eq.s32.totalorder %s20, 1
    %p120 = scmp.ne.s32.totalorder %s115, %s117
    %p121 = scmp.eq.s32.totalorder %s20, 0
    %p122 = por %p120, %p121
    %p123 = scmp.ne.s32.totalorder %s115, %s117
    %p124 = scmp.eq.s32.totalorder %s25, 1
    %p125 = por %p123, %p124
    %p126 = scmp.ne.s32.totalorder %s117, %s118
    %p127 = scmp.eq.s32.totalorder %s25, 0
    %p128 = por %p126, %p127
    %p129 = scmp.ne.s32.totalorder %s117, %s118
    %p130 = scmp.eq.s32.totalorder %s26, 1
    %p131 = por %p129, %p130
    %p133 = scmp.ne.s32.totalorder %s118, %s132
    %p134 = scmp.eq.s32.totalorder %s26, 0
    %p135 = por %p133, %p134
    %s137 = sadd.s32 %s136, 1
    %p140 = scmp.eq.s32.totalorder %s20, 1
    %p141 = scmp.ne.s32.totalorder %s136, %s138
    %p142 = scmp.eq.s32.totalorder %s20, 0
    %p143 = por %p141, %p142
    %p144 = scmp.ne.s32.totalorder %s136, %s138
    %p145 = scmp.eq.s32.totalorder %s25, 1
    %p146 = por %p144, %p145
    %p147 = scmp.ne.s32.totalorder %s138, %s139
    %p148 = scmp.eq.s32.totalorder %s25, 0
    %p149 = por %p147, %p148
    %p150 = scmp.ne.s32.totalorder %s138, %s139
    %p151 = scmp.eq.s32.totalorder %s26, 1
    %p152 = por %p150, %p151
    %p154 = scmp.ne.s32.totalorder %s139, %s153
    %p155 = scmp.eq.s32.totalorder %s26, 0
    %p156 = por %p154, %p155
    %s158 = sadd.s32 %s157, 1
    %p161 = scmp.eq.s32.totalorder %s20, 1
    %p162 = scmp.ne.s32.totalorder %s157, %s159
    %p163 = scmp.eq.s32.totalorder %s20, 0
    %p164 = por %p162, %p163
    %p165 = scmp.ne.s32.totalorder %s157, %s159
    %p166 = scmp.eq.s32.totalorder %s25, 1
    %p167 = por %p165, %p166
    %p168 = scmp.ne.s32.totalorder %s159, %s160
    %p169 = scmp.eq.s32.totalorder %s25, 0
    %p170 = por %p168, %p169
    %p171 = scmp.ne.s32.totalorder %s159, %s160
    %p172 = scmp.eq.s32.totalorder %s26, 1
    %p173 = por %p171, %p172
    %p175 = scmp.ne.s32.totalorder %s160, %s174
    %p176 = scmp.eq.s32.totalorder %s26, 0
    %p177 = por %p175, %p176
    %s179 = sadd.s32 %s178, 1
    %p182 = scmp.eq.s32.totalorder %s20, 1
    %p183 = scmp.ne.s32.totalorder %s178, %s180
    %p184 = scmp.eq.s32.totalorder %s20, 0
    %p185 = por %p183, %p184
    %p186 = scmp.ne.s32.totalorder %s178, %s180
    %p187 = scmp.eq.s32.totalorder %s25, 1
    %p188 = por %p186, %p187
    %p189 = scmp.ne.s32.totalorder %s180, %s181
    %p190 = scmp.eq.s32.totalorder %s25, 0
    %p191 = por %p189, %p190
    %p192 = scmp.ne.s32.totalorder %s180, %s181
    %p193 = scmp.eq.s32.totalorder %s26, 1
    %p194 = por %p192, %p193
    %p196 = scmp.ne.s32.totalorder %s181, %s195
    %p197 = scmp.eq.s32.totalorder %s26, 0
    %p198 = por %p196, %p197
    %s200 = sadd.s32 %s199, 1
    %p203 = scmp.eq.s32.totalorder %s20, 1
    %p204 = scmp.ne.s32.totalorder %s199, %s201
    %p205 = scmp.eq.s32.totalorder %s20, 0
    %p206 = por %p204, %p205
    %p207 = scmp.ne.s32.totalorder %s199, %s201
    %p208 = scmp.eq.s32.totalorder %s25, 1
    %p209 = por %p207, %p208
    %p210 = scmp.ne.s32.totalorder %s201, %s202
    %p211 = scmp.eq.s32.totalorder %s25, 0
    %p212 = por %p210, %p211
    %p213 = scmp.ne.s32.totalorder %s201, %s202
    %p214 = scmp.eq.s32.totalorder %s26, 1
    %p215 = por %p213, %p214
    %p217 = scmp.ne.s32.totalorder %s202, %s216
    %p218 = scmp.eq.s32.totalorder %s26, 0
    %p219 = por %p217, %p218
    %s221 = sadd.s32 %s220, 1
    %p224 = scmp.eq.s32.totalorder %s20, 1
    %p225 = scmp.ne.s32.totalorder %s220, %s222
    %p226 = scmp.eq.s32.totalorder %s20, 0
    %p227 = por %p225, %p226
    %p228 = scmp.ne.s32.totalorder %s220, %s222
    %p229 = scmp.eq.s32.totalorder %s25, 1
    %p230 = por %p228, %p229
    %p231 = scmp.ne.s32.totalorder %s222, %s223
    %p232 = scmp.eq.s32.totalorder %s25, 0
    %p233 = por %p231, %p232
    %p234 = scmp.ne.s32.totalorder %s222, %s223
    %p235 = scmp.eq.s32.totalorder %s26, 1
    %p236 = por %p234, %p235
    %p238 = scmp.ne.s32.totalorder %s223, %s237
    %p239 = scmp.eq.s32.totalorder %s26, 0
    %p240 = por %p238, %p239
    %s242 = sadd.s32 %s241, 1
    %p245 = scmp.eq.s32.totalorder %s20, 1
    %p246 = scmp.ne.s32.totalorder %s241, %s243
    %p247 = scmp.eq.s32.totalorder %s20, 0
    %p248 = por %p246, %p247
    %p249 = scmp.ne.s32.totalorder %s241, %s243
    %p250 = scmp.eq.s32.totalorder %s25, 1
    %p251 = por %p249, %p250
    %p252 = scmp.ne.s32.totalorder %s243, %s244
    %p253 = scmp.eq.s32.totalorder %s25, 0
    %p254 = por %p252, %p253
    %p255 = scmp.ne.s32.totalorder %s243, %s244
    %p256 = scmp.eq.s32.totalorder %s26, 1
    %p257 = por %p255, %p256
    %p259 = scmp.ne.s32.totalorder %s244, %s258
    %p260 = scmp.eq.s32.totalorder %s26, 0
    %p261 = por %p259, %p260
    %s263 = sadd.s32 %s262, 1
    %p266 = scmp.eq.s32.totalorder %s20, 1
    %p267 = scmp.ne.s32.totalorder %s262, %s264
    %p268 = scmp.eq.s32.totalorder %s20, 0
    %p269 = por %p267, %p268
    %p270 = scmp.ne.s32.totalorder %s262, %s264
    %p271 = scmp.eq.s32.totalorder %s25, 1
    %p272 = por %p270, %p271
    %p273 = scmp.ne.s32.totalorder %s264, %s265
    %p274 = scmp.eq.s32.totalorder %s25, 0
    %p275 = por %p273, %p274
    %p276 = scmp.ne.s32.totalorder %s264, %s265
    %p277 = scmp.eq.s32.totalorder %s26, 1
    %p278 = por %p276, %p277
    %p280 = scmp.ne.s32.totalorder %s265, %s279
    %p281 = scmp.eq.s32.totalorder %s26, 0
    %p282 = por %p280, %p281
    %s284 = sadd.s32 %s283, 1
    %p287 = scmp.eq.s32.totalorder %s20, 1
    %p288 = scmp.ne.s32.totalorder %s283, %s285
    %p289 = scmp.eq.s32.totalorder %s20, 0
    %p290 = por %p288, %p289
    %p291 = scmp.ne.s32.totalorder %s283, %s285
    %p292 = scmp.eq.s32.totalorder %s25, 1
    %p293 = por %p291, %p292
    %p294 = scmp.ne.s32.totalorder %s285, %s286
    %p295 = scmp.eq.s32.totalorder %s25, 0
    %p296 = por %p294, %p295
    %p297 = scmp.ne.s32.totalorder %s285, %s286
    %p298 = scmp.eq.s32.totalorder %s26, 1
    %p299 = por %p297, %p298
    %p301 = scmp.ne.s32.totalorder %s286, %s300
    %p302 = scmp.eq.s32.totalorder %s26, 0
    %p303 = por %p301, %p302
    %s305 = sadd.s32 %s304, 1
    %p308 = scmp.eq.s32.totalorder %s20, 1
    %p309 = scmp.ne.s32.totalorder %s304, %s306
    %p310 = scmp.eq.s32.totalorder %s20, 0
    %p311 = por %p309, %p310
    %p312 = scmp.ne.s32.totalorder %s304, %s306
    %p313 = scmp.eq.s32.totalorder %s25, 1
    %p314 = por %p312, %p313
    %p315 = scmp.ne.s32.totalorder %s306, %s307
    %p316 = scmp.eq.s32.totalorder %s25, 0
    %p317 = por %p315, %p316
    %p318 = scmp.ne.s32.totalorder %s306, %s307
    %p319 = scmp.eq.s32.totalorder %s26, 1
    %p320 = por %p318, %p319
    %p322 = scmp.ne.s32.totalorder %s307, %s321
    %p323 = scmp.eq.s32.totalorder %s26, 0
    %p324 = por %p322, %p323
    %s326 = sadd.s32 %s325, 1
    %p329 = scmp.eq.s32.totalorder %s20, 1
    %p330 = scmp.ne.s32.totalorder %s325, %s327
    %p331 = scmp.eq.s32.totalorder %s20, 0
    %p332 = por %p330, %p331
    %p333 = scmp.ne.s32.totalorder %s325, %s327
    %p334 = scmp.eq.s32.totalorder %s25, 1
    %p335 = por %p333, %p334
    %p336 = scmp.ne.s32.totalorder %s327, %s328
    %p337 = scmp.eq.s32.totalorder %s25, 0
    %p338 = por %p336, %p337
    %p339 = scmp.ne.s32.totalorder %s327, %s328
    %p340 = scmp.eq.s32.totalorder %s26, 1
    %p341 = por %p339, %p340
    %p343 = scmp.ne.s32.totalorder %s328, %s342
    %p344 = scmp.eq.s32.totalorder %s26, 0
    %p345 = por %p343, %p344
    %s346 = ssub.s32 %s27, %s39
    %s347 = ssub.s32 %s28, %s35
    %s348 = sor.u32 %s346, %s347
    %p349 = scmp.eq.s32.totalorder %s348, 0
    %s351 = sadd.s32 %s350, 1
    %s352 = scalar_select %p349, %s350, %s351
    %p355 = pneg %p349
    %p356 = scmp.eq.s32.totalorder %s20, 1
    %p357 = por %p355, %p356
    %p358 = scmp.ne.s32.totalorder %s350, %s353
    %p359 = scmp.eq.s32.totalorder %s20, 0
    %p360 = por %p358, %p359
    %p361 = scmp.ne.s32.totalorder %s350, %s353
    %p362 = scmp.eq.s32.totalorder %s25, 1
    %p363 = por %p361, %p362
    %p364 = scmp.ne.s32.totalorder %s353, %s354
    %p365 = scmp.eq.s32.totalorder %s25, 0
    %p366 = por %p364, %p365
    %p367 = scmp.ne.s32.totalorder %s353, %s354
    %p368 = scmp.eq.s32.totalorder %s26, 1
    %p369 = por %p367, %p368
    %p371 = scmp.ne.s32.totalorder %s354, %s370
    %p372 = scmp.eq.s32.totalorder %s26, 0
    %p373 = por %p371, %p372
    %p374 = scmp.le.s32.totalorder 1, %s20
    %p375 = scmp.lt.s32.totalorder %s20, 3
    %p376 = pnand %p374, %p375
    %p377 = pneg %p376
    // Predicated region
    $region9: #{transformer_forward.5} parent=5 // pred_check
      _
    $region10: #{transformer_forward.5} parent=5 // pred_check_branch
      %379 = sbr.rel (%p376) target = $region12
    $region11: #{transformer_forward.5} parent=5 // pred_region
      %s380 = ssub.s32 %s20, 1
      // Predicated region
      $region13: #{transformer_forward.5} parent=11 // pred_check
        %p381 = pneg %p107
      $region14: #{transformer_forward.5} parent=11 // pred_check_branch
        %383 = sbr.rel (%p381) target = $region16
      $region15: #{transformer_forward.5} parent=11 // pred_region
        _
      $region16: #{transformer_forward.5} parent=11 // pred_fallthru
        _
      // Predicated region
      $region17: #{transformer_forward.5} parent=11 // pred_check
        %p384 = pneg %p128
      $region18: #{transformer_forward.5} parent=11 // pred_check_branch
        %386 = sbr.rel (%p384) target = $region20
      $region19: #{transformer_forward.5} parent=11 // pred_region
        _
      $region20: #{transformer_forward.5} parent=11 // pred_fallthru
        _
      // Predicated region
      $region21: #{transformer_forward.5} parent=11 // pred_check
        %p387 = pneg %p149
      $region22: #{transformer_forward.5} parent=11 // pred_check_branch
        %389 = sbr.rel (%p387) target = $region24
      $region23: #{transformer_forward.5} parent=11 // pred_region
        _
      $region24: #{transformer_forward.5} parent=11 // pred_fallthru
        _
      // Predicated region
      $region25: #{transformer_forward.5} parent=11 // pred_check
        %p390 = pneg %p170
      $region26: #{transformer_forward.5} parent=11 // pred_check_branch
        %392 = sbr.rel (%p390) target = $region28
      $region27: #{transformer_forward.5} parent=11 // pred_region
        _
      $region28: #{transformer_forward.5} parent=11 // pred_fallthru
        _
      // Predicated region
      $region29: #{transformer_forward.5} parent=11 // pred_check
        %p393 = pneg %p191
      $region30: #{transformer_forward.5} parent=11 // pred_check_branch
        %395 = sbr.rel (%p393) target = $region32
      $region31: #{transformer_forward.5} parent=11 // pred_region
        _
      $region32: #{transformer_forward.5} parent=11 // pred_fallthru
        _
      // Predicated region
      $region33: #{transformer_forward.5} parent=11 // pred_check
        %p396 = pneg %p212
      $region34: #{transformer_forward.5} parent=11 // pred_check_branch
        %398 = sbr.rel (%p396) target = $region36
      $region35: #{transformer_forward.5} parent=11 // pred_region
        _
      $region36: #{transformer_forward.5} parent=11 // pred_fallthru
        _
      // Predicated region
      $region37: #{transformer_forward.5} parent=11 // pred_check
        %p399 = pneg %p233
      $region38: #{transformer_forward.5} parent=11 // pred_check_branch
        %401 = sbr.rel (%p399) target = $region40
      $region39: #{transformer_forward.5} parent=11 // pred_region
        _
      $region40: #{transformer_forward.5} parent=11 // pred_fallthru
        _
      // Predicated region
      $region41: #{transformer_forward.5} parent=11 // pred_check
        %p402 = pneg %p254
      $region42: #{transformer_forward.5} parent=11 // pred_check_branch
        %404 = sbr.rel (%p402) target = $region44
      $region43: #{transformer_forward.5} parent=11 // pred_region
        _
      $region44: #{transformer_forward.5} parent=11 // pred_fallthru
        _
      // Predicated region
      $region45: #{transformer_forward.5} parent=11 // pred_check
        %p405 = pneg %p275
      $region46: #{transformer_forward.5} parent=11 // pred_check_branch
        %407 = sbr.rel (%p405) target = $region48
      $region47: #{transformer_forward.5} parent=11 // pred_region
        _
      $region48: #{transformer_forward.5} parent=11 // pred_fallthru
        _
      // Predicated region
      $region49: #{transformer_forward.5} parent=11 // pred_check
        %p408 = pneg %p296
      $region50: #{transformer_forward.5} parent=11 // pred_check_branch
        %410 = sbr.rel (%p408) target = $region52
      $region51: #{transformer_forward.5} parent=11 // pred_region
        _
      $region52: #{transformer_forward.5} parent=11 // pred_fallthru
        _
      // Predicated region
      $region53: #{transformer_forward.5} parent=11 // pred_check
        %p411 = pneg %p317
      $region54: #{transformer_forward.5} parent=11 // pred_check_branch
        %413 = sbr.rel (%p411) target = $region56
      $region55: #{transformer_forward.5} parent=11 // pred_region
        _
      $region56: #{transformer_forward.5} parent=11 // pred_fallthru
        _
      // Predicated region
      $region57: #{transformer_forward.5} parent=11 // pred_check
        %p414 = pneg %p338
      $region58: #{transformer_forward.5} parent=11 // pred_check_branch
        %416 = sbr.rel (%p414) target = $region60
      $region59: #{transformer_forward.5} parent=11 // pred_region
        _
      $region60: #{transformer_forward.5} parent=11 // pred_fallthru
        _
    $region12: #{transformer_forward.5} parent=5 // pred_fallthru
      _
    %p417 = scmp.lt.s32.totalorder %s20, 2
    // Predicated region
    $region61: #{transformer_forward.5} parent=5 // pred_check
      %p418 = pneg %p417
    $region62: #{transformer_forward.5} parent=5 // pred_check_branch
      %420 = sbr.rel (%p418) target = $region64
    $region63: #{transformer_forward.5} parent=5 // pred_region
      // Predicated region
      $region65: #{transformer_forward.5} parent=63 // pred_check
        %p421 = pneg %p54
      $region66: #{transformer_forward.5} parent=63 // pred_check_branch
        %423 = sbr.rel (%p421) target = $region68
      $region67: #{transformer_forward.5} parent=63 // pred_region
        %p424 = scmp.lt.s32.totalorder %s27, 1
        %s425 = scalar_select %p424, %s27, 1
        %p426 = scmp.lt.s32.totalorder %s28, 0
        %s427 = scalar_select %p426, %s28, 0
        %s428 = sadd.s32 %s427, %s425
        %s429 = smul.addr %s428, 4
        %s430 = scalar_lea.vmem %s0, %s429
      $region68: #{transformer_forward.5} parent=63 // pred_fallthru
        _
      // Predicated region
      $region69: #{transformer_forward.5} parent=63 // pred_check
        %p431 = pneg %p80
      $region70: #{transformer_forward.5} parent=63 // pred_check_branch
        %433 = sbr.rel (%p431) target = $region72
      $region71: #{transformer_forward.5} parent=63 // pred_region
        %p434 = scmp.lt.s32.totalorder %s27, 1
        %s435 = scalar_select %p434, %s27, 1
        %s436 = smul.addr %s435, 8
        %s437 = smul.addr %s436, 4
        %s438 = scalar_lea.vmem %s1, %s437
      $region72: #{transformer_forward.5} parent=63 // pred_fallthru
        _
    $region64: #{transformer_forward.5} parent=5 // pred_fallthru
      _
    %p439 = scmp.le.s32.totalorder 1, %s20
    %p440 = scmp.lt.s32.totalorder %s20, 3
    %p441 = pnand %p439, %p440
    %p442 = pneg %p441
    // Predicated region
    $region73: #{transformer_forward.5} parent=5 // pred_check
      _
    $region74: #{transformer_forward.5} parent=5 // pred_check_branch
      %444 = sbr.rel (%p441) target = $region76
    $region75: #{transformer_forward.5} parent=5 // pred_region
      %s445 = ssub.s32 %s20, 1
      %p446 = scmp.lt.s32.totalorder %s29, 1
      %s447 = scalar_select %p446, %s29, 1
      %p448 = scmp.lt.s32.totalorder %s30, 0
      %s449 = scalar_select %p448, %s30, 0
      %s450 = sadd.s32 %s449, %s447
      %s451 = smul.addr %s450, 4
      %s452 = scalar_lea.vmem %s0, %s451
      %p453 = pneg %p60
      %p454 = pneg %p57
      %p455 = scmp.lt.s32.totalorder %s29, 1
      %s456 = scalar_select %p455, %s29, 1
      %s457 = smul.addr %s456, 8
      %s458 = smul.addr %s457, 4
      %s459 = scalar_lea.vmem %s1, %s458
      %p460 = pneg %p86
      %p461 = pneg %p83
      %p462 = pneg %p107
      %p463 = pneg %p104
      %p464 = pneg %p128
      %p465 = pneg %p125
      %p466 = pneg %p149
      %p467 = pneg %p146
      %p468 = pneg %p170
      %p469 = pneg %p167
      %p470 = pneg %p191
      %p471 = pneg %p188
      %p472 = pneg %p212
      %p473 = pneg %p209
      %p474 = pneg %p233
      %p475 = pneg %p230
      %p476 = pneg %p254
      %p477 = pneg %p251
      %p478 = pneg %p275
      %p479 = pneg %p272
      %p480 = pneg %p296
      %p481 = pneg %p293
      %p482 = pneg %p317
      %p483 = pneg %p314
      %p484 = pneg %p338
      %p485 = pneg %p335
      %p486 = pneg %p366
      %p487 = pneg %p363
      %p488 = scmp.lt.s32.totalorder %s29, 1
      %s489 = scalar_select %p488, %s29, 1
      %p490 = scmp.lt.s32.totalorder %s30, 0
      %s491 = scalar_select %p490, %s30, 0
      %s492 = sadd.s32 %s491, %s489
      %s493 = smul.addr %s492, 4
      %s494 = scalar_lea.vmem %s14, %s493
      %p495 = scmp.lt.s32.totalorder %s29, 1
      %s496 = scalar_select %p495, %s29, 1
      %p497 = scmp.lt.s32.totalorder %s30, 0
      %s498 = scalar_select %p497, %s30, 0
      %s499 = sadd.s32 %s498, %s496
      %s500 = smul.addr %s499, 4
      %s501 = scalar_lea.vmem %s0, %s500
      %p502 = scmp.lt.s32.totalorder %s29, 1
      %s503 = scalar_select %p502, %s29, 1
      %s504 = smul.addr %s503, 8
      %s505 = smul.addr %s504, 4
      %s506 = scalar_lea.vmem %s1, %s505
      %p507 = scmp.lt.s32.totalorder %s29, 1
      %s508 = scalar_select %p507, %s29, 1
      %p509 = scmp.lt.s32.totalorder %s30, 0
      %s510 = scalar_select %p509, %s30, 0
      %s511 = sadd.s32 %s510, %s508
      %s512 = smul.addr %s511, 4
      %s513 = scalar_lea.vmem %s14, %s512
      %v515 = vld [vmem:[%s501] sm:$0xf]
      %v516 = vld [vmem:[%s2] sm:$0xf]
      %v517 = vld [vmem:[%s2 + $0x4] sm:$0xf]
      %v518 = vld [vmem:[%s2 + $0x8] sm:$0xf]
      %v519 = vld [vmem:[%s2 + $0xc] sm:$0xf]
      %v520 = vld [vmem:[%s3] sm:$0x1]
      %v522 = vlaneseq
      %v523 = vshrl.u32 %v522, 7
      %v524 = vsub.s32 0, %v523
      %v525 = vrot.slane %v520, %v524
      %v531 = vunpack.c.l.b16 %v516
      %v532 = vunpack.c.l.b16 %v517
      %v533 = vunpack.c.l.b16 %v518
      %v534 = vunpack.c.l.b16 %v519
      %v535 = vpack.c.b16 %v532, %v531
      %v536 = vpack.c.b16 %v534, %v533
      %vm539 = vcmask 261120
      %v541 = vsel %vm539, %v515, 0
      %543 = vmatprep.subr.bf16.mxu0 0
      %544 = vmatpush1.bf16.msra.mxu0 %v535
      %545 = vmatprep.subr.bf16.mxu0 0
      %546 = vmatpush1.bf16.msra.mxu0 %v536
      %547 = vmatprep.subr.bf16.mxu0 0
      %548 = vmatpush1.bf16.msra.mxu0 0
      %549 = vmatprep.subr.bf16.mxu0 0
      %550 = vmatpush1.bf16.msra.mxu0 0
      %551 = vmatprep.subr.bf16.mxu0 0
      %552 = vmatpush1.bf16.msra.mxu0 0
      %553 = vmatprep.subr.bf16.mxu0 0
      %554 = vmatpush1.bf16.msra.mxu0 0
      %555 = vmatprep.subr.bf16.mxu0 0
      %556 = vmatpush1.bf16.msra.mxu0 0
      %557 = vmatprep.subr.bf16.mxu0 0
      %558 = vmatpush1.bf16.msra.mxu0 0
      %559 = vmatprep.subr.bf16.mxu0 0
      %560 = vmatpush1.bf16.msra.mxu0 0
      %561 = vmatprep.subr.bf16.mxu0 0
      %562 = vmatpush1.bf16.msra.mxu0 0
      %563 = vmatprep.subr.bf16.mxu0 0
      %564 = vmatpush1.bf16.msra.mxu0 0
      %565 = vmatprep.subr.bf16.mxu0 0
      %566 = vmatpush1.bf16.msra.mxu0 0
      %567 = vmatprep.subr.bf16.mxu0 0
      %568 = vmatpush1.bf16.msra.mxu0 0
      %569 = vmatprep.subr.bf16.mxu0 0
      %570 = vmatpush1.bf16.msra.mxu0 0
      %571 = vmatprep.subr.bf16.mxu0 0
      %572 = vmatpush1.bf16.msra.mxu0 0
      %573 = vmatprep.subr.bf16.mxu0 0
      %574 = vmatpush1.bf16.msra.mxu0 0
      %575 = vmatprep.mubr.bf16.mxu0 0
      %576 = vmatmul.mubr.bf16.gmra.mrb[0].mxu0 %v541
      %v577 = vpop.f32.mrb[0].mxu0
      %v578 = vadd.f32 %v525, %v577
      %v579 = vpop.f32.mrb[0].mxu0
      %v580 = vpop.f32.mrb[0].mxu0
      %v581 = vpop.f32.mrb[0].mxu0
      %582 = vdwg.mxu0
      %v583 = vpack.c.bf16 %v578, %v578
      %v584 = vld [vmem:[%s506] sm:$0xf]
      %s585 = scalar_lea.vmem %s506, 16
      %v586 = vld [vmem:[%s585] sm:$0xf]
      %vm587 = vcmask 64512
      %v589 = vsel %vm587, %v583, 0
      %v592 = vsel %vm587, %v584, 0
      %594 = vmatprep.subr.bf16.mxu0 0
      %595 = vmatpush1.bf16.xpose.msra.mxu0 %v592
      %596 = vmatprep.subr.bf16.mxu0 0
      %597 = vmatpush1.bf16.xpose.msra.mxu0 0
      %598 = vmatprep.subr.bf16.mxu0 0
      %599 = vmatpush1.bf16.xpose.msra.mxu0 0
      %600 = vmatprep.subr.bf16.mxu0 0
      %601 = vmatpush1.bf16.xpose.msra.mxu0 0
      %602 = vmatprep.subr.bf16.mxu0 0
      %603 = vmatpush1.bf16.xpose.msra.mxu0 0
      %604 = vmatprep.subr.bf16.mxu0 0
      %605 = vmatpush1.bf16.xpose.msra.mxu0 0
      %606 = vmatprep.subr.bf16.mxu0 0
      %607 = vmatpush1.bf16.xpose.msra.mxu0 0
      %608 = vmatprep.subr.bf16.mxu0 0
      %609 = vmatpush1.bf16.xpose.msra.mxu0 0
      %610 = vmatprep.subr.bf16.mxu0 0
      %611 = vmatpush1.bf16.xpose.msra.mxu0 0
      %612 = vmatprep.subr.bf16.mxu0 0
      %613 = vmatpush1.bf16.xpose.msra.mxu0 0
      %614 = vmatprep.subr.bf16.mxu0 0
      %615 = vmatpush1.bf16.xpose.msra.mxu0 0
      %616 = vmatprep.subr.bf16.mxu0 0
      %617 = vmatpush1.bf16.xpose.msra.mxu0 0
      %618 = vmatprep.subr.bf16.mxu0 0
      %619 = vmatpush1.bf16.xpose.msra.mxu0 0
      %620 = vmatprep.subr.bf16.mxu0 0
      %621 = vmatpush1.bf16.xpose.msra.mxu0 0
      %622 = vmatprep.subr.bf16.mxu0 0
      %623 = vmatpush1.bf16.xpose.msra.mxu0 0
      %624 = vmatprep.subr.bf16.mxu0 0
      %625 = vmatpush1.bf16.xpose.msra.mxu0 0
      %626 = vmatprep.mubr.bf16.mxu0 0
      %627 = vmatmul.mubr.bf16.gmra.mrb[0].mxu0 %v589
      %v628 = vpop.f32.mrb[0].mxu0
      %v629 = vadd.f32 0.0, %v628
      %v630 = vpop.f32.mrb[0].mxu0
      %v631 = vpop.f32.mrb[0].mxu0
      %v632 = vpop.f32.mrb[0].mxu0
      %633 = vdwg.mxu0
      %v634 = vsel %vm587, %v629, -inf
      %635 = vmax.xlane.f32.xlu0 %v634
      %v636 = vpop.xlane.xlu0 %635
      %v637 = vsub.f32 %v629, %v636
      %v638 = vmul.f32 %v637, 1.442695
      %v639 = vpow.pop %v638
      %v640 = vsel %vm587, %v639, 0.0
      %641 = vadd.xlane.f32.xlu0 %v640
      %v642 = vpop.xlane.xlu0 %641
      %v643 = vrcp.pop %v642
      %v644 = vpack.c.bf16 %v639, %v639
      %v646 = vsel %vm587, %v644, 0
      %vm648 = vcmask 1043456
      %v650 = vsel %vm648, %v586, 0
      %652 = vmatprep.subr.bf16.mxu0 0
      %653 = vmatpush1.bf16.msra.mxu0 %v650
      %654 = vmatprep.subr.bf16.mxu0 0
      %655 = vmatpush1.bf16.msra.mxu0 0
      %656 = vmatprep.subr.bf16.mxu0 0
      %657 = vmatpush1.bf16.msra.mxu0 0
      %658 = vmatprep.subr.bf16.mxu0 0
      %659 = vmatpush1.bf16.msra.mxu0 0
      %660 = vmatprep.subr.bf16.mxu0 0
      %661 = vmatpush1.bf16.msra.mxu0 0
      %662 = vmatprep.subr.bf16.mxu0 0
      %663 = vmatpush1.bf16.msra.mxu0 0
      %664 = vmatprep.subr.bf16.mxu0 0
      %665 = vmatpush1.bf16.msra.mxu0 0
      %666 = vmatprep.subr.bf16.mxu0 0
      %667 = vmatpush1.bf16.msra.mxu0 0
      %668 = vmatprep.subr.bf16.mxu0 0
      %669 = vmatpush1.bf16.msra.mxu0 0
      %670 = vmatprep.subr.bf16.mxu0 0
      %671 = vmatpush1.bf16.msra.mxu0 0
      %672 = vmatprep.subr.bf16.mxu0 0
      %673 = vmatpush1.bf16.msra.mxu0 0
      %674 = vmatprep.subr.bf16.mxu0 0
      %675 = vmatpush1.bf16.msra.mxu0 0
      %676 = vmatprep.subr.bf16.mxu0 0
      %677 = vmatpush1.bf16.msra.mxu0 0
      %678 = vmatprep.subr.bf16.mxu0 0
      %679 = vmatpush1.bf16.msra.mxu0 0
      %680 = vmatprep.subr.bf16.mxu0 0
      %681 = vmatpush1.bf16.msra.mxu0 0
      %682 = vmatprep.subr.bf16.mxu0 0
      %683 = vmatpush1.bf16.msra.mxu0 0
      %684 = vmatprep.mubr.bf16.mxu0 0
      %685 = vmatmul.mubr.bf16.gmra.mrb[0].mxu0 %v646
      %v686 = vpop.f32.mrb[0].mxu0
      %v687 = vadd.f32 0.0, %v686
      %v688 = vpop.f32.mrb[0].mxu0
      %v689 = vpop.f32.mrb[0].mxu0
      %v690 = vpop.f32.mrb[0].mxu0
      %691 = vdwg.mxu0
      %v692 = vmul.f32 %v687, %v643
      %v693 = vpack.c.bf16 %v692, %v692
      %v694 = vld [vmem:[%s4] sm:$0xf]
      %s695 = scalar_lea.vmem %s2, 16
      %v696 = vld [vmem:[%s695] sm:$0xf]
      %v697 = vld [vmem:[%s695 + $0x4] sm:$0xf]
      %v698 = vld [vmem:[%s695 + $0x8] sm:$0xf]
      %v699 = vld [vmem:[%s695 + $0xc] sm:$0xf]
      %s700 = scalar_lea.vmem %s3, 1
      %v701 = vld [vmem:[%s700] sm:$0x1]
      %v703 = vlaneseq
      %v704 = vshrl.u32 %v703, 7
      %v705 = vsub.s32 0, %v704
      %v706 = vrot.slane %v701, %v705
      %v712 = vunpack.c.l.b16 %v696
      %v713 = vunpack.c.l.b16 %v697
      %v714 = vunpack.c.l.b16 %v698
      %v715 = vunpack.c.l.b16 %v699
      %v716 = vpack.c.b16 %v713, %v712
      %v717 = vpack.c.b16 %v715, %v714
      %720 = vmatprep.subr.bf16.mxu0 0
      %721 = vmatpush1.bf16.msra.mxu0 %v716
      %722 = vmatprep.subr.bf16.mxu0 0
      %723 = vmatpush1.bf16.msra.mxu0 %v717
      %724 = vmatprep.subr.bf16.mxu0 0
      %725 = vmatpush1.bf16.msra.mxu0 0
      %726 = vmatprep.subr.bf16.mxu0 0
      %727 = vmatpush1.bf16.msra.mxu0 0
      %728 = vmatprep.subr.bf16.mxu0 0
      %729 = vmatpush1.bf16.msra.mxu0 0
      %730 = vmatprep.subr.bf16.mxu0 0
      %731 = vmatpush1.bf16.msra.mxu0 0
      %732 = vmatprep.subr.bf16.mxu0 0
      %733 = vmatpush1.bf16.msra.mxu0 0
      %734 = vmatprep.subr.bf16.mxu0 0
      %735 = vmatpush1.bf16.msra.mxu0 0
      %736 = vmatprep.subr.bf16.mxu0 0
      %737 = vmatpush1.bf16.msra.mxu0 0
      %738 = vmatprep.subr.bf16.mxu0 0
      %739 = vmatpush1.bf16.msra.mxu0 0
      %740 = vmatprep.subr.bf16.mxu0 0
      %741 = vmatpush1.bf16.msra.mxu0 0
      %742 = vmatprep.subr.bf16.mxu0 0
      %743 = vmatpush1.bf16.msra.mxu0 0
      %744 = vmatprep.subr.bf16.mxu0 0
      %745 = vmatpush1.bf16.msra.mxu0 0
      %746 = vmatprep.subr.bf16.mxu0 0
      %747 = vmatpush1.bf16.msra.mxu0 0
      %748 = vmatprep.subr.bf16.mxu0 0
      %749 = vmatpush1.bf16.msra.mxu0 0
      %750 = vmatprep.subr.bf16.mxu0 0
      %751 = vmatpush1.bf16.msra.mxu0 0
      %752 = vmatprep.mubr.bf16.mxu0 0
      %753 = vmatmul.mubr.bf16.gmra.mrb[0].mxu0 %v541
      %v754 = vpop.f32.mrb[0].mxu0
      %v755 = vadd.f32 %v706, %v754
      %v756 = vpop.f32.mrb[0].mxu0
      %v757 = vpop.f32.mrb[0].mxu0
      %v758 = vpop.f32.mrb[0].mxu0
      %759 = vdwg.mxu0
      %v760 = vpack.c.bf16 %v755, %v755
      %s761 = scalar_lea.vmem %s506, 4
      %v762 = vld [vmem:[%s761] sm:$0xf]
      %s763 = scalar_lea.vmem %s506, 20
      %v764 = vld [vmem:[%s763] sm:$0xf]
      %v766 = vsel %vm587, %v760, 0
      %v769 = vsel %vm587, %v762, 0
      %771 = vmatprep.subr.bf16.mxu0 0
      %772 = vmatpush1.bf16.xpose.msra.mxu0 %v769
      %773 = vmatprep.subr.bf16.mxu0 0
      %774 = vmatpush1.bf16.xpose.msra.mxu0 0
      %775 = vmatprep.subr.bf16.mxu0 0
      %776 = vmatpush1.bf16.xpose.msra.mxu0 0
      %777 = vmatprep.subr.bf16.mxu0 0
      %778 = vmatpush1.bf16.xpose.msra.mxu0 0
      %779 = vmatprep.subr.bf16.mxu0 0
      %780 = vmatpush1.bf16.xpose.msra.mxu0 0
      %781 = vmatprep.subr.bf16.mxu0 0
      %782 = vmatpush1.bf16.xpose.msra.mxu0 0
      %783 = vmatprep.subr.bf16.mxu0 0
      %784 = vmatpush1.bf16.xpose.msra.mxu0 0
      %785 = vmatprep.subr.bf16.mxu0 0
      %786 = vmatpush1.bf16.xpose.msra.mxu0 0
      %787 = vmatprep.subr.bf16.mxu0 0
      %788 = vmatpush1.bf16.xpose.msra.mxu0 0
      %789 = vmatprep.subr.bf16.mxu0 0
      %790 = vmatpush1.bf16.xpose.msra.mxu0 0
      %791 = vmatprep.subr.bf16.mxu0 0
      %792 = vmatpush1.bf16.xpose.msra.mxu0 0
      %793 = vmatprep.subr.bf16.mxu0 0
      %794 = vmatpush1.bf16.xpose.msra.mxu0 0
      %795 = vmatprep.subr.bf16.mxu0 0
      %796 = vmatpush1.bf16.xpose.msra.mxu0 0
      %797 = vmatprep.subr.bf16.mxu0 0
      %798 = vmatpush1.bf16.xpose.msra.mxu0 0
      %799 = vmatprep.subr.bf16.mxu0 0
      %800 = vmatpush1.bf16.xpose.msra.mxu0 0
      %801 = vmatprep.subr.bf16.mxu0 0
      %802 = vmatpush1.bf16.xpose.msra.mxu0 0
      %803 = vmatprep.mubr.bf16.mxu0 0
      %804 = vmatmul.mubr.bf16.gmra.mrb[0].mxu0 %v766
      %v805 = vpop.f32.mrb[0].mxu0
      %v806 = vadd.f32 0.0, %v805
      %v807 = vpop.f32.mrb[0].mxu0
      %v808 = vpop.f32.mrb[0].mxu0
      %v809 = vpop.f32.mrb[0].mxu0
      %810 = vdwg.mxu0
      %v811 = vsel %vm587, %v806, -inf
      %812 = vmax.xlane.f32.xlu0 %v811
      %v813 = vpop.xlane.xlu0 %812
      %v814 = vsub.f32 %v806, %v813
      %v815 = vmul.f32 %v814, 1.442695
      %v816 = vpow.pop %v815
      %v817 = vsel %vm587, %v816, 0.0
      %818 = vadd.xlane.f32.xlu0 %v817
      %v819 = vpop.xlane.xlu0 %818
      %v820 = vrcp.pop %v819
      %v821 = vpack.c.bf16 %v816, %v816
      %v823 = vsel %vm587, %v821, 0
      %v826 = vsel %vm648, %v764, 0
      %828 = vmatprep.subr.bf16.mxu0 0
      %829 = vmatpush1.bf16.msra.mxu0 %v826
      %830 = vmatprep.subr.bf16.mxu0 0
      %831 = vmatpush1.bf16.msra.mxu0 0
      %832 = vmatprep.subr.bf16.mxu0 0
      %833 = vmatpush1.bf16.msra.mxu0 0
      %834 = vmatprep.subr.bf16.mxu0 0
      %835 = vmatpush1.bf16.msra.mxu0 0
      %836 = vmatprep.subr.bf16.mxu0 0
      %837 = vmatpush1.bf16.msra.mxu0 0
      %838 = vmatprep.subr.bf16.mxu0 0
      %839 = vmatpush1.bf16.msra.mxu0 0
      %840 = vmatprep.subr.bf16.mxu0 0
      %841 = vmatpush1.bf16.msra.mxu0 0
      %842 = vmatprep.subr.bf16.mxu0 0
      %843 = vmatpush1.bf16.msra.mxu0 0
      %844 = vmatprep.subr.bf16.mxu0 0
      %845 = vmatpush1.bf16.msra.mxu0 0
      %846 = vmatprep.subr.bf16.mxu0 0
      %847 = vmatpush1.bf16.msra.mxu0 0
      %848 = vmatprep.subr.bf16.mxu0 0
      %849 = vmatpush1.bf16.msra.mxu0 0
      %850 = vmatprep.subr.bf16.mxu0 0
      %851 = vmatpush1.bf16.msra.mxu0 0
      %852 = vmatprep.subr.bf16.mxu0 0
      %853 = vmatpush1.bf16.msra.mxu0 0
      %854 = vmatprep.subr.bf16.mxu0 0
      %855 = vmatpush1.bf16.msra.mxu0 0
      %856 = vmatprep.subr.bf16.mxu0 0
      %857 = vmatpush1.bf16.msra.mxu0 0
      %858 = vmatprep.subr.bf16.mxu0 0
      %859 = vmatpush1.bf16.msra.mxu0 0
      %860 = vmatprep.mubr.bf16.mxu0 0
      %861 = vmatmul.mubr.bf16.gmra.mrb[0].mxu0 %v823
      %v862 = vpop.f32.mrb[0].mxu0
      %v863 = vadd.f32 0.0, %v862
      %v864 = vpop.f32.mrb[0].mxu0
      %v865 = vpop.f32.mrb[0].mxu0
      %v866 = vpop.f32.mrb[0].mxu0
      %867 = vdwg.mxu0
      %v868 = vmul.f32 %v863, %v820
      %v869 = vpack.c.bf16 %v868, %v868
      %s870 = scalar_lea.vmem %s4, 4
      %v871 = vld [vmem:[%s870] sm:$0xf]
      %v873 = vsel %vm587, %v869, 0
      %v876 = vsel %vm648, %v871, 0
      %878 = vmatprep.subr.bf16.mxu0 0
      %879 = vmatpush1.bf16.msra.mxu0 %v876
      %880 = vmatprep.subr.bf16.mxu0 0
      %881 = vmatpush1.bf16.msra.mxu0 0
      %882 = vmatprep.subr.bf16.mxu0 0
      %883 = vmatpush1.bf16.msra.mxu0 0
      %884 = vmatprep.subr.bf16.mxu0 0
      %885 = vmatpush1.bf16.msra.mxu0 0
      %886 = vmatprep.subr.bf16.mxu0 0
      %887 = vmatpush1.bf16.msra.mxu0 0
      %888 = vmatprep.subr.bf16.mxu0 0
      %889 = vmatpush1.bf16.msra.mxu0 0
      %890 = vmatprep.subr.bf16.mxu0 0
      %891 = vmatpush1.bf16.msra.mxu0 0
      %892 = vmatprep.subr.bf16.mxu0 0
      %893 = vmatpush1.bf16.msra.mxu0 0
      %894 = vmatprep.subr.bf16.mxu0 0
      %895 = vmatpush1.bf16.msra.mxu0 0
      %896 = vmatprep.subr.bf16.mxu0 0
      %897 = vmatpush1.bf16.msra.mxu0 0
      %898 = vmatprep.subr.bf16.mxu0 0
      %899 = vmatpush1.bf16.msra.mxu0 0
      %900 = vmatprep.subr.bf16.mxu0 0
      %901 = vmatpush1.bf16.msra.mxu0 0
      %902 = vmatprep.subr.bf16.mxu0 0
      %903 = vmatpush1.bf16.msra.mxu0 0
      %904 = vmatprep.subr.bf16.mxu0 0
      %905 = vmatpush1.bf16.msra.mxu0 0
      %906 = vmatprep.subr.bf16.mxu0 0
      %907 = vmatpush1.bf16.msra.mxu0 0
      %908 = vmatprep.subr.bf16.mxu0 0
      %909 = vmatpush1.bf16.msra.mxu0 0
      %910 = vmatprep.mubr.bf16.mxu0 0
      %911 = vmatmul.mubr.bf16.gmra.mrb[0].mxu0 %v873
      %v912 = vpop.f32.mrb[0].mxu0
      %v913 = vadd.f32 0.0, %v912
      %v914 = vpop.f32.mrb[0].mxu0
      %v915 = vpop.f32.mrb[0].mxu0
      %v916 = vpop.f32.mrb[0].mxu0
      %917 = vdwg.mxu0
      %v919 = vsel %vm587, %v693, 0
      %v922 = vsel %vm648, %v694, 0
      %924 = vmatprep.subr.bf16.mxu0 0
      %925 = vmatpush1.bf16.msra.mxu0 %v922
      %926 = vmatprep.subr.bf16.mxu0 0
      %927 = vmatpush1.bf16.msra.mxu0 0
      %928 = vmatprep.subr.bf16.mxu0 0
      %929 = vmatpush1.bf16.msra.mxu0 0
      %930 = vmatprep.subr.bf16.mxu0 0
      %931 = vmatpush1.bf16.msra.mxu0 0
      %932 = vmatprep.subr.bf16.mxu0 0
      %933 = vmatpush1.bf16.msra.mxu0 0
      %934 = vmatprep.subr.bf16.mxu0 0
      %935 = vmatpush1.bf16.msra.mxu0 0
      %936 = vmatprep.subr.bf16.mxu0 0
      %937 = vmatpush1.bf16.msra.mxu0 0
      %938 = vmatprep.subr.bf16.mxu0 0
      %939 = vmatpush1.bf16.msra.mxu0 0
      %940 = vmatprep.subr.bf16.mxu0 0
      %941 = vmatpush1.bf16.msra.mxu0 0
      %942 = vmatprep.subr.bf16.mxu0 0
      %943 = vmatpush1.bf16.msra.mxu0 0
      %944 = vmatprep.subr.bf16.mxu0 0
      %945 = vmatpush1.bf16.msra.mxu0 0
      %946 = vmatprep.subr.bf16.mxu0 0
      %947 = vmatpush1.bf16.msra.mxu0 0
      %948 = vmatprep.subr.bf16.mxu0 0
      %949 = vmatpush1.bf16.msra.mxu0 0
      %950 = vmatprep.subr.bf16.mxu0 0
      %951 = vmatpush1.bf16.msra.mxu0 0
      %952 = vmatprep.subr.bf16.mxu0 0
      %953 = vmatpush1.bf16.msra.mxu0 0
      %954 = vmatprep.subr.bf16.mxu0 0
      %955 = vmatpush1.bf16.msra.mxu0 0
      %956 = vmatprep.mubr.bf16.mxu0 0
      %957 = vmatmul.mubr.bf16.gmra.mrb[0].mxu0 %v919
      %v958 = vpop.f32.mrb[0].mxu0
      %v959 = vadd.f32 %v913, %v958
      %v960 = vpop.f32.mrb[0].mxu0
      %v961 = vpop.f32.mrb[0].mxu0
      %v962 = vpop.f32.mrb[0].mxu0
      %963 = vdwg.mxu0
      %s964 = scalar_lea.vmem %s2, 32
      %v965 = vld [vmem:[%s964] sm:$0xf]
      %v966 = vld [vmem:[%s964 + $0x4] sm:$0xf]
      %v967 = vld [vmem:[%s964 + $0x8] sm:$0xf]
      %v968 = vld [vmem:[%s964 + $0xc] sm:$0xf]
      %s969 = scalar_lea.vmem %s3, 2
      %v970 = vld [vmem:[%s969] sm:$0x1]
      %v972 = vlaneseq
      %v973 = vshrl.u32 %v972, 7
      %v974 = vsub.s32 0, %v973
      %v975 = vrot.slane %v970, %v974
      %v981 = vunpack.c.l.b16 %v965
      %v982 = vunpack.c.l.b16 %v966
      %v983 = vunpack.c.l.b16 %v967
      %v984 = vunpack.c.l.b16 %v968
      %v985 = vpack.c.b16 %v982, %v981
      %v986 = vpack.c.b16 %v984, %v983
      %989 = vmatprep.subr.bf16.mxu0 0
      %990 = vmatpush1.bf16.msra.mxu0 %v985
      %991 = vmatprep.subr.bf16.mxu0 0
      %992 = vmatpush1.bf16.msra.mxu0 %v986
      %993 = vmatprep.subr.bf16.mxu0 0
      %994 = vmatpush1.bf16.msra.mxu0 0
      %995 = vmatprep.subr.bf16.mxu0 0
      %996 = vmatpush1.bf16.msra.mxu0 0
      %997 = vmatprep.subr.bf16.mxu0 0
      %998 = vmatpush1.bf16.msra.mxu0 0
      %999 = vmatprep.subr.bf16.mxu0 0
      %1000 = vmatpush1.bf16.msra.mxu0 0
      %1001 = vmatprep.subr.bf16.mxu0 0
      %1002 = vmatpush1.bf16.msra.mxu0 0
      %1003 = vmatprep.subr.bf16.mxu0 0
      %1004 = vmatpush1.bf16.msra.mxu0 0
      %1005 = vmatprep.subr.bf16.mxu0 0
      %1006 = vmatpush1.bf16.msra.mxu0 0
      %1007 = vmatprep.subr.bf16.mxu0 0
      %1008 = vmatpush1.bf16.msra.mxu0 0
      %1009 = vmatprep.subr.bf16.mxu0 0
      %1010 = vmatpush1.bf16.msra.mxu0 0
      %1011 = vmatprep.subr.bf16.mxu0 0
      %1012 = vmatpush1.bf16.msra.mxu0 0
      %1013 = vmatprep.subr.bf16.mxu0 0
      %1014 = vmatpush1.bf16.msra.mxu0 0
      %1015 = vmatprep.subr.bf16.mxu0 0
      %1016 = vmatpush1.bf16.msra.mxu0 0
      %1017 = vmatprep.subr.bf16.mxu0 0
      %1018 = vmatpush1.bf16.msra.mxu0 0
      %1019 = vmatprep.subr.bf16.mxu0 0
      %1020 = vmatpush1.bf16.msra.mxu0 0
      %1021 = vmatprep.mubr.bf16.mxu0 0
      %1022 = vmatmul.mubr.bf16.gmra.mrb[0].mxu0 %v541
      %v1023 = vpop.f32.mrb[0].mxu0
      %v1024 = vadd.f32 %v975, %v1023
      %v1025 = vpop.f32.mrb[0].mxu0
      %v1026 = vpop.f32.mrb[0].mxu0
      %v1027 = vpop.f32.mrb[0].mxu0
      %1028 = vdwg.mxu0
      %v1029 = vpack.c.bf16 %v1024, %v1024
      %s1030 = scalar_lea.vmem %s506, 8
      %v1031 = vld [vmem:[%s1030] sm:$0xf]
      %s1032 = scalar_lea.vmem %s506, 24
      %v1033 = vld [vmem:[%s1032] sm:$0xf]
      %v1035 = vsel %vm587, %v1029, 0
      %v1038 = vsel %vm587, %v1031, 0
      %1040 = vmatprep.subr.bf16.mxu0 0
      %1041 = vmatpush1.bf16.xpose.msra.mxu0 %v1038
      %1042 = vmatprep.subr.bf16.mxu0 0
      %1043 = vmatpush1.bf16.xpose.msra.mxu0 0
      %1044 = vmatprep.subr.bf16.mxu0 0
      %1045 = vmatpush1.bf16.xpose.msra.mxu0 0
      %1046 = vmatprep.subr.bf16.mxu0 0
      %1047 = vmatpush1.bf16.xpose.msra.mxu0 0
      %1048 = vmatprep.subr.bf16.mxu0 0
      %1049 = vmatpush1.bf16.xpose.msra.mxu0 0
      %1050 = vmatprep.subr.bf16.mxu0 0
      %1051 = vmatpush1.bf16.xpose.msra.mxu0 0
      %1052 = vmatprep.subr.bf16.mxu0 0
      %1053 = vmatpush1.bf16.xpose.msra.mxu0 0
      %1054 = vmatprep.subr.bf16.mxu0 0
      %1055 = vmatpush1.bf16.xpose.msra.mxu0 0
      %1056 = vmatprep.subr.bf16.mxu0 0
      %1057 = vmatpush1.bf16.xpose.msra.mxu0 0
      %1058 = vmatprep.subr.bf16.mxu0 0
      %1059 = vmatpush1.bf16.xpose.msra.mxu0 0
      %1060 = vmatprep.subr.bf16.mxu0 0
      %1061 = vmatpush1.bf16.xpose.msra.mxu0 0
      %1062 = vmatprep.subr.bf16.mxu0 0
      %1063 = vmatpush1.bf16.xpose.msra.mxu0 0
      %1064 = vmatprep.subr.bf16.mxu0 0
      %1065 = vmatpush1.bf16.xpose.msra.mxu0 0
      %1066 = vmatprep.subr.bf16.mxu0 0
      %1067 = vmatpush1.bf16.xpose.msra.mxu0 0
      %1068 = vmatprep.subr.bf16.mxu0 0
      %1069 = vmatpush1.bf16.xpose.msra.mxu0 0
      %1070 = vmatprep.subr.bf16.mxu0 0
      %1071 = vmatpush1.bf16.xpose.msra.mxu0 0
      %1072 = vmatprep.mubr.bf16.mxu0 0
      %1073 = vmatmul.mubr.bf16.gmra.mrb[0].mxu0 %v1035
      %v1074 = vpop.f32.mrb[0].mxu0
      %v1075 = vadd.f32 0.0, %v1074
      %v1076 = vpop.f32.mrb[0].mxu0
      %v1077 = vpop.f32.mrb[0].mxu0
      %v1078 = vpop.f32.mrb[0].mxu0
      %1079 = vdwg.mxu0
      %v1080 = vsel %vm587, %v1075, -inf
      %1081 = vmax.xlane.f32.xlu0 %v1080
      %v1082 = vpop.xlane.xlu0 %1081
      %v1083 = vsub.f32 %v1075, %v1082
      %v1084 = vmul.f32 %v1083, 1.442695
      %v1085 = vpow.pop %v1084
      %v1086 = vsel %vm587, %v1085, 0.0
      %1087 = vadd.xlane.f32.xlu0 %v1086
      %v1088 = vpop.xlane.xlu0 %1087
      %v1089 = vrcp.pop %v1088
      %v1090 = vpack.c.bf16 %v1085, %v1085
      %v1092 = vsel %vm587, %v1090, 0
      %v1095 = vsel %vm648, %v1033, 0
      %1097 = vmatprep.subr.bf16.mxu0 0
      %1098 = vmatpush1.bf16.msra.mxu0 %v1095
      %1099 = vmatprep.subr.bf16.mxu0 0
      %1100 = vmatpush1.bf16.msra.mxu0 0
      %1101 = vmatprep.subr.bf16.mxu0 0
      %1102 = vmatpush1.bf16.msra.mxu0 0
      %1103 = vmatprep.subr.bf16.mxu0 0
      %1104 = vmatpush1.bf16.msra.mxu0 0
      %1105 = vmatprep.subr.bf16.mxu0 0
      %1106 = vmatpush1.bf16.msra.mxu0 0
      %1107 = vmatprep.subr.bf16.mxu0 0
      %1108 = vmatpush1.bf16.msra.mxu0 0
      %1109 = vmatprep.subr.bf16.mxu0 0
      %1110 = vmatpush1.bf16.msra.mxu0 0
      %1111 = vmatprep.subr.bf16.mxu0 0
      %1112 = vmatpush1.bf16.msra.mxu0 0
      %1113 = vmatprep.subr.bf16.mxu0 0
      %1114 = vmatpush1.bf16.msra.mxu0 0
      %1115 = vmatprep.subr.bf16.mxu0 0
      %1116 = vmatpush1.bf16.msra.mxu0 0
      %1117 = vmatprep.subr.bf16.mxu0 0
      %1118 = vmatpush1.bf16.msra.mxu0 0
      %1119 = vmatprep.subr.bf16.mxu0 0
      %1120 = vmatpush1.bf16.msra.mxu0 0
      %1121 = vmatprep.subr.bf16.mxu0 0
      %1122 = vmatpush1.bf16.msra.mxu0 0
      %1123 = vmatprep.subr.bf16.mxu0 0
      %1124 = vmatpush1.bf16.msra.mxu0 0
      %1125 = vmatprep.subr.bf16.mxu0 0
      %1126 = vmatpush1.bf16.msra.mxu0 0
      %1127 = vmatprep.subr.bf16.mxu0 0
      %1128 = vmatpush1.bf16.msra.mxu0 0
      %1129 = vmatprep.mubr.bf16.mxu0 0
      %1130 = vmatmul.mubr.bf16.gmra.mrb[0].mxu0 %v1092
      %v1131 = vpop.f32.mrb[0].mxu0
      %v1132 = vadd.f32 0.0, %v1131
      %v1133 = vpop.f32.mrb[0].mxu0
      %v1134 = vpop.f32.mrb[0].mxu0
      %v1135 = vpop.f32.mrb[0].mxu0
      %1136 = vdwg.mxu0
      %v1137 = vmul.f32 %v1132, %v1089
      %v1138 = vpack.c.bf16 %v1137, %v1137
      %s1139 = scalar_lea.vmem %s4, 8
      %v1140 = vld [vmem:[%s1139] sm:$0xf]
      %v1142 = vsel %vm587, %v1138, 0
      %v1145 = vsel %vm648, %v1140, 0
      %1147 = vmatprep.subr.bf16.mxu0 0
      %1148 = vmatpush1.bf16.msra.mxu0 %v1145
      %1149 = vmatprep.subr.bf16.mxu0 0
      %1150 = vmatpush1.bf16.msra.mxu0 0
      %1151 = vmatprep.subr.bf16.mxu0 0
      %1152 = vmatpush1.bf16.msra.mxu0 0
      %1153 = vmatprep.subr.bf16.mxu0 0
      %1154 = vmatpush1.bf16.msra.mxu0 0
      %1155 = vmatprep.subr.bf16.mxu0 0
      %1156 = vmatpush1.bf16.msra.mxu0 0
      %1157 = vmatprep.subr.bf16.mxu0 0
      %1158 = vmatpush1.bf16.msra.mxu0 0
      %1159 = vmatprep.subr.bf16.mxu0 0
      %1160 = vmatpush1.bf16.msra.mxu0 0
      %1161 = vmatprep.subr.bf16.mxu0 0
      %1162 = vmatpush1.bf16.msra.mxu0 0
      %1163 = vmatprep.subr.bf16.mxu0 0
      %1164 = vmatpush1.bf16.msra.mxu0 0
      %1165 = vmatprep.subr.bf16.mxu0 0
      %1166 = vmatpush1.bf16.msra.mxu0 0
      %1167 = vmatprep.subr.bf16.mxu0 0
      %1168 = vmatpush1.bf16.msra.mxu0 0
      %1169 = vmatprep.subr.bf16.mxu0 0
      %1170 = vmatpush1.bf16.msra.mxu0 0
      %1171 = vmatprep.subr.bf16.mxu0 0
      %1172 = vmatpush1.bf16.msra.mxu0 0
      %1173 = vmatprep.subr.bf16.mxu0 0
      %1174 = vmatpush1.bf16.msra.mxu0 0
      %1175 = vmatprep.subr.bf16.mxu0 0
      %1176 = vmatpush1.bf16.msra.mxu0 0
      %1177 = vmatprep.subr.bf16.mxu0 0
      %1178 = vmatpush1.bf16.msra.mxu0 0
      %1179 = vmatprep.mubr.bf16.mxu0 0
      %1180 = vmatmul.mubr.bf16.gmra.mrb[0].mxu0 %v1142
      %v1181 = vpop.f32.mrb[0].mxu0
      %v1182 = vadd.f32 0.0, %v1181
      %v1183 = vpop.f32.mrb[0].mxu0
      %v1184 = vpop.f32.mrb[0].mxu0
      %v1185 = vpop.f32.mrb[0].mxu0
      %1186 = vdwg.mxu0
      %v1187 = vadd.f32 %v959, %v1182
      %s1188 = scalar_lea.vmem %s2, 48
      %v1189 = vld [vmem:[%s1188] sm:$0xf]
      %v1190 = vld [vmem:[%s1188 + $0x4] sm:$0xf]
      %v1191 = vld [vmem:[%s1188 + $0x8] sm:$0xf]
      %v1192 = vld [vmem:[%s1188 + $0xc] sm:$0xf]
      %s1193 = scalar_lea.vmem %s3, 3
      %v1194 = vld [vmem:[%s1193] sm:$0x1]
      %v1196 = vlaneseq
      %v1197 = vshrl.u32 %v1196, 7
      %v1198 = vsub.s32 0, %v1197
      %v1199 = vrot.slane %v1194, %v1198
      %v1205 = vunpack.c.l.b16 %v1189
      %v1206 = vunpack.c.l.b16 %v1190
      %v1207 = vunpack.c.l.b16 %v1191
      %v1208 = vunpack.c.l.b16 %v1192
      %v1209 = vpack.c.b16 %v1206, %v1205
      %v1210 = vpack.c.b16 %v1208, %v1207
      %1213 = vmatprep.subr.bf16.mxu0 0
      %1214 = vmatpush1.bf16.msra.mxu0 %v1209
      %1215 = vmatprep.subr.bf16.mxu0 0
      %1216 = vmatpush1.bf16.msra.mxu0 %v1210
      %1217 = vmatprep.subr.bf16.mxu0 0
      %1218 = vmatpush1.bf16.msra.mxu0 0
      %1219 = vmatprep.subr.bf16.mxu0 0
      %1220 = vmatpush1.bf16.msra.mxu0 0
      %1221 = vmatprep.subr.bf16.mxu0 0
      %1222 = vmatpush1.bf16.msra.mxu0 0
      %1223 = vmatprep.subr.bf16.mxu0 0
      %1224 = vmatpush1.bf16.msra.mxu0 0
      %1225 = vmatprep.subr.bf16.mxu0 0
      %1226 = vmatpush1.bf16.msra.mxu0 0
      %1227 = vmatprep.subr.bf16.mxu0 0
      %1228 = vmatpush1.bf16.msra.mxu0 0
      %1229 = vmatprep.subr.bf16.mxu0 0
      %1230 = vmatpush1.bf16.msra.mxu0 0
      %1231 = vmatprep.subr.bf16.mxu0 0
      %1232 = vmatpush1.bf16.msra.mxu0 0
      %1233 = vmatprep.subr.bf16.mxu0 0
      %1234 = vmatpush1.bf16.msra.mxu0 0
      %1235 = vmatprep.subr.bf16.mxu0 0
      %1236 = vmatpush1.bf16.msra.mxu0 0
      %1237 = vmatprep.subr.bf16.mxu0 0
      %1238 = vmatpush1.bf16.msra.mxu0 0
      %1239 = vmatprep.subr.bf16.mxu0 0
      %1240 = vmatpush1.bf16.msra.mxu0 0
      %1241 = vmatprep.subr.bf16.mxu0 0
      %1242 = vmatpush1.bf16.msra.mxu0 0
      %1243 = vmatprep.subr.bf16.mxu0 0
      %1244 = vmatpush1.bf16.msra.mxu0 0
      %1245 = vmatprep.mubr.bf16.mxu0 0
      %1246 = vmatmul.mubr.bf16.gmra.mrb[0].mxu0 %v541
      %v1247 = vpop.f32.mrb[0].mxu0
      %v1248 = vadd.f32 %v1199, %v1247
      %v1249 = vpop.f32.mrb[0].mxu0
      %v1250 = vpop.f32.mrb[0].mxu0
      %v1251 = vpop.f32.mrb[0].mxu0
      %1252 = vdwg.mxu0
      %v1253 = vpack.c.bf16 %v1248, %v1248
      %s1254 = scalar_lea.vmem %s506, 12
      %v1255 = vld [vmem:[%s1254] sm:$0xf]
      %s1256 = scalar_lea.vmem %s506, 28
      %v1257 = vld [vmem:[%s1256] sm:$0xf]
      %v1259 = vsel %vm587, %v1253, 0
      %v1262 = vsel %vm587, %v1255, 0
      %1264 = vmatprep.subr.bf16.mxu0 0
      %1265 = vmatpush1.bf16.xpose.msra.mxu0 %v1262
      %1266 = vmatprep.subr.bf16.mxu0 0
      %1267 = vmatpush1.bf16.xpose.msra.mxu0 0
      %1268 = vmatprep.subr.bf16.mxu0 0
      %1269 = vmatpush1.bf16.xpose.msra.mxu0 0
      %1270 = vmatprep.subr.bf16.mxu0 0
      %1271 = vmatpush1.bf16.xpose.msra.mxu0 0
      %1272 = vmatprep.subr.bf16.mxu0 0
      %1273 = vmatpush1.bf16.xpose.msra.mxu0 0
      %1274 = vmatprep.subr.bf16.mxu0 0
      %1275 = vmatpush1.bf16.xpose.msra.mxu0 0
      %1276 = vmatprep.subr.bf16.mxu0 0
      %1277 = vmatpush1.bf16.xpose.msra.mxu0 0
      %1278 = vmatprep.subr.bf16.mxu0 0
      %1279 = vmatpush1.bf16.xpose.msra.mxu0 0
      %1280 = vmatprep.subr.bf16.mxu0 0
      %1281 = vmatpush1.bf16.xpose.msra.mxu0 0
      %1282 = vmatprep.subr.bf16.mxu0 0
      %1283 = vmatpush1.bf16.xpose.msra.mxu0 0
      %1284 = vmatprep.subr.bf16.mxu0 0
      %1285 = vmatpush1.bf16.xpose.msra.mxu0 0
      %1286 = vmatprep.subr.bf16.mxu0 0
      %1287 = vmatpush1.bf16.xpose.msra.mxu0 0
      %1288 = vmatprep.subr.bf16.mxu0 0
      %1289 = vmatpush1.bf16.xpose.msra.mxu0 0
      %1290 = vmatprep.subr.bf16.mxu0 0
      %1291 = vmatpush1.bf16.xpose.msra.mxu0 0
      %1292 = vmatprep.subr.bf16.mxu0 0
      %1293 = vmatpush1.bf16.xpose.msra.mxu0 0
      %1294 = vmatprep.subr.bf16.mxu0 0
      %1295 = vmatpush1.bf16.xpose.msra.mxu0 0
      %1296 = vmatprep.mubr.bf16.mxu0 0
      %1297 = vmatmul.mubr.bf16.gmra.mrb[0].mxu0 %v1259
      %v1298 = vpop.f32.mrb[0].mxu0
      %v1299 = vadd.f32 0.0, %v1298
      %v1300 = vpop.f32.mrb[0].mxu0
      %v1301 = vpop.f32.mrb[0].mxu0
      %v1302 = vpop.f32.mrb[0].mxu0
      %1303 = vdwg.mxu0
      %v1304 = vsel %vm587, %v1299, -inf
      %1305 = vmax.xlane.f32.xlu0 %v1304
      %v1306 = vpop.xlane.xlu0 %1305
      %v1307 = vsub.f32 %v1299, %v1306
      %v1308 = vmul.f32 %v1307, 1.442695
      %v1309 = vpow.pop %v1308
      %v1310 = vsel %vm587, %v1309, 0.0
      %1311 = vadd.xlane.f32.xlu0 %v1310
      %v1312 = vpop.xlane.xlu0 %1311
      %v1313 = vrcp.pop %v1312
      %v1314 = vpack.c.bf16 %v1309, %v1309
      %v1316 = vsel %vm587, %v1314, 0
      %v1319 = vsel %vm648, %v1257, 0
      %1321 = vmatprep.subr.bf16.mxu0 0
      %1322 = vmatpush1.bf16.msra.mxu0 %v1319
      %1323 = vmatprep.subr.bf16.mxu0 0
      %1324 = vmatpush1.bf16.msra.mxu0 0
      %1325 = vmatprep.subr.bf16.mxu0 0
      %1326 = vmatpush1.bf16.msra.mxu0 0
      %1327 = vmatprep.subr.bf16.mxu0 0
      %1328 = vmatpush1.bf16.msra.mxu0 0
      %1329 = vmatprep.subr.bf16.mxu0 0
      %1330 = vmatpush1.bf16.msra.mxu0 0
      %1331 = vmatprep.subr.bf16.mxu0 0
      %1332 = vmatpush1.bf16.msra.mxu0 0
      %1333 = vmatprep.subr.bf16.mxu0 0
      %1334 = vmatpush1.bf16.msra.mxu0 0
      %1335 = vmatprep.subr.bf16.mxu0 0
      %1336 = vmatpush1.bf16.msra.mxu0 0
      %1337 = vmatprep.subr.bf16.mxu0 0
      %1338 = vmatpush1.bf16.msra.mxu0 0
      %1339 = vmatprep.subr.bf16.mxu0 0
      %1340 = vmatpush1.bf16.msra.mxu0 0
      %1341 = vmatprep.subr.bf16.mxu0 0
      %1342 = vmatpush1.bf16.msra.mxu0 0
      %1343 = vmatprep.subr.bf16.mxu0 0
      %1344 = vmatpush1.bf16.msra.mxu0 0
      %1345 = vmatprep.subr.bf16.mxu0 0
      %1346 = vmatpush1.bf16.msra.mxu0 0
      %1347 = vmatprep.subr.bf16.mxu0 0
      %1348 = vmatpush1.bf16.msra.mxu0 0
      %1349 = vmatprep.subr.bf16.mxu0 0
      %1350 = vmatpush1.bf16.msra.mxu0 0
      %1351 = vmatprep.subr.bf16.mxu0 0
      %1352 = vmatpush1.bf16.msra.mxu0 0
      %1353 = vmatprep.mubr.bf16.mxu0 0
      %1354 = vmatmul.mubr.bf16.gmra.mrb[0].mxu0 %v1316
      %v1355 = vpop.f32.mrb[0].mxu0
      %v1356 = vadd.f32 0.0, %v1355
      %v1357 = vpop.f32.mrb[0].mxu0
      %v1358 = vpop.f32.mrb[0].mxu0
      %v1359 = vpop.f32.mrb[0].mxu0
      %1360 = vdwg.mxu0
      %v1361 = vmul.f32 %v1356, %v1313
      %v1362 = vpack.c.bf16 %v1361, %v1361
      %s1363 = scalar_lea.vmem %s4, 12
      %v1364 = vld [vmem:[%s1363] sm:$0xf]
      %v1366 = vsel %vm587, %v1362, 0
      %v1369 = vsel %vm648, %v1364, 0
      %1371 = vmatprep.subr.bf16.mxu0 0
      %1372 = vmatpush1.bf16.msra.mxu0 %v1369
      %1373 = vmatprep.subr.bf16.mxu0 0
      %1374 = vmatpush1.bf16.msra.mxu0 0
      %1375 = vmatprep.subr.bf16.mxu0 0
      %1376 = vmatpush1.bf16.msra.mxu0 0
      %1377 = vmatprep.subr.bf16.mxu0 0
      %1378 = vmatpush1.bf16.msra.mxu0 0
      %1379 = vmatprep.subr.bf16.mxu0 0
      %1380 = vmatpush1.bf16.msra.mxu0 0
      %1381 = vmatprep.subr.bf16.mxu0 0
      %1382 = vmatpush1.bf16.msra.mxu0 0
      %1383 = vmatprep.subr.bf16.mxu0 0
      %1384 = vmatpush1.bf16.msra.mxu0 0
      %1385 = vmatprep.subr.bf16.mxu0 0
      %1386 = vmatpush1.bf16.msra.mxu0 0
      %1387 = vmatprep.subr.bf16.mxu0 0
      %1388 = vmatpush1.bf16.msra.mxu0 0
      %1389 = vmatprep.subr.bf16.mxu0 0
      %1390 = vmatpush1.bf16.msra.mxu0 0
      %1391 = vmatprep.subr.bf16.mxu0 0
      %1392 = vmatpush1.bf16.msra.mxu0 0
      %1393 = vmatprep.subr.bf16.mxu0 0
      %1394 = vmatpush1.bf16.msra.mxu0 0
      %1395 = vmatprep.subr.bf16.mxu0 0
      %1396 = vmatpush1.bf16.msra.mxu0 0
      %1397 = vmatprep.subr.bf16.mxu0 0
      %1398 = vmatpush1.bf16.msra.mxu0 0
      %1399 = vmatprep.subr.bf16.mxu0 0
      %1400 = vmatpush1.bf16.msra.mxu0 0
      %1401 = vmatprep.subr.bf16.mxu0 0
      %1402 = vmatpush1.bf16.msra.mxu0 0
      %1403 = vmatprep.mubr.bf16.mxu0 0
      %1404 = vmatmul.mubr.bf16.gmra.mrb[0].mxu0 %v1366
      %v1405 = vpop.f32.mrb[0].mxu0
      %v1406 = vadd.f32 0.0, %v1405
      %v1407 = vpop.f32.mrb[0].mxu0
      %v1408 = vpop.f32.mrb[0].mxu0
      %v1409 = vpop.f32.mrb[0].mxu0
      %1410 = vdwg.mxu0
      %v1411 = vadd.f32 %v1187, %v1406
      %v1412 = vld [vmem:[%s5] sm:$0x1]
      %v1414 = vlaneseq
      %v1415 = vshrl.u32 %v1414, 7
      %v1416 = vsub.s32 0, %v1415
      %v1417 = vrot.slane %v1412, %v1416
      %v1419 = vadd.f32 %v1411, %v1417
      %v1420 = vunpack.c.l.bf16 %v515
      %v1421 = vadd.f32 %v1420, %v1419
      %v1422 = vsel %vm539, %v1421, 0.0
      %1423 = vadd.xlane.f32.xlu0 %v1422
      %v1424 = vpop.xlane.xlu0 %1423
      %v1425 = vrcp.pop 32.0
      %v1426 = vmul.f32 %v1424, %v1425
      %v1427 = vsub.f32 %v1421, %v1426
      %v1428 = vmul.f32 %v1427, %v1427
      %v1429 = vsel %vm539, %v1428, 0.0
      %1430 = vadd.xlane.f32.xlu0 %v1429
      %v1431 = vpop.xlane.xlu0 %1430
      %v1432 = vmul.f32 %v1431, %v1425
      %v1433 = vadd.f32 %v1432, 1e-05
      %v1434 = vrsqrt.pop %v1433
      %v1435 = vmul.f32 %v1427, %v1434
      %v1436 = vld [vmem:[%s10] sm:$0x1]
      %v1438 = vlaneseq
      %v1439 = vshrl.u32 %v1438, 7
      %v1440 = vsub.s32 0, %v1439
      %v1441 = vrot.slane %v1436, %v1440
      %v1443 = vmul.f32 %v1435, %v1441
      %v1444 = vld [vmem:[%s11] sm:$0x1]
      %v1446 = vlaneseq
      %v1447 = vshrl.u32 %v1446, 7
      %v1448 = vsub.s32 0, %v1447
      %v1449 = vrot.slane %v1444, %v1448
      %v1451 = vadd.f32 %v1443, %v1449
      %v1452 = vpack.c.bf16 %v1451, %v1451
      %v1453 = vld [vmem:[%s6] sm:$0xf]
      %v1454 = vld [vmem:[%s6 + $0x4] sm:$0xf]
      %v1455 = vld [vmem:[%s6 + $0x8] sm:$0xf]
      %v1456 = vld [vmem:[%s6 + $0xc] sm:$0xf]
      %v1457 = vld [vmem:[%s7] sm:$0x1]
      %v1459 = vlaneseq
      %v1460 = vshrl.u32 %v1459, 7
      %v1461 = vsub.s32 0, %v1460
      %v1462 = vrot.slane %v1457, %v1461
      %v1468 = vunpack.c.l.b16 %v1453
      %v1469 = vunpack.c.l.b16 %v1454
      %v1470 = vunpack.c.l.b16 %v1455
      %v1471 = vunpack.c.l.b16 %v1456
      %v1472 = vpack.c.b16 %v1469, %v1468
      %v1473 = vpack.c.b16 %v1471, %v1470
      %v1477 = vsel %vm539, %v1452, 0
      %1479 = vmatprep.subr.bf16.mxu0 0
      %1480 = vmatpush1.bf16.msra.mxu0 %v1472
      %1481 = vmatprep.subr.bf16.mxu0 0
      %1482 = vmatpush1.bf16.msra.mxu0 %v1473
      %1483 = vmatprep.subr.bf16.mxu0 0
      %1484 = vmatpush1.bf16.msra.mxu0 0
      %1485 = vmatprep.subr.bf16.mxu0 0
      %1486 = vmatpush1.bf16.msra.mxu0 0
      %1487 = vmatprep.subr.bf16.mxu0 0
      %1488 = vmatpush1.bf16.msra.mxu0 0
      %1489 = vmatprep.subr.bf16.mxu0 0
      %1490 = vmatpush1.bf16.msra.mxu0 0
      %1491 = vmatprep.subr.bf16.mxu0 0
      %1492 = vmatpush1.bf16.msra.mxu0 0
      %1493 = vmatprep.subr.bf16.mxu0 0
      %1494 = vmatpush1.bf16.msra.mxu0 0
      %1495 = vmatprep.subr.bf16.mxu0 0
      %1496 = vmatpush1.bf16.msra.mxu0 0
      %1497 = vmatprep.subr.bf16.mxu0 0
      %1498 = vmatpush1.bf16.msra.mxu0 0
      %1499 = vmatprep.subr.bf16.mxu0 0
      %1500 = vmatpush1.bf16.msra.mxu0 0
      %1501 = vmatprep.subr.bf16.mxu0 0
      %1502 = vmatpush1.bf16.msra.mxu0 0
      %1503 = vmatprep.subr.bf16.mxu0 0
      %1504 = vmatpush1.bf16.msra.mxu0 0
      %1505 = vmatprep.subr.bf16.mxu0 0
      %1506 = vmatpush1.bf16.msra.mxu0 0
      %1507 = vmatprep.subr.bf16.mxu0 0
      %1508 = vmatpush1.bf16.msra.mxu0 0
      %1509 = vmatprep.subr.bf16.mxu0 0
      %1510 = vmatpush1.bf16.msra.mxu0 0
      %1511 = vmatprep.mubr.bf16.mxu0 0
      %1512 = vmatmul.mubr.bf16.gmra.mrb[0].mxu0 %v1477
      %v1513 = vpop.f32.mrb[0].mxu0
      %v1514 = vadd.f32 %v1462, %v1513
      %v1515 = vpop.f32.mrb[0].mxu0
      %v1516 = vpop.f32.mrb[0].mxu0
      %v1517 = vpop.f32.mrb[0].mxu0
      %1518 = vdwg.mxu0
      %v1519 = vmax.f32 %v1514, 0.0
      %v1520 = vpack.c.bf16 %v1519, %v1519
      %v1521 = vld [vmem:[%s8] sm:$0xf]
      %v1522 = vld [vmem:[%s8 + $0x4] sm:$0xf]
      %v1523 = vld [vmem:[%s8 + $0x8] sm:$0xf]
      %v1524 = vld [vmem:[%s8 + $0xc] sm:$0xf]
      %v1525 = vld [vmem:[%s8 + $0x10] sm:$0xf]
      %v1526 = vld [vmem:[%s8 + $0x14] sm:$0xf]
      %v1527 = vld [vmem:[%s8 + $0x18] sm:$0xf]
      %v1528 = vld [vmem:[%s8 + $0x1c] sm:$0xf]
      %v1529 = vld [vmem:[%s9] sm:$0x1]
      %v1531 = vlaneseq
      %v1532 = vshrl.u32 %v1531, 7
      %v1533 = vsub.s32 0, %v1532
      %v1534 = vrot.slane %v1529, %v1533
      %v1544 = vunpack.c.l.b16 %v1521
      %v1545 = vunpack.c.l.b16 %v1522
      %v1546 = vunpack.c.l.b16 %v1523
      %v1547 = vunpack.c.l.b16 %v1524
      %v1548 = vunpack.c.l.b16 %v1525
      %v1549 = vunpack.c.l.b16 %v1526
      %v1550 = vunpack.c.l.b16 %v1527
      %v1551 = vunpack.c.l.b16 %v1528
      %v1552 = vpack.c.b16 %v1545, %v1544
      %v1553 = vpack.c.b16 %v1547, %v1546
      %v1554 = vpack.c.b16 %v1549, %v1548
      %v1555 = vpack.c.b16 %v1551, %v1550
      %vm1560 = vcmask 523264
      %v1562 = vsel %vm1560, %v1520, 0
      %1564 = vmatprep.subr.bf16.mxu0 0
      %1565 = vmatpush1.bf16.msra.mxu0 %v1552
      %1566 = vmatprep.subr.bf16.mxu0 0
      %1567 = vmatpush1.bf16.msra.mxu0 %v1553
      %1568 = vmatprep.subr.bf16.mxu0 0
      %1569 = vmatpush1.bf16.msra.mxu0 %v1554
      %1570 = vmatprep.subr.bf16.mxu0 0
      %1571 = vmatpush1.bf16.msra.mxu0 %v1555
      %1572 = vmatprep.subr.bf16.mxu0 0
      %1573 = vmatpush1.bf16.msra.mxu0 0
      %1574 = vmatprep.subr.bf16.mxu0 0
      %1575 = vmatpush1.bf16.msra.mxu0 0
      %1576 = vmatprep.subr.bf16.mxu0 0
      %1577 = vmatpush1.bf16.msra.mxu0 0
      %1578 = vmatprep.subr.bf16.mxu0 0
      %1579 = vmatpush1.bf16.msra.mxu0 0
      %1580 = vmatprep.subr.bf16.mxu0 0
      %1581 = vmatpush1.bf16.msra.mxu0 0
      %1582 = vmatprep.subr.bf16.mxu0 0
      %1583 = vmatpush1.bf16.msra.mxu0 0
      %1584 = vmatprep.subr.bf16.mxu0 0
      %1585 = vmatpush1.bf16.msra.mxu0 0
      %1586 = vmatprep.subr.bf16.mxu0 0
      %1587 = vmatpush1.bf16.msra.mxu0 0
      %1588 = vmatprep.subr.bf16.mxu0 0
      %1589 = vmatpush1.bf16.msra.mxu0 0
      %1590 = vmatprep.subr.bf16.mxu0 0
      %1591 = vmatpush1.bf16.msra.mxu0 0
      %1592 = vmatprep.subr.bf16.mxu0 0
      %1593 = vmatpush1.bf16.msra.mxu0 0
      %1594 = vmatprep.subr.bf16.mxu0 0
      %1595 = vmatpush1.bf16.msra.mxu0 0
      %1596 = vmatprep.mubr.bf16.mxu0 0
      %1597 = vmatmul.mubr.bf16.gmra.mrb[0].mxu0 %v1562
      %v1598 = vpop.f32.mrb[0].mxu0
      %v1599 = vadd.f32 %v1534, %v1598
      %v1600 = vpop.f32.mrb[0].mxu0
      %v1601 = vpop.f32.mrb[0].mxu0
      %v1602 = vpop.f32.mrb[0].mxu0
      %1603 = vdwg.mxu0
      %v1604 = vadd.f32 %v1451, %v1599
      %v1605 = vsel %vm539, %v1604, 0.0
      %1606 = vadd.xlane.f32.xlu0 %v1605
      %v1607 = vpop.xlane.xlu0 %1606
      %v1608 = vmul.f32 %v1607, %v1425
      %v1609 = vsub.f32 %v1604, %v1608
      %v1610 = vmul.f32 %v1609, %v1609
      %v1611 = vsel %vm539, %v1610, 0.0
      %1612 = vadd.xlane.f32.xlu0 %v1611
      %v1613 = vpop.xlane.xlu0 %1612
      %v1614 = vmul.f32 %v1613, %v1425
      %v1615 = vadd.f32 %v1614, 1e-05
      %v1616 = vrsqrt.pop %v1615
      %v1617 = vmul.f32 %v1609, %v1616
      %v1618 = vld [vmem:[%s12] sm:$0x1]
      %v1620 = vlaneseq
      %v1621 = vshrl.u32 %v1620, 7
      %v1622 = vsub.s32 0, %v1621
      %v1623 = vrot.slane %v1618, %v1622
      %v1625 = vmul.f32 %v1617, %v1623
      %v1626 = vld [vmem:[%s13] sm:$0x1]
      %v1628 = vlaneseq
      %v1629 = vshrl.u32 %v1628, 7
      %v1630 = vsub.s32 0, %v1629
      %v1631 = vrot.slane %v1626, %v1630
      %v1633 = vadd.f32 %v1625, %v1631
      %v1634 = vpack.c.bf16 %v1633, %v1633
      %vm1635 = vcmask 257024
      %1636 = vst.msk [vmem:[%s513] sm:$0xf] %vm1635, %v1634
      %p1637 = scmp.lt.s32.totalorder %s29, 1
      %s1638 = scalar_select %p1637, %s29, 1
      %p1639 = scmp.lt.s32.totalorder %s30, 0
      %s1640 = scalar_select %p1639, %s30, 0
      %s1641 = sadd.s32 %s1640, %s1638
      %s1642 = smul.addr %s1641, 4
      %s1643 = scalar_lea.vmem %s14, %s1642
      // Predicated region
      $region77: #{transformer_forward.5} parent=75 // pred_check
        %p1644 = pneg %p363
      $region78: #{transformer_forward.5} parent=75 // pred_check_branch
        %1646 = sbr.rel (%p1644) target = $region80
      $region79: #{transformer_forward.5} parent=75 // pred_region
        _
      $region80: #{transformer_forward.5} parent=75 // pred_fallthru
        _
    $region76: #{transformer_forward.5} parent=5 // pred_fallthru
      _
    %p1647 = scmp.le.s32.totalorder 2, %s20
    // Predicated region
    $region81: #{transformer_forward.5} parent=5 // pred_check
      %p1648 = pneg %p1647
    $region82: #{transformer_forward.5} parent=5 // pred_check_branch
      %1650 = sbr.rel (%p1648) target = $region84
    $region83: #{transformer_forward.5} parent=5 // pred_region
      %s1651 = ssub.s32 %s20, 2
      // Predicated region
      $region85: #{transformer_forward.5} parent=83 // pred_check
        %p1652 = pneg %p369
      $region86: #{transformer_forward.5} parent=83 // pred_check_branch
        %1654 = sbr.rel (%p1652) target = $region88
      $region87: #{transformer_forward.5} parent=83 // pred_region
        %p1655 = scmp.lt.s32.totalorder %s31, 1
        %s1656 = scalar_select %p1655, %s31, 1
        %p1657 = scmp.lt.s32.totalorder %s32, 0
        %s1658 = scalar_select %p1657, %s32, 0
        %s1659 = sadd.s32 %s1658, %s1656
        %s1660 = smul.addr %s1659, 4
        %s1661 = scalar_lea.vmem %s14, %s1660
      $region88: #{transformer_forward.5} parent=83 // pred_fallthru
        _
    $region84: #{transformer_forward.5} parent=5 // pred_fallthru
      _
  $region6: #{transformer_forward.5} parent=0 // loop_footer
    %s24 = sadd.s32 1, %s20
  $region7: #{transformer_forward.5} parent=0 // loop_footer_branch
    %19 = sbr.rel target = $region3
  $region8: #{transformer_forward.5} parent=0 // loop_exit
    _

</llo_original>
